<compile_context>
chip_gen: v7x
topology: tpu7x:2x2x1
jax: 0.10.0
libtpu: 0.0.40
codegen_flags: <defaults>
</compile_context>

<pallas_src>
import jax
import jax.numpy as jnp
from jax.experimental import pallas as pl
from jax.experimental.pallas import tpu as pltpu


_VMEM_LIMIT = 48 * 1024 * 1024  # fits v7x (64 MiB physical), conservative on v5e/v6e


# ------------------------------ Pallas kernels ------------------------------


def gates_kernel(x_ref, w_ref, b_ref, o_ref):
    """Fused input projection for BOTH directions, one (batch, time-tile) block.

    x_ref: (tt, D) f32   native-layout feature rows (cast to bf16 in-kernel)
    w_ref: (D, 8H) bf16  [W_ih_f^T | W_ih_b^T]
    b_ref: (1, 8H) f32   [b_f | b_b]  (b_ih + b_hh per direction)
    o_ref: (tt, 8H) bf16 pre-activation gate slab (bf16 halves HBM traffic)
    """
    x = x_ref[...].astype(jnp.bfloat16)
    acc = jnp.dot(x, w_ref[...], preferred_element_type=jnp.float32) + b_ref[...]
    o_ref[...] = acc.astype(o_ref.dtype)


def lstm_cell_kernel(lens_ref, gxf_ref, gxb_ref, whh_ref,
                     hf_ref, hb_ref, h_scr, c_scr):
    """One time-chunk of the bidirectional recurrence (grid = (num_chunks,)).

    lens_ref: (B, 1) int32     valid lengths
    gxf_ref : (B, tS, 4H) bf16 forward-direction x-gates for chunk c
    gxb_ref : (B, tS, 4H) bf16 backward-direction x-gates for chunk nC-1-c
    whh_ref : (2, H, 4H) bf16  W_hh^T per direction
    hf_ref  : (B, tS, H) bf16  forward hidden outputs (time block c)
    hb_ref  : (B, tS, H) bf16  backward hidden outputs (time block nC-1-c)
    h_scr/c_scr: (2, B, H) f32 persistent carries (slot 0 = fwd, 1 = bwd)
    """
    c = pl.program_id(0)
    nC = pl.num_programs(0)
    tS = gxf_ref.shape[1]
    H = h_scr.shape[2]

    @pl.when(c == 0)
    def _():
        h_scr[...] = jnp.zeros_like(h_scr)
        c_scr[...] = jnp.zeros_like(c_scr)

    lens = lens_ref[...]                    # (B, 1) int32
    t0_f = c * tS                           # first real time of the forward chunk
    t0_b = (nC - 1 - c) * tS                # block base time of the backward chunk
    w_f = whh_ref[0]                        # (H, 4H)
    w_b = whh_ref[1]

    hf, cf = h_scr[0], c_scr[0]
    hb, cb = h_scr[1], c_scr[1]

    def cell(gates, c_prev):
        # PyTorch gate order: i, f, g, o
        i = jax.nn.sigmoid(gates[:, 0 * H:1 * H])
        f = jax.nn.sigmoid(gates[:, 1 * H:2 * H])
        g = jnp.tanh(gates[:, 2 * H:3 * H])
        o = jax.nn.sigmoid(gates[:, 3 * H:4 * H])
        c_new = f * c_prev + i * g
        h_new = o * jnp.tanh(c_new)
        return h_new, c_new

    # Static full unroll of the chunk (tS <= 16); equivalent to
    # lax.fori_loop(0, tS, ..., unroll=True) and gives static VMEM slices.
    for s in range(tS):
        sb = tS - 1 - s                     # backward processes the chunk in reverse

        g_f = gxf_ref[:, s, :].astype(jnp.float32) + jnp.dot(
            hf.astype(jnp.bfloat16), w_f, preferred_element_type=jnp.float32)
        g_b = gxb_ref[:, sb, :].astype(jnp.float32) + jnp.dot(
            hb.astype(jnp.bfloat16), w_b, preferred_element_type=jnp.float32)

        hf_n, cf_n = cell(g_f, cf)
        hb_n, cb_n = cell(g_b, cb)

        vf = (t0_f + s) < lens              # (B, 1) bool — pack_padded semantics
        vb = (t0_b + sb) < lens

        hf = jnp.where(vf, hf_n, hf)        # freeze carry on padded steps
        cf = jnp.where(vf, cf_n, cf)
        hb = jnp.where(vb, hb_n, hb)
        cb = jnp.where(vb, cb_n, cb)

        hf_ref[:, s, :] = jnp.where(vf, hf_n, 0.0).astype(hf_ref.dtype)
        hb_ref[:, sb, :] = jnp.where(vb, hb_n, 0.0).astype(hb_ref.dtype)

    h_scr[0] = hf
    c_scr[0] = cf
    h_scr[1] = hb
    c_scr[1] = cb


def head_kernel(hf_ref, hb_ref, wf_ref, wb_ref, b_ref, o_ref):
    """Linear head on the two direction streams (no concat materialized).

    hf_ref/hb_ref: (B, tt, H) bf16 ; wf/wb: (H, tv) bf16 ; b: (1, tv) f32
    o_ref: (B, tt, tv) f32  — already in (B, T, V) layout, no final transpose.
    """
    B, tt, H = hf_ref.shape
    V = o_ref.shape[2]
    hf = hf_ref[...].reshape(B * tt, H)
    hb = hb_ref[...].reshape(B * tt, H)
    acc = jnp.dot(hf, wf_ref[...], preferred_element_type=jnp.float32)
    acc = acc + jnp.dot(hb, wb_ref[...], preferred_element_type=jnp.float32)
    acc = acc + b_ref[...]
    o_ref[...] = acc.reshape(B, tt, V)


# ------------------------------ Pallas wrappers ------------------------------


def _run_gates(feature, w, b, tt):
    """feature: (B,T,D) f32, w: (D,8H) bf16, b: (1,8H) f32 -> gx (B,T,8H) bf16."""
    B, T, D = feature.shape
    G2 = w.shape[1]
    return pl.pallas_call(
        gates_kernel,
        grid=(B, pl.cdiv(T, tt)),
        in_specs=[
            pl.BlockSpec((None, tt, D), lambda bb, i: (bb, i, 0)),
            pl.BlockSpec((D, G2), lambda bb, i: (0, 0)),
            pl.BlockSpec((1, G2), lambda bb, i: (0, 0)),
        ],
        out_specs=pl.BlockSpec((None, tt, G2), lambda bb, i: (bb, i, 0)),
        out_shape=jax.ShapeDtypeStruct((B, T, G2), jnp.bfloat16),
        compiler_params=pltpu.CompilerParams(
            dimension_semantics=("parallel", "parallel"),
            vmem_limit_bytes=_VMEM_LIMIT),
    )(feature, w, b)


def _run_recurrence(lens, gx, whh, tS):
    """lens: (B,1) i32, gx: (B,T,8H) bf16, whh: (2,H,4H) bf16 -> hf, hb (B,T,H) bf16."""
    B, T, G2 = gx.shape
    G = G2 // 2                     # 4H
    H = whh.shape[1]
    nC = pl.cdiv(T, tS)

    return pl.pallas_call(
        lstm_cell_kernel,
        grid=(nC,),
        in_specs=[
            pl.BlockSpec((B, 1), lambda c: (0, 0)),
            pl.BlockSpec((B, tS, G), lambda c: (0, c, 0)),            # fwd half
            pl.BlockSpec((B, tS, G), lambda c: (0, nC - 1 - c, 1)),   # bwd half
            pl.BlockSpec((2, H, G), lambda c: (0, 0, 0)),
        ],
        out_specs=(
            pl.BlockSpec((B, tS, H), lambda c: (0, c, 0)),
            pl.BlockSpec((B, tS, H), lambda c: (0, nC - 1 - c, 0)),
        ),
        out_shape=(jax.ShapeDtypeStruct((B, T, H), jnp.bfloat16),
                   jax.ShapeDtypeStruct((B, T, H), jnp.bfloat16)),
        scratch_shapes=[pltpu.VMEM((2, B, H), jnp.float32),
                        pltpu.VMEM((2, B, H), jnp.float32)],
        compiler_params=pltpu.CompilerParams(
            dimension_semantics=("arbitrary",),
            vmem_limit_bytes=_VMEM_LIMIT),
    )(lens, gx, gx, whh)


def _run_head(hf, hb, wf, wb, b, tt, tv):
    """hf/hb: (B,T,H) bf16, wf/wb: (H,V) bf16, b: (1,V) f32 -> y (B,T,V) f32."""
    B, T, H = hf.shape
    V = wf.shape[1]
    return pl.pallas_call(
        head_kernel,
        grid=(pl.cdiv(T, tt), pl.cdiv(V, tv)),
        in_specs=[
            pl.BlockSpec((B, tt, H), lambda i, j: (0, i, 0)),
            pl.BlockSpec((B, tt, H), lambda i, j: (0, i, 0)),
            pl.BlockSpec((H, tv), lambda i, j: (0, j)),
            pl.BlockSpec((H, tv), lambda i, j: (0, j)),
            pl.BlockSpec((1, tv), lambda i, j: (0, j)),
        ],
        out_specs=pl.BlockSpec((B, tt, tv), lambda i, j: (0, i, j)),
        out_shape=jax.ShapeDtypeStruct((B, T, V), jnp.float32),
        compiler_params=pltpu.CompilerParams(
            dimension_semantics=("parallel", "parallel"),
            vmem_limit_bytes=_VMEM_LIMIT),
    )(hf, hb, wf, wb, b)


# ------------------------------ forward (module) -----------------------------


def lstm_linear_forward(params, feature, lengths):
    """Equivalent of LSTMLinear.forward(feature, length). feature: (B,T,D) f32."""
    B, T, D = feature.shape
    lens = lengths.astype(jnp.int32).reshape(B, 1)
    V = params["w_lin_f"].shape[1]

    tt_g = T if T <= 256 else 256          # gates time tile
    tS = T if T <= 16 else 16              # recurrence chunk length
    tt_h = T if T <= 256 else 256          # head time tile
    tv = V if V <= 512 else 512            # head vocab tile

    gx = _run_gates(feature, params["wih"], params["b"], tt_g)     # (B, T, 8H) bf16
    hf, hb = _run_recurrence(lens, gx, params["whh"], tS)          # (B, T, H) bf16 x2
    # Dropout(p=0.0) is identity.
    y = _run_head(hf, hb, params["w_lin_f"], params["w_lin_b"],
                  params["b_lin"], tt_h, tv)                       # (B, T, V) f32
    return y


# --------------------------- pure-JAX reference check -------------------------


def _forward_ref(params, feature, lengths):
    """Same math as the kernels (bf16 matmul operands / gx, f32 cell state)."""
    B, T, D = feature.shape
    H = D // 2
    xb = feature.astype(jnp.bfloat16)
    lens = lengths.astype(jnp.int32)
    wih, whh, bias = params["wih"], params["whh"], params["b"]

    def run_dir(d, reverse):
        w_i = wih[:, d * 4 * H:(d + 1) * 4 * H]
        w_h = whh[d]
        bb = bias[:, d * 4 * H:(d + 1) * 4 * H]

        def step(carry, t):
            h, c = carry
            x_t = xb[:, t, :]
            gx = (jnp.dot(x_t, w_i, preferred_element_type=jnp.float32) + bb
                  ).astype(jnp.bfloat16).astype(jnp.float32)
            gates = gx + jnp.dot(h.astype(jnp.bfloat16), w_h,
                                 preferred_element_type=jnp.float32)
            i = jax.nn.sigmoid(gates[:, :H])
            f = jax.nn.sigmoid(gates[:, H:2 * H])
            g = jnp.tanh(gates[:, 2 * H:3 * H])
            o = jax.nn.sigmoid(gates[:, 3 * H:])
            c_new = f * c + i * g
            h_new = o * jnp.tanh(c_new)
            valid = (t < lens)[:, None]
            h2 = jnp.where(valid, h_new, h)
            c2 = jnp.where(valid, c_new, c)
            y = jnp.where(valid, h_new, 0.0).astype(jnp.bfloat16)
            return (h2, c2), y

        ts = jnp.arange(T - 1, -1, -1) if reverse else jnp.arange(T)
        init = (jnp.zeros((B, H), jnp.float32), jnp.zeros((B, H), jnp.float32))
        _, ys = jax.lax.scan(step, init, ts)       # (T, B, H) in scan order
        return ys[::-1] if reverse else ys         # time order

    hf = run_dir(0, False)
    hb = run_dir(1, True)
    y = (jnp.dot(hf.reshape(T * B, H), params["w_lin_f"],
                 preferred_element_type=jnp.float32)
         + jnp.dot(hb.reshape(T * B, H), params["w_lin_b"],
                   preferred_element_type=jnp.float32)
         + params["b_lin"])
    return jnp.transpose(y.reshape(T, B, -1), (1, 0, 2))


# ----------------------------------- params -----------------------------------


def init_params(key, linear_dim, vocab_size):
    D = linear_dim
    H = D // 2
    V = vocab_size + 1
    bound = 1.0 / (H ** 0.5)
    ks = jax.random.split(key, 10)

    def u(k, shape, b):
        return jax.random.uniform(k, shape, jnp.float32, -b, b)

    # PyTorch layouts: weight_ih (4H, D), weight_hh (4H, H), biases (4H,); gate order i,f,g,o
    wih_f = u(ks[0], (4 * H, D), bound)
    wih_b = u(ks[1], (4 * H, D), bound)
    whh_f = u(ks[2], (4 * H, H), bound)
    whh_b = u(ks[3], (4 * H, H), bound)
    b_f = u(ks[4], (4 * H,), bound) + u(ks[5], (4 * H,), bound)
    b_b = u(ks[6], (4 * H,), bound) + u(ks[7], (4 * H,), bound)

    lb = 1.0 / (D ** 0.5)
    w_lin = u(ks[8], (V, D), lb)              # PyTorch Linear weight (V, 2H)
    b_lin = u(ks[9], (V,), lb)
    wT = w_lin.T                              # (2H, V)

    return dict(
        wih=jnp.concatenate([wih_f.T, wih_b.T], axis=1).astype(jnp.bfloat16),  # (D, 8H)
        whh=jnp.stack([whh_f.T, whh_b.T]).astype(jnp.bfloat16),                # (2, H, 4H)
        b=jnp.concatenate([b_f, b_b])[None, :],                                # (1, 8H) f32
        w_lin_f=wT[:H].astype(jnp.bfloat16),                                   # (H, V)
        w_lin_b=wT[H:].astype(jnp.bfloat16),                                   # (H, V)
        b_lin=b_lin[None, :],                                                  # (1, V) f32
    )


# ------------------------------------ main -------------------------------------

if __name__ == "__main__":
    # D=64 -> H=32, 4H=128 so the per-direction gate slab is lane-aligned
    # (mirrors the real model where H=384 is a multiple of 128).
    B, T, LINEAR_DIM, VOCAB = 2, 8, 64, 10

    key = jax.random.PRNGKey(0)
    k_feat, k_par = jax.random.split(key)
    feature = jax.random.normal(k_feat, (B, T, LINEAR_DIM), jnp.float32)
    lengths = jnp.array([T, 5], dtype=jnp.int32)   # max length == T
    params = init_params(k_par, LINEAR_DIM, VOCAB)

    fwd = jax.jit(lstm_linear_forward)
    out = jax.block_until_ready(fwd(params, feature, lengths))

    ref = jax.block_until_ready(jax.jit(_forward_ref)(params, feature, lengths))

    assert out.shape == (B, T, VOCAB + 1)
    assert bool(jnp.all(jnp.isfinite(out)))
    assert bool(jnp.allclose(out, ref, atol=2e-2, rtol=2e-2))

    print("KERNEL_OK")
</pallas_src>

<mosaic_0001>
module attributes {stable_mosaic.version = 11 : i64} {
  func.func @gates_kernel(%arg0: i32, %arg1: i32, %arg2: memref<1x8x64xf32, #tpu.memory_space<vmem>>, %arg3: memref<64x256xbf16, #tpu.memory_space<vmem>>, %arg4: memref<1x256xf32, #tpu.memory_space<vmem>>, %arg5: memref<1x8x256xbf16, #tpu.memory_space<vmem>>) attributes {dimension_semantics = [#tpu.dimension_semantics<parallel>, #tpu.dimension_semantics<parallel>], iteration_bounds = array<i64: 2, 1>, scalar_prefetch = 0 : i64, scratch_operands = 0 : i64, tpu.core_type = #tpu.core_type<tc>, window_params = [{transform_indices = @transform_0, window_bounds = array<i64: 1, 8, 64>}, {pipeline_mode = #tpu.pipeline_mode<synchronous>, transform_indices = @transform_1, window_bounds = array<i64: 64, 256>}, {pipeline_mode = #tpu.pipeline_mode<synchronous>, transform_indices = @transform_2, window_bounds = array<i64: 1, 256>}, {transform_indices = @transform_3, window_bounds = array<i64: 1, 8, 256>}]} {
    %c0 = arith.constant 0 : index
    %c0_0 = arith.constant 0 : index
    %c0_1 = arith.constant 0 : index
    %0 = vector.load %arg2[%c0, %c0_0, %c0_1] : memref<1x8x64xf32, #tpu.memory_space<vmem>>, vector<1x8x64xf32>
    %1 = vector.shape_cast %0 : vector<1x8x64xf32> to vector<8x64xf32>
    %2 = arith.truncf %1 : vector<8x64xf32> to vector<8x64xbf16>
    %c0_2 = arith.constant 0 : index
    %c0_3 = arith.constant 0 : index
    %3 = vector.load %arg3[%c0_2, %c0_3] : memref<64x256xbf16, #tpu.memory_space<vmem>>, vector<64x256xbf16>
    %cst = arith.constant dense<0.000000e+00> : vector<8x256xf32>
    %4 = tpu.matmul %2, %3, %cst {dimension_numbers = #tpu.dot_dimension_numbers<[1], [0], [0], [1], [0, 0, 1, 1], [], []>} : vector<8x64xbf16>, vector<64x256xbf16>, vector<8x256xf32> -> vector<8x256xf32>
    %c0_4 = arith.constant 0 : index
    %c0_5 = arith.constant 0 : index
    %5 = vector.load %arg4[%c0_4, %c0_5] : memref<1x256xf32, #tpu.memory_space<vmem>>, vector<1x256xf32>
    %6 = vector.broadcast %5 : vector<1x256xf32> to vector<8x256xf32>
    %7 = arith.addf %4, %6 : vector<8x256xf32>
    %8 = arith.truncf %7 : vector<8x256xf32> to vector<8x256xbf16>
    %c0_6 = arith.constant 0 : index
    %c0_7 = arith.constant 0 : index
    %c0_8 = arith.constant 0 : index
    %9 = vector.load %arg5[%c0_6, %c0_7, %c0_8] : memref<1x8x256xbf16, #tpu.memory_space<vmem>>, vector<1x8x256xbf16>
    %10 = vector.shape_cast %9 : vector<1x8x256xbf16> to vector<8x256xbf16>
    %11 = vector.shape_cast %8 : vector<8x256xbf16> to vector<1x8x256xbf16>
    tpu.vector_store %arg5[%c0_6, %c0_7, %c0_8], %11 {strides = array<i32>} : memref<1x8x256xbf16, #tpu.memory_space<vmem>>, vector<1x8x256xbf16>,
    return
  }
  func.func @transform_0(%arg0: i32, %arg1: i32) -> (i32, i32, i32) {
    %c0_i32 = arith.constant 0 : i32
    %c0_i32_0 = arith.constant 0 : i32
    return %arg0, %arg1, %c0_i32 : i32, i32, i32
  }
  func.func @transform_1(%arg0: i32, %arg1: i32) -> (i32, i32) {
    %c0_i32 = arith.constant 0 : i32
    %c0_i32_0 = arith.constant 0 : i32
    %c0_i32_1 = arith.constant 0 : i32
    return %c0_i32, %c0_i32_0 : i32, i32
  }
  func.func @transform_2(%arg0: i32, %arg1: i32) -> (i32, i32) {
    %c0_i32 = arith.constant 0 : i32
    %c0_i32_0 = arith.constant 0 : i32
    %c0_i32_1 = arith.constant 0 : i32
    return %c0_i32, %c0_i32_0 : i32, i32
  }
  func.func @transform_3(%arg0: i32, %arg1: i32) -> (i32, i32, i32) {
    %c0_i32 = arith.constant 0 : i32
    %c0_i32_0 = arith.constant 0 : i32
    return %arg0, %arg1, %c0_i32 : i32, i32, i32
  }
}

module attributes {stable_mosaic.version = 11 : i64} {
  func.func @lstm_cell_kernel(%arg0: i32, %arg1: memref<2x1xi32, #tpu.memory_space<vmem>>, %arg2: memref<2x8x128xbf16, #tpu.memory_space<vmem>>, %arg3: memref<2x8x128xbf16, #tpu.memory_space<vmem>>, %arg4: memref<2x32x128xbf16, #tpu.memory_space<vmem>>, %arg5: memref<2x8x32xbf16, #tpu.memory_space<vmem>>, %arg6: memref<2x8x32xbf16, #tpu.memory_space<vmem>>, %arg7: memref<2x2x32xf32, #tpu.memory_space<vmem>>, %arg8: memref<2x2x32xf32, #tpu.memory_space<vmem>>) attributes {dimension_semantics = [#tpu.dimension_semantics<arbitrary>], iteration_bounds = array<i64: 1>, scalar_prefetch = 0 : i64, scratch_operands = 2 : i64, tpu.core_type = #tpu.core_type<tc>, window_params = [{pipeline_mode = #tpu.pipeline_mode<synchronous>, transform_indices = @transform_0, window_bounds = array<i64: 2, 1>}, {transform_indices = @transform_1, window_bounds = array<i64: 2, 8, 128>}, {transform_indices = @transform_2, window_bounds = array<i64: 2, 8, 128>}, {pipeline_mode = #tpu.pipeline_mode<synchronous>, transform_indices = @transform_3, window_bounds = array<i64: 2, 32, 128>}, {transform_indices = @transform_4, window_bounds = array<i64: 2, 8, 32>}, {transform_indices = @transform_5, window_bounds = array<i64: 2, 8, 32>}]} {
    %c0_i32 = arith.constant 0 : i32
    %0 = arith.cmpi eq, %arg0, %c0_i32 : i32
    %1 = arith.extui %0 : i1 to i32
    %c0_i32_0 = arith.constant 0 : i32
    %2 = arith.cmpi ne, %1, %c0_i32_0 : i32
    scf.if %2 {
      %cst_211 = arith.constant 0.000000e+00 : f32
      %799 = vector.broadcast %cst_211 : f32 to vector<2x2x32xf32>
      %c0_212 = arith.constant 0 : index
      %c0_213 = arith.constant 0 : index
      %c0_214 = arith.constant 0 : index
      %800 = vector.load %arg7[%c0_212, %c0_213, %c0_214] : memref<2x2x32xf32, #tpu.memory_space<vmem>>, vector<2x2x32xf32>
      tpu.vector_store %arg7[%c0_212, %c0_213, %c0_214], %799 {strides = array<i32>} : memref<2x2x32xf32, #tpu.memory_space<vmem>>, vector<2x2x32xf32>,
      %cst_215 = arith.constant 0.000000e+00 : f32
      %801 = vector.broadcast %cst_215 : f32 to vector<2x2x32xf32>
      %c0_216 = arith.constant 0 : index
      %c0_217 = arith.constant 0 : index
      %c0_218 = arith.constant 0 : index
      %802 = vector.load %arg8[%c0_216, %c0_217, %c0_218] : memref<2x2x32xf32, #tpu.memory_space<vmem>>, vector<2x2x32xf32>
      tpu.vector_store %arg8[%c0_216, %c0_217, %c0_218], %801 {strides = array<i32>} : memref<2x2x32xf32, #tpu.memory_space<vmem>>, vector<2x2x32xf32>,
    } else {
    }
    %c0 = arith.constant 0 : index
    %c0_1 = arith.constant 0 : index
    %3 = vector.load %arg1[%c0, %c0_1] : memref<2x1xi32, #tpu.memory_space<vmem>>, vector<2x1xi32>
    %c8_i32 = arith.constant 8 : i32
    %4 = arith.muli %arg0, %c8_i32 : i32
    %c0_i32_2 = arith.constant 0 : i32
    %5 = arith.subi %c0_i32_2, %arg0 : i32
    %c8_i32_3 = arith.constant 8 : i32
    %6 = arith.muli %5, %c8_i32_3 : i32
    %c0_4 = arith.constant 0 : index
    %c0_5 = arith.constant 0 : index
    %c0_6 = arith.constant 0 : index
    %7 = vector.load %arg4[%c0_4, %c0_5, %c0_6] : memref<2x32x128xbf16, #tpu.memory_space<vmem>>, vector<1x32x128xbf16>
    %8 = vector.shape_cast %7 : vector<1x32x128xbf16> to vector<32x128xbf16>
    %c1 = arith.constant 1 : index
    %c0_7 = arith.constant 0 : index
    %c0_8 = arith.constant 0 : index
    %9 = vector.load %arg4[%c1, %c0_7, %c0_8] : memref<2x32x128xbf16, #tpu.memory_space<vmem>>, vector<1x32x128xbf16>
    %10 = vector.shape_cast %9 : vector<1x32x128xbf16> to vector<32x128xbf16>
    %c0_9 = arith.constant 0 : index
    %c0_10 = arith.constant 0 : index
    %c0_11 = arith.constant 0 : index
    %11 = vector.load %arg7[%c0_9, %c0_10, %c0_11] : memref<2x2x32xf32, #tpu.memory_space<vmem>>, vector<1x2x32xf32>
    %12 = vector.shape_cast %11 : vector<1x2x32xf32> to vector<2x32xf32>
    %c0_12 = arith.constant 0 : index
    %c0_13 = arith.constant 0 : index
    %c0_14 = arith.constant 0 : index
    %13 = vector.load %arg8[%c0_12, %c0_13, %c0_14] : memref<2x2x32xf32, #tpu.memory_space<vmem>>, vector<1x2x32xf32>
    %14 = vector.shape_cast %13 : vector<1x2x32xf32> to vector<2x32xf32>
    %c1_15 = arith.constant 1 : index
    %c0_16 = arith.constant 0 : index
    %c0_17 = arith.constant 0 : index
    %15 = vector.load %arg7[%c1_15, %c0_16, %c0_17] : memref<2x2x32xf32, #tpu.memory_space<vmem>>, vector<1x2x32xf32>
    %16 = vector.shape_cast %15 : vector<1x2x32xf32> to vector<2x32xf32>
    %c1_18 = arith.constant 1 : index
    %c0_19 = arith.constant 0 : index
    %c0_20 = arith.constant 0 : index
    %17 = vector.load %arg8[%c1_18, %c0_19, %c0_20] : memref<2x2x32xf32, #tpu.memory_space<vmem>>, vector<1x2x32xf32>
    %18 = vector.shape_cast %17 : vector<1x2x32xf32> to vector<2x32xf32>
    %c0_21 = arith.constant 0 : index
    %c0_22 = arith.constant 0 : index
    %c0_23 = arith.constant 0 : index
    %19 = vector.load %arg2[%c0_21, %c0_22, %c0_23] : memref<2x8x128xbf16, #tpu.memory_space<vmem>>, vector<2x1x128xbf16>
    %20 = vector.shape_cast %19 : vector<2x1x128xbf16> to vector<2x128xbf16>
    %21 = arith.extf %20 : vector<2x128xbf16> to vector<2x128xf32>
    %22 = arith.truncf %12 : vector<2x32xf32> to vector<2x32xbf16>
    %cst = arith.constant dense<0.000000e+00> : vector<2x128xf32>
    %23 = tpu.matmul %22, %8, %cst {dimension_numbers = #tpu.dot_dimension_numbers<[1], [0], [0], [1], [0, 0, 1, 1], [], []>} : vector<2x32xbf16>, vector<32x128xbf16>, vector<2x128xf32> -> vector<2x128xf32>
    %24 = arith.addf %21, %23 : vector<2x128xf32>
    %c0_24 = arith.constant 0 : index
    %c7 = arith.constant 7 : index
    %c0_25 = arith.constant 0 : index
    %25 = vector.load %arg3[%c0_24, %c7, %c0_25] : memref<2x8x128xbf16, #tpu.memory_space<vmem>>, vector<2x1x128xbf16>
    %26 = vector.shape_cast %25 : vector<2x1x128xbf16> to vector<2x128xbf16>
    %27 = arith.extf %26 : vector<2x128xbf16> to vector<2x128xf32>
    %28 = arith.truncf %16 : vector<2x32xf32> to vector<2x32xbf16>
    %cst_26 = arith.constant dense<0.000000e+00> : vector<2x128xf32>
    %29 = tpu.matmul %28, %10, %cst_26 {dimension_numbers = #tpu.dot_dimension_numbers<[1], [0], [0], [1], [0, 0, 1, 1], [], []>} : vector<2x32xbf16>, vector<32x128xbf16>, vector<2x128xf32> -> vector<2x128xf32>
    %30 = arith.addf %27, %29 : vector<2x128xf32>
    %31 = vector.extract_strided_slice %24 {offsets = [0, 0], sizes = [2, 32], strides = [1, 1]} : vector<2x128xf32> to vector<2x32xf32>
    %32 = arith.negf %31 : vector<2x32xf32>
    %33 = math.exp %32 : vector<2x32xf32>
    %cst_27 = arith.constant 1.000000e+00 : f32
    %34 = vector.broadcast %cst_27 : f32 to vector<2x32xf32>
    %35 = arith.addf %34, %33 : vector<2x32xf32>
    %36 = arith.divf %34, %35 : vector<2x32xf32>
    %37 = vector.extract_strided_slice %24 {offsets = [0, 32], sizes = [2, 32], strides = [1, 1]} : vector<2x128xf32> to vector<2x32xf32>
    %38 = arith.negf %37 : vector<2x32xf32>
    %39 = math.exp %38 : vector<2x32xf32>
    %cst_28 = arith.constant 1.000000e+00 : f32
    %40 = vector.broadcast %cst_28 : f32 to vector<2x32xf32>
    %41 = arith.addf %40, %39 : vector<2x32xf32>
    %42 = arith.divf %40, %41 : vector<2x32xf32>
    %43 = vector.extract_strided_slice %24 {offsets = [0, 64], sizes = [2, 32], strides = [1, 1]} : vector<2x128xf32> to vector<2x32xf32>
    %44 = math.tanh %43 : vector<2x32xf32>
    %45 = vector.extract_strided_slice %24 {offsets = [0, 96], sizes = [2, 32], strides = [1, 1]} : vector<2x128xf32> to vector<2x32xf32>
    %46 = arith.negf %45 : vector<2x32xf32>
    %47 = math.exp %46 : vector<2x32xf32>
    %cst_29 = arith.constant 1.000000e+00 : f32
    %48 = vector.broadcast %cst_29 : f32 to vector<2x32xf32>
    %49 = arith.addf %48, %47 : vector<2x32xf32>
    %50 = arith.divf %48, %49 : vector<2x32xf32>
    %51 = arith.mulf %42, %14 : vector<2x32xf32>
    %52 = arith.mulf %36, %44 : vector<2x32xf32>
    %53 = arith.addf %51, %52 : vector<2x32xf32>
    %54 = math.tanh %53 : vector<2x32xf32>
    %55 = arith.mulf %50, %54 : vector<2x32xf32>
    %56 = vector.extract_strided_slice %30 {offsets = [0, 0], sizes = [2, 32], strides = [1, 1]} : vector<2x128xf32> to vector<2x32xf32>
    %57 = arith.negf %56 : vector<2x32xf32>
    %58 = math.exp %57 : vector<2x32xf32>
    %cst_30 = arith.constant 1.000000e+00 : f32
    %59 = vector.broadcast %cst_30 : f32 to vector<2x32xf32>
    %60 = arith.addf %59, %58 : vector<2x32xf32>
    %61 = arith.divf %59, %60 : vector<2x32xf32>
    %62 = vector.extract_strided_slice %30 {offsets = [0, 32], sizes = [2, 32], strides = [1, 1]} : vector<2x128xf32> to vector<2x32xf32>
    %63 = arith.negf %62 : vector<2x32xf32>
    %64 = math.exp %63 : vector<2x32xf32>
    %cst_31 = arith.constant 1.000000e+00 : f32
    %65 = vector.broadcast %cst_31 : f32 to vector<2x32xf32>
    %66 = arith.addf %65, %64 : vector<2x32xf32>
    %67 = arith.divf %65, %66 : vector<2x32xf32>
    %68 = vector.extract_strided_slice %30 {offsets = [0, 64], sizes = [2, 32], strides = [1, 1]} : vector<2x128xf32> to vector<2x32xf32>
    %69 = math.tanh %68 : vector<2x32xf32>
    %70 = vector.extract_strided_slice %30 {offsets = [0, 96], sizes = [2, 32], strides = [1, 1]} : vector<2x128xf32> to vector<2x32xf32>
    %71 = arith.negf %70 : vector<2x32xf32>
    %72 = math.exp %71 : vector<2x32xf32>
    %cst_32 = arith.constant 1.000000e+00 : f32
    %73 = vector.broadcast %cst_32 : f32 to vector<2x32xf32>
    %74 = arith.addf %73, %72 : vector<2x32xf32>
    %75 = arith.divf %73, %74 : vector<2x32xf32>
    %76 = arith.mulf %67, %18 : vector<2x32xf32>
    %77 = arith.mulf %61, %69 : vector<2x32xf32>
    %78 = arith.addf %76, %77 : vector<2x32xf32>
    %79 = math.tanh %78 : vector<2x32xf32>
    %80 = arith.mulf %75, %79 : vector<2x32xf32>
    %c0_i32_33 = arith.constant 0 : i32
    %81 = arith.addi %4, %c0_i32_33 : i32
    %82 = vector.broadcast %81 : i32 to vector<2x1xi32>
    %83 = arith.cmpi slt, %82, %3 : vector<2x1xi32>
    %c7_i32 = arith.constant 7 : i32
    %84 = arith.addi %6, %c7_i32 : i32
    %85 = vector.broadcast %84 : i32 to vector<2x1xi32>
    %86 = arith.cmpi slt, %85, %3 : vector<2x1xi32>
    %87 = vector.shape_cast %83 : vector<2x1xi1> to vector<2x1xi1>
    %88 = vector.broadcast %87 : vector<2x1xi1> to vector<2x32xi1>
    %89 = arith.select %88, %55, %12 : vector<2x32xi1>, vector<2x32xf32>
    %90 = vector.shape_cast %83 : vector<2x1xi1> to vector<2x1xi1>
    %91 = vector.broadcast %90 : vector<2x1xi1> to vector<2x32xi1>
    %92 = arith.select %91, %53, %14 : vector<2x32xi1>, vector<2x32xf32>
    %93 = vector.shape_cast %86 : vector<2x1xi1> to vector<2x1xi1>
    %94 = vector.broadcast %93 : vector<2x1xi1> to vector<2x32xi1>
    %95 = arith.select %94, %80, %16 : vector<2x32xi1>, vector<2x32xf32>
    %96 = vector.shape_cast %86 : vector<2x1xi1> to vector<2x1xi1>
    %97 = vector.broadcast %96 : vector<2x1xi1> to vector<2x32xi1>
    %98 = arith.select %97, %78, %18 : vector<2x32xi1>, vector<2x32xf32>
    %cst_34 = arith.constant 0.000000e+00 : f32
    %99 = vector.shape_cast %83 : vector<2x1xi1> to vector<2x1xi1>
    %100 = vector.broadcast %99 : vector<2x1xi1> to vector<2x32xi1>
    %101 = vector.broadcast %cst_34 : f32 to vector<2x32xf32>
    %102 = arith.select %100, %55, %101 : vector<2x32xi1>, vector<2x32xf32>
    %103 = arith.truncf %102 : vector<2x32xf32> to vector<2x32xbf16>
    %c0_35 = arith.constant 0 : index
    %c0_36 = arith.constant 0 : index
    %c0_37 = arith.constant 0 : index
    %104 = vector.load %arg5[%c0_35, %c0_36, %c0_37] : memref<2x8x32xbf16, #tpu.memory_space<vmem>>, vector<2x1x32xbf16>
    %105 = vector.shape_cast %104 : vector<2x1x32xbf16> to vector<2x32xbf16>
    %106 = vector.shape_cast %103 : vector<2x32xbf16> to vector<2x1x32xbf16>
    tpu.vector_store %arg5[%c0_35, %c0_36, %c0_37], %106 {strides = array<i32>} : memref<2x8x32xbf16, #tpu.memory_space<vmem>>, vector<2x1x32xbf16>,
    %cst_38 = arith.constant 0.000000e+00 : f32
    %107 = vector.shape_cast %86 : vector<2x1xi1> to vector<2x1xi1>
    %108 = vector.broadcast %107 : vector<2x1xi1> to vector<2x32xi1>
    %109 = vector.broadcast %cst_38 : f32 to vector<2x32xf32>
    %110 = arith.select %108, %80, %109 : vector<2x32xi1>, vector<2x32xf32>
    %111 = arith.truncf %110 : vector<2x32xf32> to vector<2x32xbf16>
    %c0_39 = arith.constant 0 : index
    %c7_40 = arith.constant 7 : index
    %c0_41 = arith.constant 0 : index
    %112 = vector.load %arg6[%c0_39, %c7_40, %c0_41] : memref<2x8x32xbf16, #tpu.memory_space<vmem>>, vector<2x1x32xbf16>
    %113 = vector.shape_cast %112 : vector<2x1x32xbf16> to vector<2x32xbf16>
    %114 = vector.shape_cast %111 : vector<2x32xbf16> to vector<2x1x32xbf16>
    tpu.vector_store %arg6[%c0_39, %c7_40, %c0_41], %114 {strides = array<i32>} : memref<2x8x32xbf16, #tpu.memory_space<vmem>>, vector<2x1x32xbf16>,
    %c0_42 = arith.constant 0 : index
    %c1_43 = arith.constant 1 : index
    %c0_44 = arith.constant 0 : index
    %115 = vector.load %arg2[%c0_42, %c1_43, %c0_44] : memref<2x8x128xbf16, #tpu.memory_space<vmem>>, vector<2x1x128xbf16>
    %116 = vector.shape_cast %115 : vector<2x1x128xbf16> to vector<2x128xbf16>
    %117 = arith.extf %116 : vector<2x128xbf16> to vector<2x128xf32>
    %118 = arith.truncf %89 : vector<2x32xf32> to vector<2x32xbf16>
    %cst_45 = arith.constant dense<0.000000e+00> : vector<2x128xf32>
    %119 = tpu.matmul %118, %8, %cst_45 {dimension_numbers = #tpu.dot_dimension_numbers<[1], [0], [0], [1], [0, 0, 1, 1], [], []>} : vector<2x32xbf16>, vector<32x128xbf16>, vector<2x128xf32> -> vector<2x128xf32>
    %120 = arith.addf %117, %119 : vector<2x128xf32>
    %c0_46 = arith.constant 0 : index
    %c6 = arith.constant 6 : index
    %c0_47 = arith.constant 0 : index
    %121 = vector.load %arg3[%c0_46, %c6, %c0_47] : memref<2x8x128xbf16, #tpu.memory_space<vmem>>, vector<2x1x128xbf16>
    %122 = vector.shape_cast %121 : vector<2x1x128xbf16> to vector<2x128xbf16>
    %123 = arith.extf %122 : vector<2x128xbf16> to vector<2x128xf32>
    %124 = arith.truncf %95 : vector<2x32xf32> to vector<2x32xbf16>
    %cst_48 = arith.constant dense<0.000000e+00> : vector<2x128xf32>
    %125 = tpu.matmul %124, %10, %cst_48 {dimension_numbers = #tpu.dot_dimension_numbers<[1], [0], [0], [1], [0, 0, 1, 1], [], []>} : vector<2x32xbf16>, vector<32x128xbf16>, vector<2x128xf32> -> vector<2x128xf32>
    %126 = arith.addf %123, %125 : vector<2x128xf32>
    %127 = vector.extract_strided_slice %120 {offsets = [0, 0], sizes = [2, 32], strides = [1, 1]} : vector<2x128xf32> to vector<2x32xf32>
    %128 = arith.negf %127 : vector<2x32xf32>
    %129 = math.exp %128 : vector<2x32xf32>
    %cst_49 = arith.constant 1.000000e+00 : f32
    %130 = vector.broadcast %cst_49 : f32 to vector<2x32xf32>
    %131 = arith.addf %130, %129 : vector<2x32xf32>
    %132 = arith.divf %130, %131 : vector<2x32xf32>
    %133 = vector.extract_strided_slice %120 {offsets = [0, 32], sizes = [2, 32], strides = [1, 1]} : vector<2x128xf32> to vector<2x32xf32>
    %134 = arith.negf %133 : vector<2x32xf32>
    %135 = math.exp %134 : vector<2x32xf32>
    %cst_50 = arith.constant 1.000000e+00 : f32
    %136 = vector.broadcast %cst_50 : f32 to vector<2x32xf32>
    %137 = arith.addf %136, %135 : vector<2x32xf32>
    %138 = arith.divf %136, %137 : vector<2x32xf32>
    %139 = vector.extract_strided_slice %120 {offsets = [0, 64], sizes = [2, 32], strides = [1, 1]} : vector<2x128xf32> to vector<2x32xf32>
    %140 = math.tanh %139 : vector<2x32xf32>
    %141 = vector.extract_strided_slice %120 {offsets = [0, 96], sizes = [2, 32], strides = [1, 1]} : vector<2x128xf32> to vector<2x32xf32>
    %142 = arith.negf %141 : vector<2x32xf32>
    %143 = math.exp %142 : vector<2x32xf32>
    %cst_51 = arith.constant 1.000000e+00 : f32
    %144 = vector.broadcast %cst_51 : f32 to vector<2x32xf32>
    %145 = arith.addf %144, %143 : vector<2x32xf32>
    %146 = arith.divf %144, %145 : vector<2x32xf32>
    %147 = arith.mulf %138, %92 : vector<2x32xf32>
    %148 = arith.mulf %132, %140 : vector<2x32xf32>
    %149 = arith.addf %147, %148 : vector<2x32xf32>
    %150 = math.tanh %149 : vector<2x32xf32>
    %151 = arith.mulf %146, %150 : vector<2x32xf32>
    %152 = vector.extract_strided_slice %126 {offsets = [0, 0], sizes = [2, 32], strides = [1, 1]} : vector<2x128xf32> to vector<2x32xf32>
    %153 = arith.negf %152 : vector<2x32xf32>
    %154 = math.exp %153 : vector<2x32xf32>
    %cst_52 = arith.constant 1.000000e+00 : f32
    %155 = vector.broadcast %cst_52 : f32 to vector<2x32xf32>
    %156 = arith.addf %155, %154 : vector<2x32xf32>
    %157 = arith.divf %155, %156 : vector<2x32xf32>
    %158 = vector.extract_strided_slice %126 {offsets = [0, 32], sizes = [2, 32], strides = [1, 1]} : vector<2x128xf32> to vector<2x32xf32>
    %159 = arith.negf %158 : vector<2x32xf32>
    %160 = math.exp %159 : vector<2x32xf32>
    %cst_53 = arith.constant 1.000000e+00 : f32
    %161 = vector.broadcast %cst_53 : f32 to vector<2x32xf32>
    %162 = arith.addf %161, %160 : vector<2x32xf32>
    %163 = arith.divf %161, %162 : vector<2x32xf32>
    %164 = vector.extract_strided_slice %126 {offsets = [0, 64], sizes = [2, 32], strides = [1, 1]} : vector<2x128xf32> to vector<2x32xf32>
    %165 = math.tanh %164 : vector<2x32xf32>
    %166 = vector.extract_strided_slice %126 {offsets = [0, 96], sizes = [2, 32], strides = [1, 1]} : vector<2x128xf32> to vector<2x32xf32>
    %167 = arith.negf %166 : vector<2x32xf32>
    %168 = math.exp %167 : vector<2x32xf32>
    %cst_54 = arith.constant 1.000000e+00 : f32
    %169 = vector.broadcast %cst_54 : f32 to vector<2x32xf32>
    %170 = arith.addf %169, %168 : vector<2x32xf32>
    %171 = arith.divf %169, %170 : vector<2x32xf32>
    %172 = arith.mulf %163, %98 : vector<2x32xf32>
    %173 = arith.mulf %157, %165 : vector<2x32xf32>
    %174 = arith.addf %172, %173 : vector<2x32xf32>
    %175 = math.tanh %174 : vector<2x32xf32>
    %176 = arith.mulf %171, %175 : vector<2x32xf32>
    %c1_i32 = arith.constant 1 : i32
    %177 = arith.addi %4, %c1_i32 : i32
    %178 = vector.broadcast %177 : i32 to vector<2x1xi32>
    %179 = arith.cmpi slt, %178, %3 : vector<2x1xi32>
    %c6_i32 = arith.constant 6 : i32
    %180 = arith.addi %6, %c6_i32 : i32
    %181 = vector.broadcast %180 : i32 to vector<2x1xi32>
    %182 = arith.cmpi slt, %181, %3 : vector<2x1xi32>
    %183 = vector.shape_cast %179 : vector<2x1xi1> to vector<2x1xi1>
    %184 = vector.broadcast %183 : vector<2x1xi1> to vector<2x32xi1>
    %185 = arith.select %184, %151, %89 : vector<2x32xi1>, vector<2x32xf32>
    %186 = vector.shape_cast %179 : vector<2x1xi1> to vector<2x1xi1>
    %187 = vector.broadcast %186 : vector<2x1xi1> to vector<2x32xi1>
    %188 = arith.select %187, %149, %92 : vector<2x32xi1>, vector<2x32xf32>
    %189 = vector.shape_cast %182 : vector<2x1xi1> to vector<2x1xi1>
    %190 = vector.broadcast %189 : vector<2x1xi1> to vector<2x32xi1>
    %191 = arith.select %190, %176, %95 : vector<2x32xi1>, vector<2x32xf32>
    %192 = vector.shape_cast %182 : vector<2x1xi1> to vector<2x1xi1>
    %193 = vector.broadcast %192 : vector<2x1xi1> to vector<2x32xi1>
    %194 = arith.select %193, %174, %98 : vector<2x32xi1>, vector<2x32xf32>
    %cst_55 = arith.constant 0.000000e+00 : f32
    %195 = vector.shape_cast %179 : vector<2x1xi1> to vector<2x1xi1>
    %196 = vector.broadcast %195 : vector<2x1xi1> to vector<2x32xi1>
    %197 = vector.broadcast %cst_55 : f32 to vector<2x32xf32>
    %198 = arith.select %196, %151, %197 : vector<2x32xi1>, vector<2x32xf32>
    %199 = arith.truncf %198 : vector<2x32xf32> to vector<2x32xbf16>
    %c0_56 = arith.constant 0 : index
    %c1_57 = arith.constant 1 : index
    %c0_58 = arith.constant 0 : index
    %200 = vector.load %arg5[%c0_56, %c1_57, %c0_58] : memref<2x8x32xbf16, #tpu.memory_space<vmem>>, vector<2x1x32xbf16>
    %201 = vector.shape_cast %200 : vector<2x1x32xbf16> to vector<2x32xbf16>
    %202 = vector.shape_cast %199 : vector<2x32xbf16> to vector<2x1x32xbf16>
    tpu.vector_store %arg5[%c0_56, %c1_57, %c0_58], %202 {strides = array<i32>} : memref<2x8x32xbf16, #tpu.memory_space<vmem>>, vector<2x1x32xbf16>,
    %cst_59 = arith.constant 0.000000e+00 : f32
    %203 = vector.shape_cast %182 : vector<2x1xi1> to vector<2x1xi1>
    %204 = vector.broadcast %203 : vector<2x1xi1> to vector<2x32xi1>
    %205 = vector.broadcast %cst_59 : f32 to vector<2x32xf32>
    %206 = arith.select %204, %176, %205 : vector<2x32xi1>, vector<2x32xf32>
    %207 = arith.truncf %206 : vector<2x32xf32> to vector<2x32xbf16>
    %c0_60 = arith.constant 0 : index
    %c6_61 = arith.constant 6 : index
    %c0_62 = arith.constant 0 : index
    %208 = vector.load %arg6[%c0_60, %c6_61, %c0_62] : memref<2x8x32xbf16, #tpu.memory_space<vmem>>, vector<2x1x32xbf16>
    %209 = vector.shape_cast %208 : vector<2x1x32xbf16> to vector<2x32xbf16>
    %210 = vector.shape_cast %207 : vector<2x32xbf16> to vector<2x1x32xbf16>
    tpu.vector_store %arg6[%c0_60, %c6_61, %c0_62], %210 {strides = array<i32>} : memref<2x8x32xbf16, #tpu.memory_space<vmem>>, vector<2x1x32xbf16>,
    %c0_63 = arith.constant 0 : index
    %c2 = arith.constant 2 : index
    %c0_64 = arith.constant 0 : index
    %211 = vector.load %arg2[%c0_63, %c2, %c0_64] : memref<2x8x128xbf16, #tpu.memory_space<vmem>>, vector<2x1x128xbf16>
    %212 = vector.shape_cast %211 : vector<2x1x128xbf16> to vector<2x128xbf16>
    %213 = arith.extf %212 : vector<2x128xbf16> to vector<2x128xf32>
    %214 = arith.truncf %185 : vector<2x32xf32> to vector<2x32xbf16>
    %cst_65 = arith.constant dense<0.000000e+00> : vector<2x128xf32>
    %215 = tpu.matmul %214, %8, %cst_65 {dimension_numbers = #tpu.dot_dimension_numbers<[1], [0], [0], [1], [0, 0, 1, 1], [], []>} : vector<2x32xbf16>, vector<32x128xbf16>, vector<2x128xf32> -> vector<2x128xf32>
    %216 = arith.addf %213, %215 : vector<2x128xf32>
    %c0_66 = arith.constant 0 : index
    %c5 = arith.constant 5 : index
    %c0_67 = arith.constant 0 : index
    %217 = vector.load %arg3[%c0_66, %c5, %c0_67] : memref<2x8x128xbf16, #tpu.memory_space<vmem>>, vector<2x1x128xbf16>
    %218 = vector.shape_cast %217 : vector<2x1x128xbf16> to vector<2x128xbf16>
    %219 = arith.extf %218 : vector<2x128xbf16> to vector<2x128xf32>
    %220 = arith.truncf %191 : vector<2x32xf32> to vector<2x32xbf16>
    %cst_68 = arith.constant dense<0.000000e+00> : vector<2x128xf32>
    %221 = tpu.matmul %220, %10, %cst_68 {dimension_numbers = #tpu.dot_dimension_numbers<[1], [0], [0], [1], [0, 0, 1, 1], [], []>} : vector<2x32xbf16>, vector<32x128xbf16>, vector<2x128xf32> -> vector<2x128xf32>
    %222 = arith.addf %219, %221 : vector<2x128xf32>
    %223 = vector.extract_strided_slice %216 {offsets = [0, 0], sizes = [2, 32], strides = [1, 1]} : vector<2x128xf32> to vector<2x32xf32>
    %224 = arith.negf %223 : vector<2x32xf32>
    %225 = math.exp %224 : vector<2x32xf32>
    %cst_69 = arith.constant 1.000000e+00 : f32
    %226 = vector.broadcast %cst_69 : f32 to vector<2x32xf32>
    %227 = arith.addf %226, %225 : vector<2x32xf32>
    %228 = arith.divf %226, %227 : vector<2x32xf32>
    %229 = vector.extract_strided_slice %216 {offsets = [0, 32], sizes = [2, 32], strides = [1, 1]} : vector<2x128xf32> to vector<2x32xf32>
    %230 = arith.negf %229 : vector<2x32xf32>
    %231 = math.exp %230 : vector<2x32xf32>
    %cst_70 = arith.constant 1.000000e+00 : f32
    %232 = vector.broadcast %cst_70 : f32 to vector<2x32xf32>
    %233 = arith.addf %232, %231 : vector<2x32xf32>
    %234 = arith.divf %232, %233 : vector<2x32xf32>
    %235 = vector.extract_strided_slice %216 {offsets = [0, 64], sizes = [2, 32], strides = [1, 1]} : vector<2x128xf32> to vector<2x32xf32>
    %236 = math.tanh %235 : vector<2x32xf32>
    %237 = vector.extract_strided_slice %216 {offsets = [0, 96], sizes = [2, 32], strides = [1, 1]} : vector<2x128xf32> to vector<2x32xf32>
    %238 = arith.negf %237 : vector<2x32xf32>
    %239 = math.exp %238 : vector<2x32xf32>
    %cst_71 = arith.constant 1.000000e+00 : f32
    %240 = vector.broadcast %cst_71 : f32 to vector<2x32xf32>
    %241 = arith.addf %240, %239 : vector<2x32xf32>
    %242 = arith.divf %240, %241 : vector<2x32xf32>
    %243 = arith.mulf %234, %188 : vector<2x32xf32>
    %244 = arith.mulf %228, %236 : vector<2x32xf32>
    %245 = arith.addf %243, %244 : vector<2x32xf32>
    %246 = math.tanh %245 : vector<2x32xf32>
    %247 = arith.mulf %242, %246 : vector<2x32xf32>
    %248 = vector.extract_strided_slice %222 {offsets = [0, 0], sizes = [2, 32], strides = [1, 1]} : vector<2x128xf32> to vector<2x32xf32>
    %249 = arith.negf %248 : vector<2x32xf32>
    %250 = math.exp %249 : vector<2x32xf32>
    %cst_72 = arith.constant 1.000000e+00 : f32
    %251 = vector.broadcast %cst_72 : f32 to vector<2x32xf32>
    %252 = arith.addf %251, %250 : vector<2x32xf32>
    %253 = arith.divf %251, %252 : vector<2x32xf32>
    %254 = vector.extract_strided_slice %222 {offsets = [0, 32], sizes = [2, 32], strides = [1, 1]} : vector<2x128xf32> to vector<2x32xf32>
    %255 = arith.negf %254 : vector<2x32xf32>
    %256 = math.exp %255 : vector<2x32xf32>
    %cst_73 = arith.constant 1.000000e+00 : f32
    %257 = vector.broadcast %cst_73 : f32 to vector<2x32xf32>
    %258 = arith.addf %257, %256 : vector<2x32xf32>
    %259 = arith.divf %257, %258 : vector<2x32xf32>
    %260 = vector.extract_strided_slice %222 {offsets = [0, 64], sizes = [2, 32], strides = [1, 1]} : vector<2x128xf32> to vector<2x32xf32>
    %261 = math.tanh %260 : vector<2x32xf32>
    %262 = vector.extract_strided_slice %222 {offsets = [0, 96], sizes = [2, 32], strides = [1, 1]} : vector<2x128xf32> to vector<2x32xf32>
    %263 = arith.negf %262 : vector<2x32xf32>
    %264 = math.exp %263 : vector<2x32xf32>
    %cst_74 = arith.constant 1.000000e+00 : f32
    %265 = vector.broadcast %cst_74 : f32 to vector<2x32xf32>
    %266 = arith.addf %265, %264 : vector<2x32xf32>
    %267 = arith.divf %265, %266 : vector<2x32xf32>
    %268 = arith.mulf %259, %194 : vector<2x32xf32>
    %269 = arith.mulf %253, %261 : vector<2x32xf32>
    %270 = arith.addf %268, %269 : vector<2x32xf32>
    %271 = math.tanh %270 : vector<2x32xf32>
    %272 = arith.mulf %267, %271 : vector<2x32xf32>
    %c2_i32 = arith.constant 2 : i32
    %273 = arith.addi %4, %c2_i32 : i32
    %274 = vector.broadcast %273 : i32 to vector<2x1xi32>
    %275 = arith.cmpi slt, %274, %3 : vector<2x1xi32>
    %c5_i32 = arith.constant 5 : i32
    %276 = arith.addi %6, %c5_i32 : i32
    %277 = vector.broadcast %276 : i32 to vector<2x1xi32>
    %278 = arith.cmpi slt, %277, %3 : vector<2x1xi32>
    %279 = vector.shape_cast %275 : vector<2x1xi1> to vector<2x1xi1>
    %280 = vector.broadcast %279 : vector<2x1xi1> to vector<2x32xi1>
    %281 = arith.select %280, %247, %185 : vector<2x32xi1>, vector<2x32xf32>
    %282 = vector.shape_cast %275 : vector<2x1xi1> to vector<2x1xi1>
    %283 = vector.broadcast %282 : vector<2x1xi1> to vector<2x32xi1>
    %284 = arith.select %283, %245, %188 : vector<2x32xi1>, vector<2x32xf32>
    %285 = vector.shape_cast %278 : vector<2x1xi1> to vector<2x1xi1>
    %286 = vector.broadcast %285 : vector<2x1xi1> to vector<2x32xi1>
    %287 = arith.select %286, %272, %191 : vector<2x32xi1>, vector<2x32xf32>
    %288 = vector.shape_cast %278 : vector<2x1xi1> to vector<2x1xi1>
    %289 = vector.broadcast %288 : vector<2x1xi1> to vector<2x32xi1>
    %290 = arith.select %289, %270, %194 : vector<2x32xi1>, vector<2x32xf32>
    %cst_75 = arith.constant 0.000000e+00 : f32
    %291 = vector.shape_cast %275 : vector<2x1xi1> to vector<2x1xi1>
    %292 = vector.broadcast %291 : vector<2x1xi1> to vector<2x32xi1>
    %293 = vector.broadcast %cst_75 : f32 to vector<2x32xf32>
    %294 = arith.select %292, %247, %293 : vector<2x32xi1>, vector<2x32xf32>
    %295 = arith.truncf %294 : vector<2x32xf32> to vector<2x32xbf16>
    %c0_76 = arith.constant 0 : index
    %c2_77 = arith.constant 2 : index
    %c0_78 = arith.constant 0 : index
    %296 = vector.load %arg5[%c0_76, %c2_77, %c0_78] : memref<2x8x32xbf16, #tpu.memory_space<vmem>>, vector<2x1x32xbf16>
    %297 = vector.shape_cast %296 : vector<2x1x32xbf16> to vector<2x32xbf16>
    %298 = vector.shape_cast %295 : vector<2x32xbf16> to vector<2x1x32xbf16>
    tpu.vector_store %arg5[%c0_76, %c2_77, %c0_78], %298 {strides = array<i32>} : memref<2x8x32xbf16, #tpu.memory_space<vmem>>, vector<2x1x32xbf16>,
    %cst_79 = arith.constant 0.000000e+00 : f32
    %299 = vector.shape_cast %278 : vector<2x1xi1> to vector<2x1xi1>
    %300 = vector.broadcast %299 : vector<2x1xi1> to vector<2x32xi1>
    %301 = vector.broadcast %cst_79 : f32 to vector<2x32xf32>
    %302 = arith.select %300, %272, %301 : vector<2x32xi1>, vector<2x32xf32>
    %303 = arith.truncf %302 : vector<2x32xf32> to vector<2x32xbf16>
    %c0_80 = arith.constant 0 : index
    %c5_81 = arith.constant 5 : index
    %c0_82 = arith.constant 0 : index
    %304 = vector.load %arg6[%c0_80, %c5_81, %c0_82] : memref<2x8x32xbf16, #tpu.memory_space<vmem>>, vector<2x1x32xbf16>
    %305 = vector.shape_cast %304 : vector<2x1x32xbf16> to vector<2x32xbf16>
    %306 = vector.shape_cast %303 : vector<2x32xbf16> to vector<2x1x32xbf16>
    tpu.vector_store %arg6[%c0_80, %c5_81, %c0_82], %306 {strides = array<i32>} : memref<2x8x32xbf16, #tpu.memory_space<vmem>>, vector<2x1x32xbf16>,
    %c0_83 = arith.constant 0 : index
    %c3 = arith.constant 3 : index
    %c0_84 = arith.constant 0 : index
    %307 = vector.load %arg2[%c0_83, %c3, %c0_84] : memref<2x8x128xbf16, #tpu.memory_space<vmem>>, vector<2x1x128xbf16>
    %308 = vector.shape_cast %307 : vector<2x1x128xbf16> to vector<2x128xbf16>
    %309 = arith.extf %308 : vector<2x128xbf16> to vector<2x128xf32>
    %310 = arith.truncf %281 : vector<2x32xf32> to vector<2x32xbf16>
    %cst_85 = arith.constant dense<0.000000e+00> : vector<2x128xf32>
    %311 = tpu.matmul %310, %8, %cst_85 {dimension_numbers = #tpu.dot_dimension_numbers<[1], [0], [0], [1], [0, 0, 1, 1], [], []>} : vector<2x32xbf16>, vector<32x128xbf16>, vector<2x128xf32> -> vector<2x128xf32>
    %312 = arith.addf %309, %311 : vector<2x128xf32>
    %c0_86 = arith.constant 0 : index
    %c4 = arith.constant 4 : index
    %c0_87 = arith.constant 0 : index
    %313 = vector.load %arg3[%c0_86, %c4, %c0_87] : memref<2x8x128xbf16, #tpu.memory_space<vmem>>, vector<2x1x128xbf16>
    %314 = vector.shape_cast %313 : vector<2x1x128xbf16> to vector<2x128xbf16>
    %315 = arith.extf %314 : vector<2x128xbf16> to vector<2x128xf32>
    %316 = arith.truncf %287 : vector<2x32xf32> to vector<2x32xbf16>
    %cst_88 = arith.constant dense<0.000000e+00> : vector<2x128xf32>
    %317 = tpu.matmul %316, %10, %cst_88 {dimension_numbers = #tpu.dot_dimension_numbers<[1], [0], [0], [1], [0, 0, 1, 1], [], []>} : vector<2x32xbf16>, vector<32x128xbf16>, vector<2x128xf32> -> vector<2x128xf32>
    %318 = arith.addf %315, %317 : vector<2x128xf32>
    %319 = vector.extract_strided_slice %312 {offsets = [0, 0], sizes = [2, 32], strides = [1, 1]} : vector<2x128xf32> to vector<2x32xf32>
    %320 = arith.negf %319 : vector<2x32xf32>
    %321 = math.exp %320 : vector<2x32xf32>
    %cst_89 = arith.constant 1.000000e+00 : f32
    %322 = vector.broadcast %cst_89 : f32 to vector<2x32xf32>
    %323 = arith.addf %322, %321 : vector<2x32xf32>
    %324 = arith.divf %322, %323 : vector<2x32xf32>
    %325 = vector.extract_strided_slice %312 {offsets = [0, 32], sizes = [2, 32], strides = [1, 1]} : vector<2x128xf32> to vector<2x32xf32>
    %326 = arith.negf %325 : vector<2x32xf32>
    %327 = math.exp %326 : vector<2x32xf32>
    %cst_90 = arith.constant 1.000000e+00 : f32
    %328 = vector.broadcast %cst_90 : f32 to vector<2x32xf32>
    %329 = arith.addf %328, %327 : vector<2x32xf32>
    %330 = arith.divf %328, %329 : vector<2x32xf32>
    %331 = vector.extract_strided_slice %312 {offsets = [0, 64], sizes = [2, 32], strides = [1, 1]} : vector<2x128xf32> to vector<2x32xf32>
    %332 = math.tanh %331 : vector<2x32xf32>
    %333 = vector.extract_strided_slice %312 {offsets = [0, 96], sizes = [2, 32], strides = [1, 1]} : vector<2x128xf32> to vector<2x32xf32>
    %334 = arith.negf %333 : vector<2x32xf32>
    %335 = math.exp %334 : vector<2x32xf32>
    %cst_91 = arith.constant 1.000000e+00 : f32
    %336 = vector.broadcast %cst_91 : f32 to vector<2x32xf32>
    %337 = arith.addf %336, %335 : vector<2x32xf32>
    %338 = arith.divf %336, %337 : vector<2x32xf32>
    %339 = arith.mulf %330, %284 : vector<2x32xf32>
    %340 = arith.mulf %324, %332 : vector<2x32xf32>
    %341 = arith.addf %339, %340 : vector<2x32xf32>
    %342 = math.tanh %341 : vector<2x32xf32>
    %343 = arith.mulf %338, %342 : vector<2x32xf32>
    %344 = vector.extract_strided_slice %318 {offsets = [0, 0], sizes = [2, 32], strides = [1, 1]} : vector<2x128xf32> to vector<2x32xf32>
    %345 = arith.negf %344 : vector<2x32xf32>
    %346 = math.exp %345 : vector<2x32xf32>
    %cst_92 = arith.constant 1.000000e+00 : f32
    %347 = vector.broadcast %cst_92 : f32 to vector<2x32xf32>
    %348 = arith.addf %347, %346 : vector<2x32xf32>
    %349 = arith.divf %347, %348 : vector<2x32xf32>
    %350 = vector.extract_strided_slice %318 {offsets = [0, 32], sizes = [2, 32], strides = [1, 1]} : vector<2x128xf32> to vector<2x32xf32>
    %351 = arith.negf %350 : vector<2x32xf32>
    %352 = math.exp %351 : vector<2x32xf32>
    %cst_93 = arith.constant 1.000000e+00 : f32
    %353 = vector.broadcast %cst_93 : f32 to vector<2x32xf32>
    %354 = arith.addf %353, %352 : vector<2x32xf32>
    %355 = arith.divf %353, %354 : vector<2x32xf32>
    %356 = vector.extract_strided_slice %318 {offsets = [0, 64], sizes = [2, 32], strides = [1, 1]} : vector<2x128xf32> to vector<2x32xf32>
    %357 = math.tanh %356 : vector<2x32xf32>
    %358 = vector.extract_strided_slice %318 {offsets = [0, 96], sizes = [2, 32], strides = [1, 1]} : vector<2x128xf32> to vector<2x32xf32>
    %359 = arith.negf %358 : vector<2x32xf32>
    %360 = math.exp %359 : vector<2x32xf32>
    %cst_94 = arith.constant 1.000000e+00 : f32
    %361 = vector.broadcast %cst_94 : f32 to vector<2x32xf32>
    %362 = arith.addf %361, %360 : vector<2x32xf32>
    %363 = arith.divf %361, %362 : vector<2x32xf32>
    %364 = arith.mulf %355, %290 : vector<2x32xf32>
    %365 = arith.mulf %349, %357 : vector<2x32xf32>
    %366 = arith.addf %364, %365 : vector<2x32xf32>
    %367 = math.tanh %366 : vector<2x32xf32>
    %368 = arith.mulf %363, %367 : vector<2x32xf32>
    %c3_i32 = arith.constant 3 : i32
    %369 = arith.addi %4, %c3_i32 : i32
    %370 = vector.broadcast %369 : i32 to vector<2x1xi32>
    %371 = arith.cmpi slt, %370, %3 : vector<2x1xi32>
    %c4_i32 = arith.constant 4 : i32
    %372 = arith.addi %6, %c4_i32 : i32
    %373 = vector.broadcast %372 : i32 to vector<2x1xi32>
    %374 = arith.cmpi slt, %373, %3 : vector<2x1xi32>
    %375 = vector.shape_cast %371 : vector<2x1xi1> to vector<2x1xi1>
    %376 = vector.broadcast %375 : vector<2x1xi1> to vector<2x32xi1>
    %377 = arith.select %376, %343, %281 : vector<2x32xi1>, vector<2x32xf32>
    %378 = vector.shape_cast %371 : vector<2x1xi1> to vector<2x1xi1>
    %379 = vector.broadcast %378 : vector<2x1xi1> to vector<2x32xi1>
    %380 = arith.select %379, %341, %284 : vector<2x32xi1>, vector<2x32xf32>
    %381 = vector.shape_cast %374 : vector<2x1xi1> to vector<2x1xi1>
    %382 = vector.broadcast %381 : vector<2x1xi1> to vector<2x32xi1>
    %383 = arith.select %382, %368, %287 : vector<2x32xi1>, vector<2x32xf32>
    %384 = vector.shape_cast %374 : vector<2x1xi1> to vector<2x1xi1>
    %385 = vector.broadcast %384 : vector<2x1xi1> to vector<2x32xi1>
    %386 = arith.select %385, %366, %290 : vector<2x32xi1>, vector<2x32xf32>
    %cst_95 = arith.constant 0.000000e+00 : f32
    %387 = vector.shape_cast %371 : vector<2x1xi1> to vector<2x1xi1>
    %388 = vector.broadcast %387 : vector<2x1xi1> to vector<2x32xi1>
    %389 = vector.broadcast %cst_95 : f32 to vector<2x32xf32>
    %390 = arith.select %388, %343, %389 : vector<2x32xi1>, vector<2x32xf32>
    %391 = arith.truncf %390 : vector<2x32xf32> to vector<2x32xbf16>
    %c0_96 = arith.constant 0 : index
    %c3_97 = arith.constant 3 : index
    %c0_98 = arith.constant 0 : index
    %392 = vector.load %arg5[%c0_96, %c3_97, %c0_98] : memref<2x8x32xbf16, #tpu.memory_space<vmem>>, vector<2x1x32xbf16>
    %393 = vector.shape_cast %392 : vector<2x1x32xbf16> to vector<2x32xbf16>
    %394 = vector.shape_cast %391 : vector<2x32xbf16> to vector<2x1x32xbf16>
    tpu.vector_store %arg5[%c0_96, %c3_97, %c0_98], %394 {strides = array<i32>} : memref<2x8x32xbf16, #tpu.memory_space<vmem>>, vector<2x1x32xbf16>,
    %cst_99 = arith.constant 0.000000e+00 : f32
    %395 = vector.shape_cast %374 : vector<2x1xi1> to vector<2x1xi1>
    %396 = vector.broadcast %395 : vector<2x1xi1> to vector<2x32xi1>
    %397 = vector.broadcast %cst_99 : f32 to vector<2x32xf32>
    %398 = arith.select %396, %368, %397 : vector<2x32xi1>, vector<2x32xf32>
    %399 = arith.truncf %398 : vector<2x32xf32> to vector<2x32xbf16>
    %c0_100 = arith.constant 0 : index
    %c4_101 = arith.constant 4 : index
    %c0_102 = arith.constant 0 : index
    %400 = vector.load %arg6[%c0_100, %c4_101, %c0_102] : memref<2x8x32xbf16, #tpu.memory_space<vmem>>, vector<2x1x32xbf16>
    %401 = vector.shape_cast %400 : vector<2x1x32xbf16> to vector<2x32xbf16>
    %402 = vector.shape_cast %399 : vector<2x32xbf16> to vector<2x1x32xbf16>
    tpu.vector_store %arg6[%c0_100, %c4_101, %c0_102], %402 {strides = array<i32>} : memref<2x8x32xbf16, #tpu.memory_space<vmem>>, vector<2x1x32xbf16>,
    %c0_103 = arith.constant 0 : index
    %c4_104 = arith.constant 4 : index
    %c0_105 = arith.constant 0 : index
    %403 = vector.load %arg2[%c0_103, %c4_104, %c0_105] : memref<2x8x128xbf16, #tpu.memory_space<vmem>>, vector<2x1x128xbf16>
    %404 = vector.shape_cast %403 : vector<2x1x128xbf16> to vector<2x128xbf16>
    %405 = arith.extf %404 : vector<2x128xbf16> to vector<2x128xf32>
    %406 = arith.truncf %377 : vector<2x32xf32> to vector<2x32xbf16>
    %cst_106 = arith.constant dense<0.000000e+00> : vector<2x128xf32>
    %407 = tpu.matmul %406, %8, %cst_106 {dimension_numbers = #tpu.dot_dimension_numbers<[1], [0], [0], [1], [0, 0, 1, 1], [], []>} : vector<2x32xbf16>, vector<32x128xbf16>, vector<2x128xf32> -> vector<2x128xf32>
    %408 = arith.addf %405, %407 : vector<2x128xf32>
    %c0_107 = arith.constant 0 : index
    %c3_108 = arith.constant 3 : index
    %c0_109 = arith.constant 0 : index
    %409 = vector.load %arg3[%c0_107, %c3_108, %c0_109] : memref<2x8x128xbf16, #tpu.memory_space<vmem>>, vector<2x1x128xbf16>
    %410 = vector.shape_cast %409 : vector<2x1x128xbf16> to vector<2x128xbf16>
    %411 = arith.extf %410 : vector<2x128xbf16> to vector<2x128xf32>
    %412 = arith.truncf %383 : vector<2x32xf32> to vector<2x32xbf16>
    %cst_110 = arith.constant dense<0.000000e+00> : vector<2x128xf32>
    %413 = tpu.matmul %412, %10, %cst_110 {dimension_numbers = #tpu.dot_dimension_numbers<[1], [0], [0], [1], [0, 0, 1, 1], [], []>} : vector<2x32xbf16>, vector<32x128xbf16>, vector<2x128xf32> -> vector<2x128xf32>
    %414 = arith.addf %411, %413 : vector<2x128xf32>
    %415 = vector.extract_strided_slice %408 {offsets = [0, 0], sizes = [2, 32], strides = [1, 1]} : vector<2x128xf32> to vector<2x32xf32>
    %416 = arith.negf %415 : vector<2x32xf32>
    %417 = math.exp %416 : vector<2x32xf32>
    %cst_111 = arith.constant 1.000000e+00 : f32
    %418 = vector.broadcast %cst_111 : f32 to vector<2x32xf32>
    %419 = arith.addf %418, %417 : vector<2x32xf32>
    %420 = arith.divf %418, %419 : vector<2x32xf32>
    %421 = vector.extract_strided_slice %408 {offsets = [0, 32], sizes = [2, 32], strides = [1, 1]} : vector<2x128xf32> to vector<2x32xf32>
    %422 = arith.negf %421 : vector<2x32xf32>
    %423 = math.exp %422 : vector<2x32xf32>
    %cst_112 = arith.constant 1.000000e+00 : f32
    %424 = vector.broadcast %cst_112 : f32 to vector<2x32xf32>
    %425 = arith.addf %424, %423 : vector<2x32xf32>
    %426 = arith.divf %424, %425 : vector<2x32xf32>
    %427 = vector.extract_strided_slice %408 {offsets = [0, 64], sizes = [2, 32], strides = [1, 1]} : vector<2x128xf32> to vector<2x32xf32>
    %428 = math.tanh %427 : vector<2x32xf32>
    %429 = vector.extract_strided_slice %408 {offsets = [0, 96], sizes = [2, 32], strides = [1, 1]} : vector<2x128xf32> to vector<2x32xf32>
    %430 = arith.negf %429 : vector<2x32xf32>
    %431 = math.exp %430 : vector<2x32xf32>
    %cst_113 = arith.constant 1.000000e+00 : f32
    %432 = vector.broadcast %cst_113 : f32 to vector<2x32xf32>
    %433 = arith.addf %432, %431 : vector<2x32xf32>
    %434 = arith.divf %432, %433 : vector<2x32xf32>
    %435 = arith.mulf %426, %380 : vector<2x32xf32>
    %436 = arith.mulf %420, %428 : vector<2x32xf32>
    %437 = arith.addf %435, %436 : vector<2x32xf32>
    %438 = math.tanh %437 : vector<2x32xf32>
    %439 = arith.mulf %434, %438 : vector<2x32xf32>
    %440 = vector.extract_strided_slice %414 {offsets = [0, 0], sizes = [2, 32], strides = [1, 1]} : vector<2x128xf32> to vector<2x32xf32>
    %441 = arith.negf %440 : vector<2x32xf32>
    %442 = math.exp %441 : vector<2x32xf32>
    %cst_114 = arith.constant 1.000000e+00 : f32
    %443 = vector.broadcast %cst_114 : f32 to vector<2x32xf32>
    %444 = arith.addf %443, %442 : vector<2x32xf32>
    %445 = arith.divf %443, %444 : vector<2x32xf32>
    %446 = vector.extract_strided_slice %414 {offsets = [0, 32], sizes = [2, 32], strides = [1, 1]} : vector<2x128xf32> to vector<2x32xf32>
    %447 = arith.negf %446 : vector<2x32xf32>
    %448 = math.exp %447 : vector<2x32xf32>
    %cst_115 = arith.constant 1.000000e+00 : f32
    %449 = vector.broadcast %cst_115 : f32 to vector<2x32xf32>
    %450 = arith.addf %449, %448 : vector<2x32xf32>
    %451 = arith.divf %449, %450 : vector<2x32xf32>
    %452 = vector.extract_strided_slice %414 {offsets = [0, 64], sizes = [2, 32], strides = [1, 1]} : vector<2x128xf32> to vector<2x32xf32>
    %453 = math.tanh %452 : vector<2x32xf32>
    %454 = vector.extract_strided_slice %414 {offsets = [0, 96], sizes = [2, 32], strides = [1, 1]} : vector<2x128xf32> to vector<2x32xf32>
    %455 = arith.negf %454 : vector<2x32xf32>
    %456 = math.exp %455 : vector<2x32xf32>
    %cst_116 = arith.constant 1.000000e+00 : f32
    %457 = vector.broadcast %cst_116 : f32 to vector<2x32xf32>
    %458 = arith.addf %457, %456 : vector<2x32xf32>
    %459 = arith.divf %457, %458 : vector<2x32xf32>
    %460 = arith.mulf %451, %386 : vector<2x32xf32>
    %461 = arith.mulf %445, %453 : vector<2x32xf32>
    %462 = arith.addf %460, %461 : vector<2x32xf32>
    %463 = math.tanh %462 : vector<2x32xf32>
    %464 = arith.mulf %459, %463 : vector<2x32xf32>
    %c4_i32_117 = arith.constant 4 : i32
    %465 = arith.addi %4, %c4_i32_117 : i32
    %466 = vector.broadcast %465 : i32 to vector<2x1xi32>
    %467 = arith.cmpi slt, %466, %3 : vector<2x1xi32>
    %c3_i32_118 = arith.constant 3 : i32
    %468 = arith.addi %6, %c3_i32_118 : i32
    %469 = vector.broadcast %468 : i32 to vector<2x1xi32>
    %470 = arith.cmpi slt, %469, %3 : vector<2x1xi32>
    %471 = vector.shape_cast %467 : vector<2x1xi1> to vector<2x1xi1>
    %472 = vector.broadcast %471 : vector<2x1xi1> to vector<2x32xi1>
    %473 = arith.select %472, %439, %377 : vector<2x32xi1>, vector<2x32xf32>
    %474 = vector.shape_cast %467 : vector<2x1xi1> to vector<2x1xi1>
    %475 = vector.broadcast %474 : vector<2x1xi1> to vector<2x32xi1>
    %476 = arith.select %475, %437, %380 : vector<2x32xi1>, vector<2x32xf32>
    %477 = vector.shape_cast %470 : vector<2x1xi1> to vector<2x1xi1>
    %478 = vector.broadcast %477 : vector<2x1xi1> to vector<2x32xi1>
    %479 = arith.select %478, %464, %383 : vector<2x32xi1>, vector<2x32xf32>
    %480 = vector.shape_cast %470 : vector<2x1xi1> to vector<2x1xi1>
    %481 = vector.broadcast %480 : vector<2x1xi1> to vector<2x32xi1>
    %482 = arith.select %481, %462, %386 : vector<2x32xi1>, vector<2x32xf32>
    %cst_119 = arith.constant 0.000000e+00 : f32
    %483 = vector.shape_cast %467 : vector<2x1xi1> to vector<2x1xi1>
    %484 = vector.broadcast %483 : vector<2x1xi1> to vector<2x32xi1>
    %485 = vector.broadcast %cst_119 : f32 to vector<2x32xf32>
    %486 = arith.select %484, %439, %485 : vector<2x32xi1>, vector<2x32xf32>
    %487 = arith.truncf %486 : vector<2x32xf32> to vector<2x32xbf16>
    %c0_120 = arith.constant 0 : index
    %c4_121 = arith.constant 4 : index
    %c0_122 = arith.constant 0 : index
    %488 = vector.load %arg5[%c0_120, %c4_121, %c0_122] : memref<2x8x32xbf16, #tpu.memory_space<vmem>>, vector<2x1x32xbf16>
    %489 = vector.shape_cast %488 : vector<2x1x32xbf16> to vector<2x32xbf16>
    %490 = vector.shape_cast %487 : vector<2x32xbf16> to vector<2x1x32xbf16>
    tpu.vector_store %arg5[%c0_120, %c4_121, %c0_122], %490 {strides = array<i32>} : memref<2x8x32xbf16, #tpu.memory_space<vmem>>, vector<2x1x32xbf16>,
    %cst_123 = arith.constant 0.000000e+00 : f32
    %491 = vector.shape_cast %470 : vector<2x1xi1> to vector<2x1xi1>
    %492 = vector.broadcast %491 : vector<2x1xi1> to vector<2x32xi1>
    %493 = vector.broadcast %cst_123 : f32 to vector<2x32xf32>
    %494 = arith.select %492, %464, %493 : vector<2x32xi1>, vector<2x32xf32>
    %495 = arith.truncf %494 : vector<2x32xf32> to vector<2x32xbf16>
    %c0_124 = arith.constant 0 : index
    %c3_125 = arith.constant 3 : index
    %c0_126 = arith.constant 0 : index
    %496 = vector.load %arg6[%c0_124, %c3_125, %c0_126] : memref<2x8x32xbf16, #tpu.memory_space<vmem>>, vector<2x1x32xbf16>
    %497 = vector.shape_cast %496 : vector<2x1x32xbf16> to vector<2x32xbf16>
    %498 = vector.shape_cast %495 : vector<2x32xbf16> to vector<2x1x32xbf16>
    tpu.vector_store %arg6[%c0_124, %c3_125, %c0_126], %498 {strides = array<i32>} : memref<2x8x32xbf16, #tpu.memory_space<vmem>>, vector<2x1x32xbf16>,
    %c0_127 = arith.constant 0 : index
    %c5_128 = arith.constant 5 : index
    %c0_129 = arith.constant 0 : index
    %499 = vector.load %arg2[%c0_127, %c5_128, %c0_129] : memref<2x8x128xbf16, #tpu.memory_space<vmem>>, vector<2x1x128xbf16>
    %500 = vector.shape_cast %499 : vector<2x1x128xbf16> to vector<2x128xbf16>
    %501 = arith.extf %500 : vector<2x128xbf16> to vector<2x128xf32>
    %502 = arith.truncf %473 : vector<2x32xf32> to vector<2x32xbf16>
    %cst_130 = arith.constant dense<0.000000e+00> : vector<2x128xf32>
    %503 = tpu.matmul %502, %8, %cst_130 {dimension_numbers = #tpu.dot_dimension_numbers<[1], [0], [0], [1], [0, 0, 1, 1], [], []>} : vector<2x32xbf16>, vector<32x128xbf16>, vector<2x128xf32> -> vector<2x128xf32>
    %504 = arith.addf %501, %503 : vector<2x128xf32>
    %c0_131 = arith.constant 0 : index
    %c2_132 = arith.constant 2 : index
    %c0_133 = arith.constant 0 : index
    %505 = vector.load %arg3[%c0_131, %c2_132, %c0_133] : memref<2x8x128xbf16, #tpu.memory_space<vmem>>, vector<2x1x128xbf16>
    %506 = vector.shape_cast %505 : vector<2x1x128xbf16> to vector<2x128xbf16>
    %507 = arith.extf %506 : vector<2x128xbf16> to vector<2x128xf32>
    %508 = arith.truncf %479 : vector<2x32xf32> to vector<2x32xbf16>
    %cst_134 = arith.constant dense<0.000000e+00> : vector<2x128xf32>
    %509 = tpu.matmul %508, %10, %cst_134 {dimension_numbers = #tpu.dot_dimension_numbers<[1], [0], [0], [1], [0, 0, 1, 1], [], []>} : vector<2x32xbf16>, vector<32x128xbf16>, vector<2x128xf32> -> vector<2x128xf32>
    %510 = arith.addf %507, %509 : vector<2x128xf32>
    %511 = vector.extract_strided_slice %504 {offsets = [0, 0], sizes = [2, 32], strides = [1, 1]} : vector<2x128xf32> to vector<2x32xf32>
    %512 = arith.negf %511 : vector<2x32xf32>
    %513 = math.exp %512 : vector<2x32xf32>
    %cst_135 = arith.constant 1.000000e+00 : f32
    %514 = vector.broadcast %cst_135 : f32 to vector<2x32xf32>
    %515 = arith.addf %514, %513 : vector<2x32xf32>
    %516 = arith.divf %514, %515 : vector<2x32xf32>
    %517 = vector.extract_strided_slice %504 {offsets = [0, 32], sizes = [2, 32], strides = [1, 1]} : vector<2x128xf32> to vector<2x32xf32>
    %518 = arith.negf %517 : vector<2x32xf32>
    %519 = math.exp %518 : vector<2x32xf32>
    %cst_136 = arith.constant 1.000000e+00 : f32
    %520 = vector.broadcast %cst_136 : f32 to vector<2x32xf32>
    %521 = arith.addf %520, %519 : vector<2x32xf32>
    %522 = arith.divf %520, %521 : vector<2x32xf32>
    %523 = vector.extract_strided_slice %504 {offsets = [0, 64], sizes = [2, 32], strides = [1, 1]} : vector<2x128xf32> to vector<2x32xf32>
    %524 = math.tanh %523 : vector<2x32xf32>
    %525 = vector.extract_strided_slice %504 {offsets = [0, 96], sizes = [2, 32], strides = [1, 1]} : vector<2x128xf32> to vector<2x32xf32>
    %526 = arith.negf %525 : vector<2x32xf32>
    %527 = math.exp %526 : vector<2x32xf32>
    %cst_137 = arith.constant 1.000000e+00 : f32
    %528 = vector.broadcast %cst_137 : f32 to vector<2x32xf32>
    %529 = arith.addf %528, %527 : vector<2x32xf32>
    %530 = arith.divf %528, %529 : vector<2x32xf32>
    %531 = arith.mulf %522, %476 : vector<2x32xf32>
    %532 = arith.mulf %516, %524 : vector<2x32xf32>
    %533 = arith.addf %531, %532 : vector<2x32xf32>
    %534 = math.tanh %533 : vector<2x32xf32>
    %535 = arith.mulf %530, %534 : vector<2x32xf32>
    %536 = vector.extract_strided_slice %510 {offsets = [0, 0], sizes = [2, 32], strides = [1, 1]} : vector<2x128xf32> to vector<2x32xf32>
    %537 = arith.negf %536 : vector<2x32xf32>
    %538 = math.exp %537 : vector<2x32xf32>
    %cst_138 = arith.constant 1.000000e+00 : f32
    %539 = vector.broadcast %cst_138 : f32 to vector<2x32xf32>
    %540 = arith.addf %539, %538 : vector<2x32xf32>
    %541 = arith.divf %539, %540 : vector<2x32xf32>
    %542 = vector.extract_strided_slice %510 {offsets = [0, 32], sizes = [2, 32], strides = [1, 1]} : vector<2x128xf32> to vector<2x32xf32>
    %543 = arith.negf %542 : vector<2x32xf32>
    %544 = math.exp %543 : vector<2x32xf32>
    %cst_139 = arith.constant 1.000000e+00 : f32
    %545 = vector.broadcast %cst_139 : f32 to vector<2x32xf32>
    %546 = arith.addf %545, %544 : vector<2x32xf32>
    %547 = arith.divf %545, %546 : vector<2x32xf32>
    %548 = vector.extract_strided_slice %510 {offsets = [0, 64], sizes = [2, 32], strides = [1, 1]} : vector<2x128xf32> to vector<2x32xf32>
    %549 = math.tanh %548 : vector<2x32xf32>
    %550 = vector.extract_strided_slice %510 {offsets = [0, 96], sizes = [2, 32], strides = [1, 1]} : vector<2x128xf32> to vector<2x32xf32>
    %551 = arith.negf %550 : vector<2x32xf32>
    %552 = math.exp %551 : vector<2x32xf32>
    %cst_140 = arith.constant 1.000000e+00 : f32
    %553 = vector.broadcast %cst_140 : f32 to vector<2x32xf32>
    %554 = arith.addf %553, %552 : vector<2x32xf32>
    %555 = arith.divf %553, %554 : vector<2x32xf32>
    %556 = arith.mulf %547, %482 : vector<2x32xf32>
    %557 = arith.mulf %541, %549 : vector<2x32xf32>
    %558 = arith.addf %556, %557 : vector<2x32xf32>
    %559 = math.tanh %558 : vector<2x32xf32>
    %560 = arith.mulf %555, %559 : vector<2x32xf32>
    %c5_i32_141 = arith.constant 5 : i32
    %561 = arith.addi %4, %c5_i32_141 : i32
    %562 = vector.broadcast %561 : i32 to vector<2x1xi32>
    %563 = arith.cmpi slt, %562, %3 : vector<2x1xi32>
    %c2_i32_142 = arith.constant 2 : i32
    %564 = arith.addi %6, %c2_i32_142 : i32
    %565 = vector.broadcast %564 : i32 to vector<2x1xi32>
    %566 = arith.cmpi slt, %565, %3 : vector<2x1xi32>
    %567 = vector.shape_cast %563 : vector<2x1xi1> to vector<2x1xi1>
    %568 = vector.broadcast %567 : vector<2x1xi1> to vector<2x32xi1>
    %569 = arith.select %568, %535, %473 : vector<2x32xi1>, vector<2x32xf32>
    %570 = vector.shape_cast %563 : vector<2x1xi1> to vector<2x1xi1>
    %571 = vector.broadcast %570 : vector<2x1xi1> to vector<2x32xi1>
    %572 = arith.select %571, %533, %476 : vector<2x32xi1>, vector<2x32xf32>
    %573 = vector.shape_cast %566 : vector<2x1xi1> to vector<2x1xi1>
    %574 = vector.broadcast %573 : vector<2x1xi1> to vector<2x32xi1>
    %575 = arith.select %574, %560, %479 : vector<2x32xi1>, vector<2x32xf32>
    %576 = vector.shape_cast %566 : vector<2x1xi1> to vector<2x1xi1>
    %577 = vector.broadcast %576 : vector<2x1xi1> to vector<2x32xi1>
    %578 = arith.select %577, %558, %482 : vector<2x32xi1>, vector<2x32xf32>
    %cst_143 = arith.constant 0.000000e+00 : f32
    %579 = vector.shape_cast %563 : vector<2x1xi1> to vector<2x1xi1>
    %580 = vector.broadcast %579 : vector<2x1xi1> to vector<2x32xi1>
    %581 = vector.broadcast %cst_143 : f32 to vector<2x32xf32>
    %582 = arith.select %580, %535, %581 : vector<2x32xi1>, vector<2x32xf32>
    %583 = arith.truncf %582 : vector<2x32xf32> to vector<2x32xbf16>
    %c0_144 = arith.constant 0 : index
    %c5_145 = arith.constant 5 : index
    %c0_146 = arith.constant 0 : index
    %584 = vector.load %arg5[%c0_144, %c5_145, %c0_146] : memref<2x8x32xbf16, #tpu.memory_space<vmem>>, vector<2x1x32xbf16>
    %585 = vector.shape_cast %584 : vector<2x1x32xbf16> to vector<2x32xbf16>
    %586 = vector.shape_cast %583 : vector<2x32xbf16> to vector<2x1x32xbf16>
    tpu.vector_store %arg5[%c0_144, %c5_145, %c0_146], %586 {strides = array<i32>} : memref<2x8x32xbf16, #tpu.memory_space<vmem>>, vector<2x1x32xbf16>,
    %cst_147 = arith.constant 0.000000e+00 : f32
    %587 = vector.shape_cast %566 : vector<2x1xi1> to vector<2x1xi1>
    %588 = vector.broadcast %587 : vector<2x1xi1> to vector<2x32xi1>
    %589 = vector.broadcast %cst_147 : f32 to vector<2x32xf32>
    %590 = arith.select %588, %560, %589 : vector<2x32xi1>, vector<2x32xf32>
    %591 = arith.truncf %590 : vector<2x32xf32> to vector<2x32xbf16>
    %c0_148 = arith.constant 0 : index
    %c2_149 = arith.constant 2 : index
    %c0_150 = arith.constant 0 : index
    %592 = vector.load %arg6[%c0_148, %c2_149, %c0_150] : memref<2x8x32xbf16, #tpu.memory_space<vmem>>, vector<2x1x32xbf16>
    %593 = vector.shape_cast %592 : vector<2x1x32xbf16> to vector<2x32xbf16>
    %594 = vector.shape_cast %591 : vector<2x32xbf16> to vector<2x1x32xbf16>
    tpu.vector_store %arg6[%c0_148, %c2_149, %c0_150], %594 {strides = array<i32>} : memref<2x8x32xbf16, #tpu.memory_space<vmem>>, vector<2x1x32xbf16>,
    %c0_151 = arith.constant 0 : index
    %c6_152 = arith.constant 6 : index
    %c0_153 = arith.constant 0 : index
    %595 = vector.load %arg2[%c0_151, %c6_152, %c0_153] : memref<2x8x128xbf16, #tpu.memory_space<vmem>>, vector<2x1x128xbf16>
    %596 = vector.shape_cast %595 : vector<2x1x128xbf16> to vector<2x128xbf16>
    %597 = arith.extf %596 : vector<2x128xbf16> to vector<2x128xf32>
    %598 = arith.truncf %569 : vector<2x32xf32> to vector<2x32xbf16>
    %cst_154 = arith.constant dense<0.000000e+00> : vector<2x128xf32>
    %599 = tpu.matmul %598, %8, %cst_154 {dimension_numbers = #tpu.dot_dimension_numbers<[1], [0], [0], [1], [0, 0, 1, 1], [], []>} : vector<2x32xbf16>, vector<32x128xbf16>, vector<2x128xf32> -> vector<2x128xf32>
    %600 = arith.addf %597, %599 : vector<2x128xf32>
    %c0_155 = arith.constant 0 : index
    %c1_156 = arith.constant 1 : index
    %c0_157 = arith.constant 0 : index
    %601 = vector.load %arg3[%c0_155, %c1_156, %c0_157] : memref<2x8x128xbf16, #tpu.memory_space<vmem>>, vector<2x1x128xbf16>
    %602 = vector.shape_cast %601 : vector<2x1x128xbf16> to vector<2x128xbf16>
    %603 = arith.extf %602 : vector<2x128xbf16> to vector<2x128xf32>
    %604 = arith.truncf %575 : vector<2x32xf32> to vector<2x32xbf16>
    %cst_158 = arith.constant dense<0.000000e+00> : vector<2x128xf32>
    %605 = tpu.matmul %604, %10, %cst_158 {dimension_numbers = #tpu.dot_dimension_numbers<[1], [0], [0], [1], [0, 0, 1, 1], [], []>} : vector<2x32xbf16>, vector<32x128xbf16>, vector<2x128xf32> -> vector<2x128xf32>
    %606 = arith.addf %603, %605 : vector<2x128xf32>
    %607 = vector.extract_strided_slice %600 {offsets = [0, 0], sizes = [2, 32], strides = [1, 1]} : vector<2x128xf32> to vector<2x32xf32>
    %608 = arith.negf %607 : vector<2x32xf32>
    %609 = math.exp %608 : vector<2x32xf32>
    %cst_159 = arith.constant 1.000000e+00 : f32
    %610 = vector.broadcast %cst_159 : f32 to vector<2x32xf32>
    %611 = arith.addf %610, %609 : vector<2x32xf32>
    %612 = arith.divf %610, %611 : vector<2x32xf32>
    %613 = vector.extract_strided_slice %600 {offsets = [0, 32], sizes = [2, 32], strides = [1, 1]} : vector<2x128xf32> to vector<2x32xf32>
    %614 = arith.negf %613 : vector<2x32xf32>
    %615 = math.exp %614 : vector<2x32xf32>
    %cst_160 = arith.constant 1.000000e+00 : f32
    %616 = vector.broadcast %cst_160 : f32 to vector<2x32xf32>
    %617 = arith.addf %616, %615 : vector<2x32xf32>
    %618 = arith.divf %616, %617 : vector<2x32xf32>
    %619 = vector.extract_strided_slice %600 {offsets = [0, 64], sizes = [2, 32], strides = [1, 1]} : vector<2x128xf32> to vector<2x32xf32>
    %620 = math.tanh %619 : vector<2x32xf32>
    %621 = vector.extract_strided_slice %600 {offsets = [0, 96], sizes = [2, 32], strides = [1, 1]} : vector<2x128xf32> to vector<2x32xf32>
    %622 = arith.negf %621 : vector<2x32xf32>
    %623 = math.exp %622 : vector<2x32xf32>
    %cst_161 = arith.constant 1.000000e+00 : f32
    %624 = vector.broadcast %cst_161 : f32 to vector<2x32xf32>
    %625 = arith.addf %624, %623 : vector<2x32xf32>
    %626 = arith.divf %624, %625 : vector<2x32xf32>
    %627 = arith.mulf %618, %572 : vector<2x32xf32>
    %628 = arith.mulf %612, %620 : vector<2x32xf32>
    %629 = arith.addf %627, %628 : vector<2x32xf32>
    %630 = math.tanh %629 : vector<2x32xf32>
    %631 = arith.mulf %626, %630 : vector<2x32xf32>
    %632 = vector.extract_strided_slice %606 {offsets = [0, 0], sizes = [2, 32], strides = [1, 1]} : vector<2x128xf32> to vector<2x32xf32>
    %633 = arith.negf %632 : vector<2x32xf32>
    %634 = math.exp %633 : vector<2x32xf32>
    %cst_162 = arith.constant 1.000000e+00 : f32
    %635 = vector.broadcast %cst_162 : f32 to vector<2x32xf32>
    %636 = arith.addf %635, %634 : vector<2x32xf32>
    %637 = arith.divf %635, %636 : vector<2x32xf32>
    %638 = vector.extract_strided_slice %606 {offsets = [0, 32], sizes = [2, 32], strides = [1, 1]} : vector<2x128xf32> to vector<2x32xf32>
    %639 = arith.negf %638 : vector<2x32xf32>
    %640 = math.exp %639 : vector<2x32xf32>
    %cst_163 = arith.constant 1.000000e+00 : f32
    %641 = vector.broadcast %cst_163 : f32 to vector<2x32xf32>
    %642 = arith.addf %641, %640 : vector<2x32xf32>
    %643 = arith.divf %641, %642 : vector<2x32xf32>
    %644 = vector.extract_strided_slice %606 {offsets = [0, 64], sizes = [2, 32], strides = [1, 1]} : vector<2x128xf32> to vector<2x32xf32>
    %645 = math.tanh %644 : vector<2x32xf32>
    %646 = vector.extract_strided_slice %606 {offsets = [0, 96], sizes = [2, 32], strides = [1, 1]} : vector<2x128xf32> to vector<2x32xf32>
    %647 = arith.negf %646 : vector<2x32xf32>
    %648 = math.exp %647 : vector<2x32xf32>
    %cst_164 = arith.constant 1.000000e+00 : f32
    %649 = vector.broadcast %cst_164 : f32 to vector<2x32xf32>
    %650 = arith.addf %649, %648 : vector<2x32xf32>
    %651 = arith.divf %649, %650 : vector<2x32xf32>
    %652 = arith.mulf %643, %578 : vector<2x32xf32>
    %653 = arith.mulf %637, %645 : vector<2x32xf32>
    %654 = arith.addf %652, %653 : vector<2x32xf32>
    %655 = math.tanh %654 : vector<2x32xf32>
    %656 = arith.mulf %651, %655 : vector<2x32xf32>
    %c6_i32_165 = arith.constant 6 : i32
    %657 = arith.addi %4, %c6_i32_165 : i32
    %658 = vector.broadcast %657 : i32 to vector<2x1xi32>
    %659 = arith.cmpi slt, %658, %3 : vector<2x1xi32>
    %c1_i32_166 = arith.constant 1 : i32
    %660 = arith.addi %6, %c1_i32_166 : i32
    %661 = vector.broadcast %660 : i32 to vector<2x1xi32>
    %662 = arith.cmpi slt, %661, %3 : vector<2x1xi32>
    %663 = vector.shape_cast %659 : vector<2x1xi1> to vector<2x1xi1>
    %664 = vector.broadcast %663 : vector<2x1xi1> to vector<2x32xi1>
    %665 = arith.select %664, %631, %569 : vector<2x32xi1>, vector<2x32xf32>
    %666 = vector.shape_cast %659 : vector<2x1xi1> to vector<2x1xi1>
    %667 = vector.broadcast %666 : vector<2x1xi1> to vector<2x32xi1>
    %668 = arith.select %667, %629, %572 : vector<2x32xi1>, vector<2x32xf32>
    %669 = vector.shape_cast %662 : vector<2x1xi1> to vector<2x1xi1>
    %670 = vector.broadcast %669 : vector<2x1xi1> to vector<2x32xi1>
    %671 = arith.select %670, %656, %575 : vector<2x32xi1>, vector<2x32xf32>
    %672 = vector.shape_cast %662 : vector<2x1xi1> to vector<2x1xi1>
    %673 = vector.broadcast %672 : vector<2x1xi1> to vector<2x32xi1>
    %674 = arith.select %673, %654, %578 : vector<2x32xi1>, vector<2x32xf32>
    %cst_167 = arith.constant 0.000000e+00 : f32
    %675 = vector.shape_cast %659 : vector<2x1xi1> to vector<2x1xi1>
    %676 = vector.broadcast %675 : vector<2x1xi1> to vector<2x32xi1>
    %677 = vector.broadcast %cst_167 : f32 to vector<2x32xf32>
    %678 = arith.select %676, %631, %677 : vector<2x32xi1>, vector<2x32xf32>
    %679 = arith.truncf %678 : vector<2x32xf32> to vector<2x32xbf16>
    %c0_168 = arith.constant 0 : index
    %c6_169 = arith.constant 6 : index
    %c0_170 = arith.constant 0 : index
    %680 = vector.load %arg5[%c0_168, %c6_169, %c0_170] : memref<2x8x32xbf16, #tpu.memory_space<vmem>>, vector<2x1x32xbf16>
    %681 = vector.shape_cast %680 : vector<2x1x32xbf16> to vector<2x32xbf16>
    %682 = vector.shape_cast %679 : vector<2x32xbf16> to vector<2x1x32xbf16>
    tpu.vector_store %arg5[%c0_168, %c6_169, %c0_170], %682 {strides = array<i32>} : memref<2x8x32xbf16, #tpu.memory_space<vmem>>, vector<2x1x32xbf16>,
    %cst_171 = arith.constant 0.000000e+00 : f32
    %683 = vector.shape_cast %662 : vector<2x1xi1> to vector<2x1xi1>
    %684 = vector.broadcast %683 : vector<2x1xi1> to vector<2x32xi1>
    %685 = vector.broadcast %cst_171 : f32 to vector<2x32xf32>
    %686 = arith.select %684, %656, %685 : vector<2x32xi1>, vector<2x32xf32>
    %687 = arith.truncf %686 : vector<2x32xf32> to vector<2x32xbf16>
    %c0_172 = arith.constant 0 : index
    %c1_173 = arith.constant 1 : index
    %c0_174 = arith.constant 0 : index
    %688 = vector.load %arg6[%c0_172, %c1_173, %c0_174] : memref<2x8x32xbf16, #tpu.memory_space<vmem>>, vector<2x1x32xbf16>
    %689 = vector.shape_cast %688 : vector<2x1x32xbf16> to vector<2x32xbf16>
    %690 = vector.shape_cast %687 : vector<2x32xbf16> to vector<2x1x32xbf16>
    tpu.vector_store %arg6[%c0_172, %c1_173, %c0_174], %690 {strides = array<i32>} : memref<2x8x32xbf16, #tpu.memory_space<vmem>>, vector<2x1x32xbf16>,
    %c0_175 = arith.constant 0 : index
    %c7_176 = arith.constant 7 : index
    %c0_177 = arith.constant 0 : index
    %691 = vector.load %arg2[%c0_175, %c7_176, %c0_177] : memref<2x8x128xbf16, #tpu.memory_space<vmem>>, vector<2x1x128xbf16>
    %692 = vector.shape_cast %691 : vector<2x1x128xbf16> to vector<2x128xbf16>
    %693 = arith.extf %692 : vector<2x128xbf16> to vector<2x128xf32>
    %694 = arith.truncf %665 : vector<2x32xf32> to vector<2x32xbf16>
    %cst_178 = arith.constant dense<0.000000e+00> : vector<2x128xf32>
    %695 = tpu.matmul %694, %8, %cst_178 {dimension_numbers = #tpu.dot_dimension_numbers<[1], [0], [0], [1], [0, 0, 1, 1], [], []>} : vector<2x32xbf16>, vector<32x128xbf16>, vector<2x128xf32> -> vector<2x128xf32>
    %696 = arith.addf %693, %695 : vector<2x128xf32>
    %c0_179 = arith.constant 0 : index
    %c0_180 = arith.constant 0 : index
    %c0_181 = arith.constant 0 : index
    %697 = vector.load %arg3[%c0_179, %c0_180, %c0_181] : memref<2x8x128xbf16, #tpu.memory_space<vmem>>, vector<2x1x128xbf16>
    %698 = vector.shape_cast %697 : vector<2x1x128xbf16> to vector<2x128xbf16>
    %699 = arith.extf %698 : vector<2x128xbf16> to vector<2x128xf32>
    %700 = arith.truncf %671 : vector<2x32xf32> to vector<2x32xbf16>
    %cst_182 = arith.constant dense<0.000000e+00> : vector<2x128xf32>
    %701 = tpu.matmul %700, %10, %cst_182 {dimension_numbers = #tpu.dot_dimension_numbers<[1], [0], [0], [1], [0, 0, 1, 1], [], []>} : vector<2x32xbf16>, vector<32x128xbf16>, vector<2x128xf32> -> vector<2x128xf32>
    %702 = arith.addf %699, %701 : vector<2x128xf32>
    %703 = vector.extract_strided_slice %696 {offsets = [0, 0], sizes = [2, 32], strides = [1, 1]} : vector<2x128xf32> to vector<2x32xf32>
    %704 = arith.negf %703 : vector<2x32xf32>
    %705 = math.exp %704 : vector<2x32xf32>
    %cst_183 = arith.constant 1.000000e+00 : f32
    %706 = vector.broadcast %cst_183 : f32 to vector<2x32xf32>
    %707 = arith.addf %706, %705 : vector<2x32xf32>
    %708 = arith.divf %706, %707 : vector<2x32xf32>
    %709 = vector.extract_strided_slice %696 {offsets = [0, 32], sizes = [2, 32], strides = [1, 1]} : vector<2x128xf32> to vector<2x32xf32>
    %710 = arith.negf %709 : vector<2x32xf32>
    %711 = math.exp %710 : vector<2x32xf32>
    %cst_184 = arith.constant 1.000000e+00 : f32
    %712 = vector.broadcast %cst_184 : f32 to vector<2x32xf32>
    %713 = arith.addf %712, %711 : vector<2x32xf32>
    %714 = arith.divf %712, %713 : vector<2x32xf32>
    %715 = vector.extract_strided_slice %696 {offsets = [0, 64], sizes = [2, 32], strides = [1, 1]} : vector<2x128xf32> to vector<2x32xf32>
    %716 = math.tanh %715 : vector<2x32xf32>
    %717 = vector.extract_strided_slice %696 {offsets = [0, 96], sizes = [2, 32], strides = [1, 1]} : vector<2x128xf32> to vector<2x32xf32>
    %718 = arith.negf %717 : vector<2x32xf32>
    %719 = math.exp %718 : vector<2x32xf32>
    %cst_185 = arith.constant 1.000000e+00 : f32
    %720 = vector.broadcast %cst_185 : f32 to vector<2x32xf32>
    %721 = arith.addf %720, %719 : vector<2x32xf32>
    %722 = arith.divf %720, %721 : vector<2x32xf32>
    %723 = arith.mulf %714, %668 : vector<2x32xf32>
    %724 = arith.mulf %708, %716 : vector<2x32xf32>
    %725 = arith.addf %723, %724 : vector<2x32xf32>
    %726 = math.tanh %725 : vector<2x32xf32>
    %727 = arith.mulf %722, %726 : vector<2x32xf32>
    %728 = vector.extract_strided_slice %702 {offsets = [0, 0], sizes = [2, 32], strides = [1, 1]} : vector<2x128xf32> to vector<2x32xf32>
    %729 = arith.negf %728 : vector<2x32xf32>
    %730 = math.exp %729 : vector<2x32xf32>
    %cst_186 = arith.constant 1.000000e+00 : f32
    %731 = vector.broadcast %cst_186 : f32 to vector<2x32xf32>
    %732 = arith.addf %731, %730 : vector<2x32xf32>
    %733 = arith.divf %731, %732 : vector<2x32xf32>
    %734 = vector.extract_strided_slice %702 {offsets = [0, 32], sizes = [2, 32], strides = [1, 1]} : vector<2x128xf32> to vector<2x32xf32>
    %735 = arith.negf %734 : vector<2x32xf32>
    %736 = math.exp %735 : vector<2x32xf32>
    %cst_187 = arith.constant 1.000000e+00 : f32
    %737 = vector.broadcast %cst_187 : f32 to vector<2x32xf32>
    %738 = arith.addf %737, %736 : vector<2x32xf32>
    %739 = arith.divf %737, %738 : vector<2x32xf32>
    %740 = vector.extract_strided_slice %702 {offsets = [0, 64], sizes = [2, 32], strides = [1, 1]} : vector<2x128xf32> to vector<2x32xf32>
    %741 = math.tanh %740 : vector<2x32xf32>
    %742 = vector.extract_strided_slice %702 {offsets = [0, 96], sizes = [2, 32], strides = [1, 1]} : vector<2x128xf32> to vector<2x32xf32>
    %743 = arith.negf %742 : vector<2x32xf32>
    %744 = math.exp %743 : vector<2x32xf32>
    %cst_188 = arith.constant 1.000000e+00 : f32
    %745 = vector.broadcast %cst_188 : f32 to vector<2x32xf32>
    %746 = arith.addf %745, %744 : vector<2x32xf32>
    %747 = arith.divf %745, %746 : vector<2x32xf32>
    %748 = arith.mulf %739, %674 : vector<2x32xf32>
    %749 = arith.mulf %733, %741 : vector<2x32xf32>
    %750 = arith.addf %748, %749 : vector<2x32xf32>
    %751 = math.tanh %750 : vector<2x32xf32>
    %752 = arith.mulf %747, %751 : vector<2x32xf32>
    %c7_i32_189 = arith.constant 7 : i32
    %753 = arith.addi %4, %c7_i32_189 : i32
    %754 = vector.broadcast %753 : i32 to vector<2x1xi32>
    %755 = arith.cmpi slt, %754, %3 : vector<2x1xi32>
    %c0_i32_190 = arith.constant 0 : i32
    %756 = arith.addi %6, %c0_i32_190 : i32
    %757 = vector.broadcast %756 : i32 to vector<2x1xi32>
    %758 = arith.cmpi slt, %757, %3 : vector<2x1xi32>
    %759 = vector.shape_cast %755 : vector<2x1xi1> to vector<2x1xi1>
    %760 = vector.broadcast %759 : vector<2x1xi1> to vector<2x32xi1>
    %761 = arith.select %760, %727, %665 : vector<2x32xi1>, vector<2x32xf32>
    %762 = vector.shape_cast %755 : vector<2x1xi1> to vector<2x1xi1>
    %763 = vector.broadcast %762 : vector<2x1xi1> to vector<2x32xi1>
    %764 = arith.select %763, %725, %668 : vector<2x32xi1>, vector<2x32xf32>
    %765 = vector.shape_cast %758 : vector<2x1xi1> to vector<2x1xi1>
    %766 = vector.broadcast %765 : vector<2x1xi1> to vector<2x32xi1>
    %767 = arith.select %766, %752, %671 : vector<2x32xi1>, vector<2x32xf32>
    %768 = vector.shape_cast %758 : vector<2x1xi1> to vector<2x1xi1>
    %769 = vector.broadcast %768 : vector<2x1xi1> to vector<2x32xi1>
    %770 = arith.select %769, %750, %674 : vector<2x32xi1>, vector<2x32xf32>
    %cst_191 = arith.constant 0.000000e+00 : f32
    %771 = vector.shape_cast %755 : vector<2x1xi1> to vector<2x1xi1>
    %772 = vector.broadcast %771 : vector<2x1xi1> to vector<2x32xi1>
    %773 = vector.broadcast %cst_191 : f32 to vector<2x32xf32>
    %774 = arith.select %772, %727, %773 : vector<2x32xi1>, vector<2x32xf32>
    %775 = arith.truncf %774 : vector<2x32xf32> to vector<2x32xbf16>
    %c0_192 = arith.constant 0 : index
    %c7_193 = arith.constant 7 : index
    %c0_194 = arith.constant 0 : index
    %776 = vector.load %arg5[%c0_192, %c7_193, %c0_194] : memref<2x8x32xbf16, #tpu.memory_space<vmem>>, vector<2x1x32xbf16>
    %777 = vector.shape_cast %776 : vector<2x1x32xbf16> to vector<2x32xbf16>
    %778 = vector.shape_cast %775 : vector<2x32xbf16> to vector<2x1x32xbf16>
    tpu.vector_store %arg5[%c0_192, %c7_193, %c0_194], %778 {strides = array<i32>} : memref<2x8x32xbf16, #tpu.memory_space<vmem>>, vector<2x1x32xbf16>,
    %cst_195 = arith.constant 0.000000e+00 : f32
    %779 = vector.shape_cast %758 : vector<2x1xi1> to vector<2x1xi1>
    %780 = vector.broadcast %779 : vector<2x1xi1> to vector<2x32xi1>
    %781 = vector.broadcast %cst_195 : f32 to vector<2x32xf32>
    %782 = arith.select %780, %752, %781 : vector<2x32xi1>, vector<2x32xf32>
    %783 = arith.truncf %782 : vector<2x32xf32> to vector<2x32xbf16>
    %c0_196 = arith.constant 0 : index
    %c0_197 = arith.constant 0 : index
    %c0_198 = arith.constant 0 : index
    %784 = vector.load %arg6[%c0_196, %c0_197, %c0_198] : memref<2x8x32xbf16, #tpu.memory_space<vmem>>, vector<2x1x32xbf16>
    %785 = vector.shape_cast %784 : vector<2x1x32xbf16> to vector<2x32xbf16>
    %786 = vector.shape_cast %783 : vector<2x32xbf16> to vector<2x1x32xbf16>
    tpu.vector_store %arg6[%c0_196, %c0_197, %c0_198], %786 {strides = array<i32>} : memref<2x8x32xbf16, #tpu.memory_space<vmem>>, vector<2x1x32xbf16>,
    %c0_199 = arith.constant 0 : index
    %c0_200 = arith.constant 0 : index
    %c0_201 = arith.constant 0 : index
    %787 = vector.load %arg7[%c0_199, %c0_200, %c0_201] : memref<2x2x32xf32, #tpu.memory_space<vmem>>, vector<1x2x32xf32>
    %788 = vector.shape_cast %787 : vector<1x2x32xf32> to vector<2x32xf32>
    %789 = vector.shape_cast %761 : vector<2x32xf32> to vector<1x2x32xf32>
    tpu.vector_store %arg7[%c0_199, %c0_200, %c0_201], %789 {strides = array<i32>} : memref<2x2x32xf32, #tpu.memory_space<vmem>>, vector<1x2x32xf32>,
    %c0_202 = arith.constant 0 : index
    %c0_203 = arith.constant 0 : index
    %c0_204 = arith.constant 0 : index
    %790 = vector.load %arg8[%c0_202, %c0_203, %c0_204] : memref<2x2x32xf32, #tpu.memory_space<vmem>>, vector<1x2x32xf32>
    %791 = vector.shape_cast %790 : vector<1x2x32xf32> to vector<2x32xf32>
    %792 = vector.shape_cast %764 : vector<2x32xf32> to vector<1x2x32xf32>
    tpu.vector_store %arg8[%c0_202, %c0_203, %c0_204], %792 {strides = array<i32>} : memref<2x2x32xf32, #tpu.memory_space<vmem>>, vector<1x2x32xf32>,
    %c1_205 = arith.constant 1 : index
    %c0_206 = arith.constant 0 : index
    %c0_207 = arith.constant 0 : index
    %793 = vector.load %arg7[%c1_205, %c0_206, %c0_207] : memref<2x2x32xf32, #tpu.memory_space<vmem>>, vector<1x2x32xf32>
    %794 = vector.shape_cast %793 : vector<1x2x32xf32> to vector<2x32xf32>
    %795 = vector.shape_cast %767 : vector<2x32xf32> to vector<1x2x32xf32>
    tpu.vector_store %arg7[%c1_205, %c0_206, %c0_207], %795 {strides = array<i32>} : memref<2x2x32xf32, #tpu.memory_space<vmem>>, vector<1x2x32xf32>,
    %c1_208 = arith.constant 1 : index
    %c0_209 = arith.constant 0 : index
    %c0_210 = arith.constant 0 : index
    %796 = vector.load %arg8[%c1_208, %c0_209, %c0_210] : memref<2x2x32xf32, #tpu.memory_space<vmem>>, vector<1x2x32xf32>
    %797 = vector.shape_cast %796 : vector<1x2x32xf32> to vector<2x32xf32>
    %798 = vector.shape_cast %770 : vector<2x32xf32> to vector<1x2x32xf32>
    tpu.vector_store %arg8[%c1_208, %c0_209, %c0_210], %798 {strides = array<i32>} : memref<2x2x32xf32, #tpu.memory_space<vmem>>, vector<1x2x32xf32>,
    return
  }
  func.func @transform_0(%arg0: i32) -> (i32, i32) {
    %c0_i32 = arith.constant 0 : i32
    %c0_i32_0 = arith.constant 0 : i32
    %c0_i32_1 = arith.constant 0 : i32
    return %c0_i32, %c0_i32_0 : i32, i32
  }
  func.func @transform_1(%arg0: i32) -> (i32, i32, i32) {
    %c0_i32 = arith.constant 0 : i32
    %c0_i32_0 = arith.constant 0 : i32
    %c0_i32_1 = arith.constant 0 : i32
    return %c0_i32, %arg0, %c0_i32_0 : i32, i32, i32
  }
  func.func @transform_2(%arg0: i32) -> (i32, i32, i32) {
    %c0_i32 = arith.constant 0 : i32
    %0 = arith.subi %c0_i32, %arg0 : i32
    %c0_i32_0 = arith.constant 0 : i32
    %c1_i32 = arith.constant 1 : i32
    %c0_i32_1 = arith.constant 0 : i32
    return %c0_i32_0, %0, %c1_i32 : i32, i32, i32
  }
  func.func @transform_3(%arg0: i32) -> (i32, i32, i32) {
    %c0_i32 = arith.constant 0 : i32
    %c0_i32_0 = arith.constant 0 : i32
    %c0_i32_1 = arith.constant 0 : i32
    %c0_i32_2 = arith.constant 0 : i32
    return %c0_i32, %c0_i32_0, %c0_i32_1 : i32, i32, i32
  }
  func.func @transform_4(%arg0: i32) -> (i32, i32, i32) {
    %c0_i32 = arith.constant 0 : i32
    %c0_i32_0 = arith.constant 0 : i32
    %c0_i32_1 = arith.constant 0 : i32
    return %c0_i32, %arg0, %c0_i32_0 : i32, i32, i32
  }
  func.func @transform_5(%arg0: i32) -> (i32, i32, i32) {
    %c0_i32 = arith.constant 0 : i32
    %0 = arith.subi %c0_i32, %arg0 : i32
    %c0_i32_0 = arith.constant 0 : i32
    %c0_i32_1 = arith.constant 0 : i32
    %c0_i32_2 = arith.constant 0 : i32
    return %c0_i32_0, %0, %c0_i32_1 : i32, i32, i32
  }
}

module attributes {stable_mosaic.version = 11 : i64} {
  func.func @head_kernel(%arg0: i32, %arg1: i32, %arg2: memref<2x8x32xbf16, #tpu.memory_space<vmem>>, %arg3: memref<2x8x32xbf16, #tpu.memory_space<vmem>>, %arg4: memref<32x11xbf16, #tpu.memory_space<vmem>>, %arg5: memref<32x11xbf16, #tpu.memory_space<vmem>>, %arg6: memref<1x11xf32, #tpu.memory_space<vmem>>, %arg7: memref<2x8x11xf32, #tpu.memory_space<vmem>>) attributes {dimension_semantics = [#tpu.dimension_semantics<parallel>, #tpu.dimension_semantics<parallel>], iteration_bounds = array<i64: 1, 1>, scalar_prefetch = 0 : i64, scratch_operands = 0 : i64, tpu.core_type = #tpu.core_type<tc>, window_params = [{transform_indices = @transform_0, window_bounds = array<i64: 2, 8, 32>}, {transform_indices = @transform_1, window_bounds = array<i64: 2, 8, 32>}, {transform_indices = @transform_2, window_bounds = array<i64: 32, 11>}, {transform_indices = @transform_3, window_bounds = array<i64: 32, 11>}, {transform_indices = @transform_4, window_bounds = array<i64: 1, 11>}, {transform_indices = @transform_5, window_bounds = array<i64: 2, 8, 11>}]} {
    %c0 = arith.constant 0 : index
    %c0_0 = arith.constant 0 : index
    %c0_1 = arith.constant 0 : index
    %0 = vector.load %arg2[%c0, %c0_0, %c0_1] : memref<2x8x32xbf16, #tpu.memory_space<vmem>>, vector<2x8x32xbf16>
    %1 = vector.shape_cast %0 : vector<2x8x32xbf16> to vector<16x32xbf16>
    %c0_2 = arith.constant 0 : index
    %c0_3 = arith.constant 0 : index
    %c0_4 = arith.constant 0 : index
    %2 = vector.load %arg3[%c0_2, %c0_3, %c0_4] : memref<2x8x32xbf16, #tpu.memory_space<vmem>>, vector<2x8x32xbf16>
    %3 = vector.shape_cast %2 : vector<2x8x32xbf16> to vector<16x32xbf16>
    %c0_5 = arith.constant 0 : index
    %c0_6 = arith.constant 0 : index
    %4 = vector.load %arg4[%c0_5, %c0_6] : memref<32x11xbf16, #tpu.memory_space<vmem>>, vector<32x11xbf16>
    %cst = arith.constant dense<0.000000e+00> : vector<16x11xf32>
    %5 = tpu.matmul %1, %4, %cst {dimension_numbers = #tpu.dot_dimension_numbers<[1], [0], [0], [1], [0, 0, 1, 1], [], []>} : vector<16x32xbf16>, vector<32x11xbf16>, vector<16x11xf32> -> vector<16x11xf32>
    %c0_7 = arith.constant 0 : index
    %c0_8 = arith.constant 0 : index
    %6 = vector.load %arg5[%c0_7, %c0_8] : memref<32x11xbf16, #tpu.memory_space<vmem>>, vector<32x11xbf16>
    %cst_9 = arith.constant dense<0.000000e+00> : vector<16x11xf32>
    %7 = tpu.matmul %3, %6, %cst_9 {dimension_numbers = #tpu.dot_dimension_numbers<[1], [0], [0], [1], [0, 0, 1, 1], [], []>} : vector<16x32xbf16>, vector<32x11xbf16>, vector<16x11xf32> -> vector<16x11xf32>
    %8 = arith.addf %5, %7 : vector<16x11xf32>
    %c0_10 = arith.constant 0 : index
    %c0_11 = arith.constant 0 : index
    %9 = vector.load %arg6[%c0_10, %c0_11] : memref<1x11xf32, #tpu.memory_space<vmem>>, vector<1x11xf32>
    %10 = vector.broadcast %9 : vector<1x11xf32> to vector<16x11xf32>
    %11 = arith.addf %8, %10 : vector<16x11xf32>
    %12 = vector.shape_cast %11 : vector<16x11xf32> to vector<2x8x11xf32>
    %c0_12 = arith.constant 0 : index
    %c0_13 = arith.constant 0 : index
    %c0_14 = arith.constant 0 : index
    %13 = vector.load %arg7[%c0_12, %c0_13, %c0_14] : memref<2x8x11xf32, #tpu.memory_space<vmem>>, vector<2x8x11xf32>
    tpu.vector_store %arg7[%c0_12, %c0_13, %c0_14], %12 {strides = array<i32>} : memref<2x8x11xf32, #tpu.memory_space<vmem>>, vector<2x8x11xf32>,
    return
  }
  func.func @transform_0(%arg0: i32, %arg1: i32) -> (i32, i32, i32) {
    %c0_i32 = arith.constant 0 : i32
    %c0_i32_0 = arith.constant 0 : i32
    %c0_i32_1 = arith.constant 0 : i32
    return %c0_i32, %arg0, %c0_i32_0 : i32, i32, i32
  }
  func.func @transform_1(%arg0: i32, %arg1: i32) -> (i32, i32, i32) {
    %c0_i32 = arith.constant 0 : i32
    %c0_i32_0 = arith.constant 0 : i32
    %c0_i32_1 = arith.constant 0 : i32
    return %c0_i32, %arg0, %c0_i32_0 : i32, i32, i32
  }
  func.func @transform_2(%arg0: i32, %arg1: i32) -> (i32, i32) {
    %c0_i32 = arith.constant 0 : i32
    %c0_i32_0 = arith.constant 0 : i32
    return %c0_i32, %arg1 : i32, i32
  }
  func.func @transform_3(%arg0: i32, %arg1: i32) -> (i32, i32) {
    %c0_i32 = arith.constant 0 : i32
    %c0_i32_0 = arith.constant 0 : i32
    return %c0_i32, %arg1 : i32, i32
  }
  func.func @transform_4(%arg0: i32, %arg1: i32) -> (i32, i32) {
    %c0_i32 = arith.constant 0 : i32
    %c0_i32_0 = arith.constant 0 : i32
    return %c0_i32, %arg1 : i32, i32
  }
  func.func @transform_5(%arg0: i32, %arg1: i32) -> (i32, i32, i32) {
    %c0_i32 = arith.constant 0 : i32
    %c0_i32_0 = arith.constant 0 : i32
    return %c0_i32, %arg0, %arg1 : i32, i32, i32
  }
}

</mosaic_0001>

<llo_original>
// kernel: lstm_linear_forward.5
$region0: #{lstm_linear_forward.5}
  #allocation0 [shape = 'u32[]', space=smem, size = 0x4, offset = 0x4, fixed_abs, tag = 'smem constant byte address 0x4 - core index']
  #allocation1 [shape = 'u32[144,128]{1,0:T(1,128)}', space=vmem, size = 0x12000, scoped, tag = 'internal scratch']
  %s0 = inlined_call_operand.vmem [shape: bf16[2,8,32], index: 0, kind: input, shape index: {}]
  %s1 = inlined_call_operand.vmem [shape: bf16[2,8,32], index: 1, kind: input, shape index: {}]
  %s2 = inlined_call_operand.vmem [shape: bf16[32,11], index: 2, kind: input, shape index: {}]
  %s3 = inlined_call_operand.vmem [shape: bf16[32,11], index: 3, kind: input, shape index: {}]
  %s4 = inlined_call_operand.vmem [shape: f32[1,11], index: 4, kind: input, shape index: {}]
  %s5 = inlined_call_operand.hbm [shape: f32[2,8,11], index: 5, kind: output, shape index: {}]
  %s6 = sld [smem:[#allocation0]]
  $region30: #{lstm_linear_forward.5} parent=0
    _
  %s8 = ssub.s32 1, %s6
  %s9 = scalar_select 0, %s8, %s6
  $region1: #{lstm_linear_forward.5} parent=0
    #allocation2 [shape = 'u8[8192]{0}', space=vmem, size = 0x2000, scoped, tag = 'output window, operand 0, single buffered']
    #allocation3 [shape = 's32[1]{0}', space=sflag, size = 0x4, scoped, tag = 'scoped memory for lstm_linear_forward.5']
    %10 = vsyncpa [#allocation3], 0
    // Predicated region
    $region2: #{lstm_linear_forward.5} parent=1 // pred_check
      _
    $region3: #{lstm_linear_forward.5} parent=1 // pred_check_branch
      %12 = sbr.rel (0) target = $region5
    $region4: #{lstm_linear_forward.5} parent=1 // pred_region
      _
    $region5: #{lstm_linear_forward.5} parent=1 // pred_fallthru
      _
    // Predicated region
    $region6: #{lstm_linear_forward.5} parent=1 // pred_check
      _
    $region7: #{lstm_linear_forward.5} parent=1 // pred_check_branch
      %14 = sbr.rel (0) target = $region9
    $region8: #{lstm_linear_forward.5} parent=1 // pred_region
      _
    $region9: #{lstm_linear_forward.5} parent=1 // pred_fallthru
      _
    // Predicated region
    $region10: #{lstm_linear_forward.5} parent=1 // pred_check
      _
    $region11: #{lstm_linear_forward.5} parent=1 // pred_check_branch
      %16 = sbr.rel (0) target = $region13
    $region12: #{lstm_linear_forward.5} parent=1 // pred_region
      _
    $region13: #{lstm_linear_forward.5} parent=1 // pred_fallthru
      _
    // Predicated region
    $region14: #{lstm_linear_forward.5} parent=1 // pred_check
      _
    $region15: #{lstm_linear_forward.5} parent=1 // pred_check_branch
      %18 = sbr.rel (0) target = $region17
    $region16: #{lstm_linear_forward.5} parent=1 // pred_region
      _
    $region17: #{lstm_linear_forward.5} parent=1 // pred_fallthru
      _
    // Predicated region
    $region18: #{lstm_linear_forward.5} parent=1 // pred_check
      _
    $region19: #{lstm_linear_forward.5} parent=1 // pred_check_branch
      %20 = sbr.rel (0) target = $region21
    $region20: #{lstm_linear_forward.5} parent=1 // pred_region
      _
    $region21: #{lstm_linear_forward.5} parent=1 // pred_fallthru
      _
    %v22 = vld [vmem:[%s0] sm:$0xf]
    %v23 = vld [vmem:[%s0 + $0x4] sm:$0xf]
    %v24 = vld [vmem:[%s1] sm:$0xf]
    %v25 = vld [vmem:[%s1 + $0x4] sm:$0xf]
    %v26 = vld [vmem:[%s2] sm:$0xf]
    %v27 = vld [vmem:[%s2 + $0x4] sm:$0xf]
    %v28 = vld [vmem:[%s2 + $0x8] sm:$0xf]
    %v29 = vld [vmem:[%s2 + $0xc] sm:$0xf]
    %v30 = vld [vmem:[%s3] sm:$0xf]
    %v31 = vld [vmem:[%s3 + $0x4] sm:$0xf]
    %v32 = vld [vmem:[%s3 + $0x8] sm:$0xf]
    %v33 = vld [vmem:[%s3 + $0xc] sm:$0xf]
    %v36 = vunpack.c.l.b16 %v24
    %v37 = vunpack.c.l.b16 %v25
    %v38 = vpack.c.b16 %v37, %v36
    %v43 = vunpack.c.l.b16 %v30
    %v44 = vunpack.c.l.b16 %v31
    %v45 = vunpack.c.l.b16 %v32
    %v46 = vunpack.c.l.b16 %v33
    %v47 = vpack.c.b16 %v44, %v43
    %v48 = vpack.c.b16 %v46, %v45
    %vm51 = vcmask 261120
    %v53 = vsel %vm51, %v38, 0
    %55 = vmatprep.subr.bf16.mxu0 0
    %56 = vmatpush1.bf16.msra.mxu0 %v47
    %57 = vmatprep.subr.bf16.mxu0 0
    %58 = vmatpush1.bf16.msra.mxu0 %v48
    %59 = vmatprep.subr.bf16.mxu0 0
    %60 = vmatpush1.bf16.msra.mxu0 0
    %61 = vmatprep.subr.bf16.mxu0 0
    %62 = vmatpush1.bf16.msra.mxu0 0
    %63 = vmatprep.subr.bf16.mxu0 0
    %64 = vmatpush1.bf16.msra.mxu0 0
    %65 = vmatprep.subr.bf16.mxu0 0
    %66 = vmatpush1.bf16.msra.mxu0 0
    %67 = vmatprep.subr.bf16.mxu0 0
    %68 = vmatpush1.bf16.msra.mxu0 0
    %69 = vmatprep.subr.bf16.mxu0 0
    %70 = vmatpush1.bf16.msra.mxu0 0
    %71 = vmatprep.subr.bf16.mxu0 0
    %72 = vmatpush1.bf16.msra.mxu0 0
    %73 = vmatprep.subr.bf16.mxu0 0
    %74 = vmatpush1.bf16.msra.mxu0 0
    %75 = vmatprep.subr.bf16.mxu0 0
    %76 = vmatpush1.bf16.msra.mxu0 0
    %77 = vmatprep.subr.bf16.mxu0 0
    %78 = vmatpush1.bf16.msra.mxu0 0
    %79 = vmatprep.subr.bf16.mxu0 0
    %80 = vmatpush1.bf16.msra.mxu0 0
    %81 = vmatprep.subr.bf16.mxu0 0
    %82 = vmatpush1.bf16.msra.mxu0 0
    %83 = vmatprep.subr.bf16.mxu0 0
    %84 = vmatpush1.bf16.msra.mxu0 0
    %85 = vmatprep.subr.bf16.mxu0 0
    %86 = vmatpush1.bf16.msra.mxu0 0
    %87 = vmatprep.mubr.bf16.mxu0 0
    %88 = vmatmul.mubr.bf16.gmra.mrb[0].mxu0 %v53
    %v89 = vpop.f32.mrb[0].mxu0
    %v90 = vadd.f32 0.0, %v89
    %v91 = vpop.f32.mrb[0].mxu0
    %v92 = vpop.f32.mrb[0].mxu0
    %v93 = vadd.f32 0.0, %v92
    %v94 = vpop.f32.mrb[0].mxu0
    %95 = vdwg.mxu0
    %v98 = vunpack.c.l.b16 %v22
    %v99 = vunpack.c.l.b16 %v23
    %v100 = vpack.c.b16 %v99, %v98
    %v105 = vunpack.c.l.b16 %v26
    %v106 = vunpack.c.l.b16 %v27
    %v107 = vunpack.c.l.b16 %v28
    %v108 = vunpack.c.l.b16 %v29
    %v109 = vpack.c.b16 %v106, %v105
    %v110 = vpack.c.b16 %v108, %v107
    %v114 = vsel %vm51, %v100, 0
    %116 = vmatprep.subr.bf16.mxu0 0
    %117 = vmatpush1.bf16.msra.mxu0 %v109
    %118 = vmatprep.subr.bf16.mxu0 0
    %119 = vmatpush1.bf16.msra.mxu0 %v110
    %120 = vmatprep.subr.bf16.mxu0 0
    %121 = vmatpush1.bf16.msra.mxu0 0
    %122 = vmatprep.subr.bf16.mxu0 0
    %123 = vmatpush1.bf16.msra.mxu0 0
    %124 = vmatprep.subr.bf16.mxu0 0
    %125 = vmatpush1.bf16.msra.mxu0 0
    %126 = vmatprep.subr.bf16.mxu0 0
    %127 = vmatpush1.bf16.msra.mxu0 0
    %128 = vmatprep.subr.bf16.mxu0 0
    %129 = vmatpush1.bf16.msra.mxu0 0
    %130 = vmatprep.subr.bf16.mxu0 0
    %131 = vmatpush1.bf16.msra.mxu0 0
    %132 = vmatprep.subr.bf16.mxu0 0
    %133 = vmatpush1.bf16.msra.mxu0 0
    %134 = vmatprep.subr.bf16.mxu0 0
    %135 = vmatpush1.bf16.msra.mxu0 0
    %136 = vmatprep.subr.bf16.mxu0 0
    %137 = vmatpush1.bf16.msra.mxu0 0
    %138 = vmatprep.subr.bf16.mxu0 0
    %139 = vmatpush1.bf16.msra.mxu0 0
    %140 = vmatprep.subr.bf16.mxu0 0
    %141 = vmatpush1.bf16.msra.mxu0 0
    %142 = vmatprep.subr.bf16.mxu0 0
    %143 = vmatpush1.bf16.msra.mxu0 0
    %144 = vmatprep.subr.bf16.mxu0 0
    %145 = vmatpush1.bf16.msra.mxu0 0
    %146 = vmatprep.subr.bf16.mxu0 0
    %147 = vmatpush1.bf16.msra.mxu0 0
    %148 = vmatprep.mubr.bf16.mxu0 0
    %149 = vmatmul.mubr.bf16.gmra.mrb[0].mxu0 %v114
    %v150 = vpop.f32.mrb[0].mxu0
    %v151 = vadd.f32 %v90, %v150
    %v152 = vpop.f32.mrb[0].mxu0
    %v153 = vpop.f32.mrb[0].mxu0
    %v154 = vadd.f32 %v93, %v153
    %v155 = vpop.f32.mrb[0].mxu0
    %156 = vdwg.mxu0
    %v157 = vld [vmem:[%s4] sm:$0x1]
    %v159 = vlaneseq
    %v160 = vshrl.u32 %v159, 7
    %v161 = vsub.s32 0, %v160
    %v162 = vrot.slane %v157, %v161
    %v164 = vadd.f32 %v151, %v162
    %v165 = vadd.f32 %v154, %v162
    %vm166 = vcmask 89088
    %167 = vst.msk [vmem:[#allocation2] sm:$0xff] %vm166, %v164
    %168 = vst.msk [vmem:[#allocation2 + $0x8] sm:$0xff] %vm166, %v165
    // Predicated region
    $region22: #{lstm_linear_forward.5} parent=1 // pred_check
      _
    $region23: #{lstm_linear_forward.5} parent=1 // pred_check_branch
      %170 = sbr.rel (0) target = $region25
    $region24: #{lstm_linear_forward.5} parent=1 // pred_region
      %s172 = ssub.s32 256, 256
      %173 = vsyncadd [#allocation3], %s172
      %s174 = sshll.u32 [#allocation2], 4
      %s175 = int_to_ptr.vmem [resolvable:$true] %s174
      %180 = dma.vmem_to_hbm [thread:$0]  %s175, 256, %s5, [#allocation3], 128, 128, 8
    $region25: #{lstm_linear_forward.5} parent=1 // pred_fallthru
      _
    // Predicated region
    $region26: #{lstm_linear_forward.5} parent=1 // pred_check
      _
    $region27: #{lstm_linear_forward.5} parent=1 // pred_check_branch
      %182 = sbr.rel (0) target = $region29
    $region28: #{lstm_linear_forward.5} parent=1 // pred_region
      %183 = dma.done [#allocation3], 256
    $region29: #{lstm_linear_forward.5} parent=1 // pred_fallthru
      _
    %184 = vsyncpa [#allocation3], 1

// kernel: lstm_linear_forward.3
$region0: #{lstm_linear_forward.3}
  #allocation0 [shape = 'u32[]', space=smem, size = 0x4, offset = 0x4, fixed_abs, tag = 'smem constant byte address 0x4 - core index']
  #allocation1 [shape = 'u32[144,128]{1,0:T(1,128)}', space=vmem, size = 0x12000, scoped, tag = 'internal scratch']
  %s0 = inlined_call_operand.vmem [shape: f32[2,8,64], index: 0, kind: input, shape index: {}]
  %s1 = inlined_call_operand.hbm [shape: bf16[64,256], index: 1, kind: input, shape index: {}]
  %s2 = inlined_call_operand.vmem [shape: f32[1,256], index: 2, kind: input, shape index: {}]
  %s3 = inlined_call_operand.vmem [shape: bf16[2,8,256], index: 3, kind: output, shape index: {}]
  %s4 = sld [smem:[#allocation0]]
  $region49: #{lstm_linear_forward.3} parent=0
    _
  %s6 = ssub.s32 1, %s4
  %s7 = scalar_select 0, %s6, %s4
  $region1: #{lstm_linear_forward.3} parent=0
    #allocation2 [shape = 'u8[32768]{0}', space=vmem, size = 0x8000, scoped, tag = 'input window, operand 1, single buffered']
    #allocation3 [shape = 's32[2]{0}', space=sflag, size = 0x8, scoped, tag = 'scoped memory for lstm_linear_forward.3']
    %8 = vsyncpa [#allocation3], 0
    loop: start=0, step=1, limit=4
    $region2: #{lstm_linear_forward.3} parent=1 // loop_pre_header
      _
    $region3: #{lstm_linear_forward.3} parent=1 // loop_header
      %s10 = sphi 0, %s14
      %p11 = scmp.ge.s32.totalorder %s10, 4
      %s17 = sphi 0, %s29
      %s18 = sphi 0, %s25
      %s19 = sphi 0, %s17
      %s20 = sphi 0, %s18
      %s21 = sphi 0, %s19
      %s22 = sphi 0, %s20
      %s34 = sphi 0, %s36
      %s37 = sphi 0, %s34
      %s38 = sphi 0, %s37
      %s54 = sphi 0, %s38
      %s58 = sphi 0, %s58
      %s60 = sphi 0, %s58
      %s61 = sphi 0, %s60
      %s75 = sphi 0, %s61
      %s79 = sphi 0, %s79
      %s81 = sphi 0, %s79
      %s82 = sphi 0, %s81
      %s96 = sphi 0, %s82
      %s104 = sphi 0, %s106
      %s107 = sphi 0, %s104
      %s108 = sphi 0, %s107
      %s124 = sphi 0, %s108
    $region4: #{lstm_linear_forward.3} parent=1 // loop_header_branch
      %13 = sbr.rel (%p11) target = $region8
    $region5: #{lstm_linear_forward.3} parent=1 // loop_body
      %s15 = ssub.s32 %s10, 1
      %s16 = ssub.s32 %s10, 2
      %s23 = sadd.s32 1, %s18
      %p24 = scmp.ge.s32.totalorder %s23, 1
      %s25 = scalar_select %p24, 0, %s23
      %s26 = sadd.s32 1, %s17
      %s27 = scalar_select %p24, %s26, %s17
      %p28 = scmp.ge.s32.totalorder %s27, 2
      %s29 = scalar_select %p28, 0, %s27
      %s30 = ssub.s32 %s17, %s29
      %s31 = ssub.s32 %s18, %s25
      %s32 = sor.u32 %s30, %s31
      %p33 = scmp.eq.s32.totalorder %s32, 0
      %s35 = sadd.s32 %s34, 1
      %s36 = scalar_select %p33, %s34, %s35
      %p39 = pneg %p33
      %p40 = scmp.eq.s32.totalorder %s10, 1
      %p41 = por %p39, %p40
      %p42 = scmp.ne.s32.totalorder %s34, %s37
      %p43 = scmp.eq.s32.totalorder %s10, 0
      %p44 = por %p42, %p43
      %p45 = scmp.ne.s32.totalorder %s34, %s37
      %p46 = scmp.eq.s32.totalorder %s15, 1
      %p47 = por %p45, %p46
      %p48 = scmp.ne.s32.totalorder %s37, %s38
      %p49 = scmp.eq.s32.totalorder %s15, 0
      %p50 = por %p48, %p49
      %p51 = scmp.ne.s32.totalorder %s37, %s38
      %p52 = scmp.eq.s32.totalorder %s16, 1
      %p53 = por %p51, %p52
      %p55 = scmp.ne.s32.totalorder %s38, %s54
      %p56 = scmp.eq.s32.totalorder %s16, 0
      %p57 = por %p55, %p56
      %s59 = sadd.s32 %s58, 1
      %p62 = scmp.eq.s32.totalorder %s10, 1
      %p63 = scmp.ne.s32.totalorder %s58, %s60
      %p64 = scmp.eq.s32.totalorder %s10, 0
      %p65 = por %p63, %p64
      %p66 = scmp.ne.s32.totalorder %s58, %s60
      %p67 = scmp.eq.s32.totalorder %s15, 1
      %p68 = por %p66, %p67
      %p69 = scmp.ne.s32.totalorder %s60, %s61
      %p70 = scmp.eq.s32.totalorder %s15, 0
      %p71 = por %p69, %p70
      %p72 = scmp.ne.s32.totalorder %s60, %s61
      %p73 = scmp.eq.s32.totalorder %s16, 1
      %p74 = por %p72, %p73
      %p76 = scmp.ne.s32.totalorder %s61, %s75
      %p77 = scmp.eq.s32.totalorder %s16, 0
      %p78 = por %p76, %p77
      %s80 = sadd.s32 %s79, 1
      %p83 = scmp.eq.s32.totalorder %s10, 1
      %p84 = scmp.ne.s32.totalorder %s79, %s81
      %p85 = scmp.eq.s32.totalorder %s10, 0
      %p86 = por %p84, %p85
      %p87 = scmp.ne.s32.totalorder %s79, %s81
      %p88 = scmp.eq.s32.totalorder %s15, 1
      %p89 = por %p87, %p88
      %p90 = scmp.ne.s32.totalorder %s81, %s82
      %p91 = scmp.eq.s32.totalorder %s15, 0
      %p92 = por %p90, %p91
      %p93 = scmp.ne.s32.totalorder %s81, %s82
      %p94 = scmp.eq.s32.totalorder %s16, 1
      %p95 = por %p93, %p94
      %p97 = scmp.ne.s32.totalorder %s82, %s96
      %p98 = scmp.eq.s32.totalorder %s16, 0
      %p99 = por %p97, %p98
      %s100 = ssub.s32 %s17, %s29
      %s101 = ssub.s32 %s18, %s25
      %s102 = sor.u32 %s100, %s101
      %p103 = scmp.eq.s32.totalorder %s102, 0
      %s105 = sadd.s32 %s104, 1
      %s106 = scalar_select %p103, %s104, %s105
      %p109 = pneg %p103
      %p110 = scmp.eq.s32.totalorder %s10, 1
      %p111 = por %p109, %p110
      %p112 = scmp.ne.s32.totalorder %s104, %s107
      %p113 = scmp.eq.s32.totalorder %s10, 0
      %p114 = por %p112, %p113
      %p115 = scmp.ne.s32.totalorder %s104, %s107
      %p116 = scmp.eq.s32.totalorder %s15, 1
      %p117 = por %p115, %p116
      %p118 = scmp.ne.s32.totalorder %s107, %s108
      %p119 = scmp.eq.s32.totalorder %s15, 0
      %p120 = por %p118, %p119
      %p121 = scmp.ne.s32.totalorder %s107, %s108
      %p122 = scmp.eq.s32.totalorder %s16, 1
      %p123 = por %p121, %p122
      %p125 = scmp.ne.s32.totalorder %s108, %s124
      %p126 = scmp.eq.s32.totalorder %s16, 0
      %p127 = por %p125, %p126
      %p128 = scmp.le.s32.totalorder 1, %s10
      %p129 = scmp.lt.s32.totalorder %s10, 3
      %p130 = pnand %p128, %p129
      %p131 = pneg %p130
      // Predicated region
      $region9: #{lstm_linear_forward.3} parent=5 // pred_check
        _
      $region10: #{lstm_linear_forward.3} parent=5 // pred_check_branch
        %133 = sbr.rel (%p130) target = $region12
      $region11: #{lstm_linear_forward.3} parent=5 // pred_region
        %s134 = ssub.s32 %s10, 1
        // Predicated region
        $region13: #{lstm_linear_forward.3} parent=11 // pred_check
          %p135 = pneg %p71
        $region14: #{lstm_linear_forward.3} parent=11 // pred_check_branch
          %137 = sbr.rel (%p135) target = $region16
        $region15: #{lstm_linear_forward.3} parent=11 // pred_region
          %s139 = ssub.s32 1024, 1024
          %140 = vsyncadd [#allocation3], %s139
          %s141 = sshll.u32 [#allocation2], 4
          %s142 = int_to_ptr.vmem [resolvable:$true] %s141
          %147 = dma.hbm_to_vmem [thread:$0]  %s1, 1024, %s142, [#allocation3], 128, 128, 8
        $region16: #{lstm_linear_forward.3} parent=11 // pred_fallthru
          _
        // Predicated region
        $region17: #{lstm_linear_forward.3} parent=11 // pred_check
          %p148 = pneg %p92
        $region18: #{lstm_linear_forward.3} parent=11 // pred_check_branch
          %150 = sbr.rel (%p148) target = $region20
        $region19: #{lstm_linear_forward.3} parent=11 // pred_region
          _
        $region20: #{lstm_linear_forward.3} parent=11 // pred_fallthru
          _
      $region12: #{lstm_linear_forward.3} parent=5 // pred_fallthru
        _
      %p151 = scmp.lt.s32.totalorder %s10, 2
      // Predicated region
      $region21: #{lstm_linear_forward.3} parent=5 // pred_check
        %p152 = pneg %p151
      $region22: #{lstm_linear_forward.3} parent=5 // pred_check_branch
        %154 = sbr.rel (%p152) target = $region24
      $region23: #{lstm_linear_forward.3} parent=5 // pred_region
        // Predicated region
        $region25: #{lstm_linear_forward.3} parent=23 // pred_check
          %p155 = pneg %p44
        $region26: #{lstm_linear_forward.3} parent=23 // pred_check_branch
          %157 = sbr.rel (%p155) target = $region28
        $region27: #{lstm_linear_forward.3} parent=23 // pred_region
          %p158 = scmp.lt.s32.totalorder %s17, 1
          %s159 = scalar_select %p158, %s17, 1
          %p160 = scmp.lt.s32.totalorder %s18, 0
          %s161 = scalar_select %p160, %s18, 0
          %s162 = sadd.s32 %s161, %s159
          %s163 = smul.addr %s162, 8
          %s164 = scalar_lea.vmem %s0, %s163
        $region28: #{lstm_linear_forward.3} parent=23 // pred_fallthru
          _
      $region24: #{lstm_linear_forward.3} parent=5 // pred_fallthru
        _
      %p165 = scmp.le.s32.totalorder 1, %s10
      %p166 = scmp.lt.s32.totalorder %s10, 3
      %p167 = pnand %p165, %p166
      %p168 = pneg %p167
      // Predicated region
      $region29: #{lstm_linear_forward.3} parent=5 // pred_check
        _
      $region30: #{lstm_linear_forward.3} parent=5 // pred_check_branch
        %170 = sbr.rel (%p167) target = $region32
      $region31: #{lstm_linear_forward.3} parent=5 // pred_region
        %s171 = ssub.s32 %s10, 1
        // Predicated region
        $region33: #{lstm_linear_forward.3} parent=31 // pred_check
          %p172 = pneg %p71
        $region34: #{lstm_linear_forward.3} parent=31 // pred_check_branch
          %174 = sbr.rel (%p172) target = $region36
        $region35: #{lstm_linear_forward.3} parent=31 // pred_region
          %175 = dma.done [#allocation3], 1024
        $region36: #{lstm_linear_forward.3} parent=31 // pred_fallthru
          _
        %p176 = scmp.lt.s32.totalorder %s19, 1
        %s177 = scalar_select %p176, %s19, 1
        %p178 = scmp.lt.s32.totalorder %s20, 0
        %s179 = scalar_select %p178, %s20, 0
        %s180 = sadd.s32 %s179, %s177
        %s181 = smul.addr %s180, 8
        %s182 = scalar_lea.vmem %s0, %s181
        %p183 = pneg %p50
        %p184 = pneg %p47
        %p185 = pneg %p71
        %p186 = pneg %p68
        %p187 = pneg %p92
        %p188 = pneg %p89
        %p189 = pneg %p120
        %p190 = pneg %p117
        %p191 = scmp.lt.s32.totalorder %s19, 1
        %s192 = scalar_select %p191, %s19, 1
        %p193 = scmp.lt.s32.totalorder %s20, 0
        %s194 = scalar_select %p193, %s20, 0
        %s195 = smul.addr %s194, 2
        %s196 = smul.addr %s192, 2
        %s197 = sadd.s32 %s195, %s196
        %s198 = smul.addr %s197, 4
        %s199 = scalar_lea.vmem %s3, %s198
        %p200 = scmp.lt.s32.totalorder %s19, 1
        %s201 = scalar_select %p200, %s19, 1
        %p202 = scmp.lt.s32.totalorder %s20, 0
        %s203 = scalar_select %p202, %s20, 0
        %s204 = sadd.s32 %s203, %s201
        %s205 = smul.addr %s204, 8
        %s206 = scalar_lea.vmem %s0, %s205
        %p207 = scmp.lt.s32.totalorder %s19, 1
        %s208 = scalar_select %p207, %s19, 1
        %p209 = scmp.lt.s32.totalorder %s20, 0
        %s210 = scalar_select %p209, %s20, 0
        %s211 = smul.addr %s210, 2
        %s212 = smul.addr %s208, 2
        %s213 = sadd.s32 %s211, %s212
        %s214 = smul.addr %s213, 4
        %s215 = scalar_lea.vmem %s3, %s214
        %v217 = vld [vmem:[%s206] sm:$0xff]
        %v218 = vpack.c.bf16 %v217, %v217
        %v219 = vld [vmem:[#allocation2] sm:$0xff]
        %v220 = vld [vmem:[#allocation2 + $0x8] sm:$0xff]
        %v221 = vld [vmem:[#allocation2 + $0x10] sm:$0xff]
        %v222 = vld [vmem:[#allocation2 + $0x18] sm:$0xff]
        %v223 = vld [vmem:[#allocation2 + $0x20] sm:$0xff]
        %v224 = vld [vmem:[#allocation2 + $0x28] sm:$0xff]
        %v225 = vld [vmem:[#allocation2 + $0x30] sm:$0xff]
        %v226 = vld [vmem:[#allocation2 + $0x38] sm:$0xff]
        %v227 = vld [vmem:[%s2] sm:$0x3]
        %v229 = vlaneseq
        %v230 = vshrl.u32 %v229, 7
        %v231 = vsub.s32 0, %v230
        %v232 = vrot.slane %v227, %v231
        %v233 = vlaneseq
        %v234 = vshrl.u32 %v233, 7
        %v235 = vsub.s32 1, %v234
        %v236 = vrot.slane %v227, %v235
        %v247 = vunpack.c.l.b16 %v219
        %v248 = vunpack.c.h.b16 %v219
        %v249 = vunpack.c.l.b16 %v220
        %v250 = vunpack.c.h.b16 %v220
        %v251 = vunpack.c.l.b16 %v221
        %v252 = vunpack.c.h.b16 %v221
        %v253 = vunpack.c.l.b16 %v222
        %v254 = vunpack.c.h.b16 %v222
        %v255 = vunpack.c.l.b16 %v223
        %v256 = vunpack.c.h.b16 %v223
        %v257 = vunpack.c.l.b16 %v224
        %v258 = vunpack.c.h.b16 %v224
        %v259 = vunpack.c.l.b16 %v225
        %v260 = vunpack.c.h.b16 %v225
        %v261 = vunpack.c.l.b16 %v226
        %v262 = vunpack.c.h.b16 %v226
        %v263 = vpack.c.b16 %v249, %v247
        %v264 = vpack.c.b16 %v250, %v248
        %v265 = vpack.c.b16 %v253, %v251
        %v266 = vpack.c.b16 %v254, %v252
        %v267 = vpack.c.b16 %v257, %v255
        %v268 = vpack.c.b16 %v258, %v256
        %v269 = vpack.c.b16 %v261, %v259
        %v270 = vpack.c.b16 %v262, %v260
        %vm279 = vcmask 523264
        %v281 = vsel %vm279, %v218, 0
        %283 = vmatprep.subr.bf16.mxu0 %v264
        %284 = vmatpush1.bf16.msra.mxu0 %v263
        %285 = vmatprep.subr.bf16.mxu0 %v266
        %286 = vmatpush1.bf16.msra.mxu0 %v265
        %287 = vmatprep.subr.bf16.mxu0 %v268
        %288 = vmatpush1.bf16.msra.mxu0 %v267
        %289 = vmatprep.subr.bf16.mxu0 %v270
        %290 = vmatpush1.bf16.msra.mxu0 %v269
        %291 = vmatprep.subr.bf16.mxu0 0
        %292 = vmatpush1.bf16.msra.mxu0 0
        %293 = vmatprep.subr.bf16.mxu0 0
        %294 = vmatpush1.bf16.msra.mxu0 0
        %295 = vmatprep.subr.bf16.mxu0 0
        %296 = vmatpush1.bf16.msra.mxu0 0
        %297 = vmatprep.subr.bf16.mxu0 0
        %298 = vmatpush1.bf16.msra.mxu0 0
        %299 = vmatprep.subr.bf16.mxu0 0
        %300 = vmatpush1.bf16.msra.mxu0 0
        %301 = vmatprep.subr.bf16.mxu0 0
        %302 = vmatpush1.bf16.msra.mxu0 0
        %303 = vmatprep.subr.bf16.mxu0 0
        %304 = vmatpush1.bf16.msra.mxu0 0
        %305 = vmatprep.subr.bf16.mxu0 0
        %306 = vmatpush1.bf16.msra.mxu0 0
        %307 = vmatprep.subr.bf16.mxu0 0
        %308 = vmatpush1.bf16.msra.mxu0 0
        %309 = vmatprep.subr.bf16.mxu0 0
        %310 = vmatpush1.bf16.msra.mxu0 0
        %311 = vmatprep.subr.bf16.mxu0 0
        %312 = vmatpush1.bf16.msra.mxu0 0
        %313 = vmatprep.subr.bf16.mxu0 0
        %314 = vmatpush1.bf16.msra.mxu0 0
        %315 = vmatprep.mubr.bf16.mxu0 0
        %316 = vmatmul.mubr.bf16.gmra.mrb[0].mxu0 %v281
        %v317 = vpop.f32.mrb[0].mxu0
        %v318 = vadd.f32 %v232, %v317
        %v319 = vpop.f32.mrb[0].mxu0
        %v320 = vadd.f32 %v236, %v319
        %v321 = vpop.f32.mrb[0].mxu0
        %v322 = vpop.f32.mrb[0].mxu0
        %323 = vdwg.mxu0
        %v324 = vpack.c.bf16 %v318, %v318
        %v325 = vpack.c.bf16 %v320, %v320
        %v328 = vunpack.c.l.b16 %v324
        %v329 = vunpack.c.l.b16 %v325
        %v330 = vpack.c.b16 %v329, %v328
        %332 = vst [vmem:[%s215] sm:$0xff] %v330
        %p333 = scmp.lt.s32.totalorder %s19, 1
        %s334 = scalar_select %p333, %s19, 1
        %p335 = scmp.lt.s32.totalorder %s20, 0
        %s336 = scalar_select %p335, %s20, 0
        %s337 = smul.addr %s336, 2
        %s338 = smul.addr %s334, 2
        %s339 = sadd.s32 %s337, %s338
        %s340 = smul.addr %s339, 4
        %s341 = scalar_lea.vmem %s3, %s340
        // Predicated region
        $region37: #{lstm_linear_forward.3} parent=31 // pred_check
          %p342 = pneg %p117
        $region38: #{lstm_linear_forward.3} parent=31 // pred_check_branch
          %344 = sbr.rel (%p342) target = $region40
        $region39: #{lstm_linear_forward.3} parent=31 // pred_region
          _
        $region40: #{lstm_linear_forward.3} parent=31 // pred_fallthru
          _
      $region32: #{lstm_linear_forward.3} parent=5 // pred_fallthru
        _
      %p345 = scmp.le.s32.totalorder 2, %s10
      // Predicated region
      $region41: #{lstm_linear_forward.3} parent=5 // pred_check
        %p346 = pneg %p345
      $region42: #{lstm_linear_forward.3} parent=5 // pred_check_branch
        %348 = sbr.rel (%p346) target = $region44
      $region43: #{lstm_linear_forward.3} parent=5 // pred_region
        %s349 = ssub.s32 %s10, 2
        // Predicated region
        $region45: #{lstm_linear_forward.3} parent=43 // pred_check
          %p350 = pneg %p123
        $region46: #{lstm_linear_forward.3} parent=43 // pred_check_branch
          %352 = sbr.rel (%p350) target = $region48
        $region47: #{lstm_linear_forward.3} parent=43 // pred_region
          %p353 = scmp.lt.s32.totalorder %s21, 1
          %s354 = scalar_select %p353, %s21, 1
          %p355 = scmp.lt.s32.totalorder %s22, 0
          %s356 = scalar_select %p355, %s22, 0
          %s357 = smul.addr %s356, 2
          %s358 = smul.addr %s354, 2
          %s359 = sadd.s32 %s357, %s358
          %s360 = smul.addr %s359, 4
          %s361 = scalar_lea.vmem %s3, %s360
        $region48: #{lstm_linear_forward.3} parent=43 // pred_fallthru
          _
      $region44: #{lstm_linear_forward.3} parent=5 // pred_fallthru
        _
    $region6: #{lstm_linear_forward.3} parent=1 // loop_footer
      %s14 = sadd.s32 1, %s10
    $region7: #{lstm_linear_forward.3} parent=1 // loop_footer_branch
      %9 = sbr.rel target = $region3
    $region8: #{lstm_linear_forward.3} parent=1 // loop_exit
      _
    %362 = vsyncpa [#allocation3], 1
    %s363 = scalar_lea.sflag [#allocation3], 1
    %364 = vsyncpa %s363, 1

// kernel: lstm_linear_forward.4
$region0: #{lstm_linear_forward.4}
  #allocation0 [shape = 'u32[]', space=smem, size = 0x4, offset = 0x4, fixed_abs, tag = 'smem constant byte address 0x4 - core index']
  #allocation1 [shape = 'u32[144,128]{1,0:T(1,128)}', space=vmem, size = 0x12000, scoped, tag = 'internal scratch']
  #allocation2 [shape = 'f32[2,2,32]{2,1,0:T(2,128)}', space=vmem, size = 0x800, scoped, tag = 'scratch operand']
  #allocation3 [shape = 'f32[2,2,32]{2,1,0:T(2,128)}', space=vmem, size = 0x800, scoped, tag = 'scratch operand']
  %s0 = inlined_call_operand.vmem [shape: s32[2,1], index: 0, kind: input, shape index: {}]
  %s1 = inlined_call_operand.vmem [shape: bf16[2,8,256], index: 1, kind: input, shape index: {}, may-alias: {1,2}]
  %s2 = inlined_call_operand.vmem [shape: bf16[2,8,256], index: 2, kind: input, shape index: {}, may-alias: {1,2}]
  %s3 = inlined_call_operand.vmem [shape: bf16[2,32,128], index: 3, kind: input, shape index: {}]
  %s4 = inlined_call_operand.vmem [shape: bf16[2,8,32], index: 4, kind: output, shape index: {0}]
  %s5 = inlined_call_operand.vmem [shape: bf16[2,8,32], index: 5, kind: output, shape index: {1}]
  %6 = xla_tuple %s4, %s5
  %s7 = sld [smem:[#allocation0]]
  $region120: #{lstm_linear_forward.4} parent=0
    _
  %s9 = ssub.s32 1, %s7
  %s10 = scalar_select 0, %s9, %s7
  $region1: #{lstm_linear_forward.4} parent=0
    #allocation4 [shape = 'u8[4096]{0}', space=vmem, size = 0x1000, scoped, tag = 'input window, operand 1, single buffered']
    #allocation5 [shape = 'u8[4096]{0}', space=vmem, size = 0x1000, scoped, tag = 'input window, operand 2, single buffered']
    // Predicated region
    $region2: #{lstm_linear_forward.4} parent=1 // pred_check
      _
    $region3: #{lstm_linear_forward.4} parent=1 // pred_check_branch
      %12 = sbr.rel (0) target = $region5
    $region4: #{lstm_linear_forward.4} parent=1 // pred_region
      _
    $region5: #{lstm_linear_forward.4} parent=1 // pred_fallthru
      _
    // Predicated region
    $region6: #{lstm_linear_forward.4} parent=1 // pred_check
      _
    $region7: #{lstm_linear_forward.4} parent=1 // pred_check_branch
      %14 = sbr.rel (0) target = $region9
    $region8: #{lstm_linear_forward.4} parent=1 // pred_region
      // Predicated region
      $region10: #{lstm_linear_forward.4} parent=8 // pred_check
        _
      $region11: #{lstm_linear_forward.4} parent=8 // pred_check_branch
        %16 = sbr.rel (0) target = $region13
      $region12: #{lstm_linear_forward.4} parent=8 // pred_region
        // Predicated region
        $region14: #{lstm_linear_forward.4} parent=12 // pred_check
          _
        $region15: #{lstm_linear_forward.4} parent=12 // pred_check_branch
          %18 = sbr.rel target = $region17
        $region16: #{lstm_linear_forward.4} parent=12 // pred_region
          // Predicated region
          $region29: #{lstm_linear_forward.4} parent=16 // pred_check
            _
          $region30: #{lstm_linear_forward.4} parent=16 // pred_check_branch
            %35 = sbr.rel (0) target = $region32
          $region31: #{lstm_linear_forward.4} parent=16 // pred_region
            loop: start=0, step=1, limit=1
            $region33: #{lstm_linear_forward.4} parent=31 // loop_pre_header
              _
            $region34: #{lstm_linear_forward.4} parent=31 // loop_header
              %s37 = sphi 0, %s41
              %p38 = scmp.ge.s32.totalorder %s37, 1
              %s42 = sphi %s1, %s1
              %s43 = sphi [#allocation4], [#allocation4]
            $region35: #{lstm_linear_forward.4} parent=31 // loop_header_branch
              %40 = sbr.rel (%p38) target = $region39
            $region36: #{lstm_linear_forward.4} parent=31 // loop_body
              _
            $region37: #{lstm_linear_forward.4} parent=31 // loop_footer
              %s41 = sadd.s32 1, %s37
            $region38: #{lstm_linear_forward.4} parent=31 // loop_footer_branch
              %36 = sbr.rel target = $region34
            $region39: #{lstm_linear_forward.4} parent=31 // loop_exit
              _
            loop: start=0, step=1, limit=1
            $region40: #{lstm_linear_forward.4} parent=31 // loop_pre_header
              _
            $region41: #{lstm_linear_forward.4} parent=31 // loop_header
              %s46 = sphi 0, %s50
              %p47 = scmp.ge.s32.totalorder %s46, 1
              %s51 = sphi %s1, %s1
              %s52 = sphi [#allocation4], [#allocation4]
            $region42: #{lstm_linear_forward.4} parent=31 // loop_header_branch
              %49 = sbr.rel (%p47) target = $region46
            $region43: #{lstm_linear_forward.4} parent=31 // loop_body
              %v53 = vld [vmem:[%s51] sm:$0xf]
              %54 = vst [vmem:[%s52] sm:$0xf] %v53
              %v55 = vld [vmem:[%s51 + $0x8] sm:$0xf]
              %56 = vst [vmem:[%s52 + $0x4] sm:$0xf] %v55
            $region44: #{lstm_linear_forward.4} parent=31 // loop_footer
              %s50 = sadd.s32 1, %s46
            $region45: #{lstm_linear_forward.4} parent=31 // loop_footer_branch
              %45 = sbr.rel target = $region41
            $region46: #{lstm_linear_forward.4} parent=31 // loop_exit
              _
          $region32: #{lstm_linear_forward.4} parent=16 // pred_fallthru
            _
        $region17: #{lstm_linear_forward.4} parent=12 // pred_fallthru
          _
        // Predicated region
        $region18: #{lstm_linear_forward.4} parent=12 // pred_check
          _
        $region19: #{lstm_linear_forward.4} parent=12 // pred_check_branch
          %20 = sbr.rel (0) target = $region21
        $region20: #{lstm_linear_forward.4} parent=12 // pred_region
          loop: start=0, step=1, limit=1
          $region22: #{lstm_linear_forward.4} parent=20 // loop_pre_header
            _
          $region23: #{lstm_linear_forward.4} parent=20 // loop_header
            %s23 = sphi 0, %s27
            %p24 = scmp.ge.s32.totalorder %s23, 1
            %s28 = sphi %s1, %s1
            %s29 = sphi [#allocation4], [#allocation4]
          $region24: #{lstm_linear_forward.4} parent=20 // loop_header_branch
            %26 = sbr.rel (%p24) target = $region28
          $region25: #{lstm_linear_forward.4} parent=20 // loop_body
            %v30 = vld [vmem:[%s28] sm:$0xf]
            %31 = vst [vmem:[%s29] sm:$0xf] %v30
            %v32 = vld [vmem:[%s28 + $0x8] sm:$0xf]
            %33 = vst [vmem:[%s29 + $0x4] sm:$0xf] %v32
          $region26: #{lstm_linear_forward.4} parent=20 // loop_footer
            %s27 = sadd.s32 1, %s23
          $region27: #{lstm_linear_forward.4} parent=20 // loop_footer_branch
            %22 = sbr.rel target = $region23
          $region28: #{lstm_linear_forward.4} parent=20 // loop_exit
            _
        $region21: #{lstm_linear_forward.4} parent=12 // pred_fallthru
          _
      $region13: #{lstm_linear_forward.4} parent=8 // pred_fallthru
        _
      %57 = vnop
    $region9: #{lstm_linear_forward.4} parent=1 // pred_fallthru
      _
    // Predicated region
    $region47: #{lstm_linear_forward.4} parent=1 // pred_check
      _
    $region48: #{lstm_linear_forward.4} parent=1 // pred_check_branch
      %59 = sbr.rel (0) target = $region50
    $region49: #{lstm_linear_forward.4} parent=1 // pred_region
      %s60 = ssub.s32 0, 0
      %s61 = smul.addr %s60, 2
      %s62 = sadd.s32 1, %s61
      %s63 = smul.addr %s62, 4
      %s64 = scalar_lea.vmem %s2, %s63
      // Predicated region
      $region51: #{lstm_linear_forward.4} parent=49 // pred_check
        _
      $region52: #{lstm_linear_forward.4} parent=49 // pred_check_branch
        %66 = sbr.rel (0) target = $region54
      $region53: #{lstm_linear_forward.4} parent=49 // pred_region
        // Predicated region
        $region55: #{lstm_linear_forward.4} parent=53 // pred_check
          _
        $region56: #{lstm_linear_forward.4} parent=53 // pred_check_branch
          %68 = sbr.rel target = $region58
        $region57: #{lstm_linear_forward.4} parent=53 // pred_region
          // Predicated region
          $region70: #{lstm_linear_forward.4} parent=57 // pred_check
            _
          $region71: #{lstm_linear_forward.4} parent=57 // pred_check_branch
            %85 = sbr.rel (0) target = $region73
          $region72: #{lstm_linear_forward.4} parent=57 // pred_region
            loop: start=0, step=1, limit=1
            $region74: #{lstm_linear_forward.4} parent=72 // loop_pre_header
              _
            $region75: #{lstm_linear_forward.4} parent=72 // loop_header
              %s87 = sphi 0, %s91
              %p88 = scmp.ge.s32.totalorder %s87, 1
              %s92 = sphi %s64, %s64
              %s93 = sphi [#allocation5], [#allocation5]
            $region76: #{lstm_linear_forward.4} parent=72 // loop_header_branch
              %90 = sbr.rel (%p88) target = $region80
            $region77: #{lstm_linear_forward.4} parent=72 // loop_body
              _
            $region78: #{lstm_linear_forward.4} parent=72 // loop_footer
              %s91 = sadd.s32 1, %s87
            $region79: #{lstm_linear_forward.4} parent=72 // loop_footer_branch
              %86 = sbr.rel target = $region75
            $region80: #{lstm_linear_forward.4} parent=72 // loop_exit
              _
            loop: start=0, step=1, limit=1
            $region81: #{lstm_linear_forward.4} parent=72 // loop_pre_header
              _
            $region82: #{lstm_linear_forward.4} parent=72 // loop_header
              %s96 = sphi 0, %s100
              %p97 = scmp.ge.s32.totalorder %s96, 1
              %s101 = sphi %s64, %s64
              %s102 = sphi [#allocation5], [#allocation5]
            $region83: #{lstm_linear_forward.4} parent=72 // loop_header_branch
              %99 = sbr.rel (%p97) target = $region87
            $region84: #{lstm_linear_forward.4} parent=72 // loop_body
              %v103 = vld [vmem:[%s101] sm:$0xf]
              %104 = vst [vmem:[%s102] sm:$0xf] %v103
              %v105 = vld [vmem:[%s101 + $0x8] sm:$0xf]
              %106 = vst [vmem:[%s102 + $0x4] sm:$0xf] %v105
            $region85: #{lstm_linear_forward.4} parent=72 // loop_footer
              %s100 = sadd.s32 1, %s96
            $region86: #{lstm_linear_forward.4} parent=72 // loop_footer_branch
              %95 = sbr.rel target = $region82
            $region87: #{lstm_linear_forward.4} parent=72 // loop_exit
              _
          $region73: #{lstm_linear_forward.4} parent=57 // pred_fallthru
            _
        $region58: #{lstm_linear_forward.4} parent=53 // pred_fallthru
          _
        // Predicated region
        $region59: #{lstm_linear_forward.4} parent=53 // pred_check
          _
        $region60: #{lstm_linear_forward.4} parent=53 // pred_check_branch
          %70 = sbr.rel (0) target = $region62
        $region61: #{lstm_linear_forward.4} parent=53 // pred_region
          loop: start=0, step=1, limit=1
          $region63: #{lstm_linear_forward.4} parent=61 // loop_pre_header
            _
          $region64: #{lstm_linear_forward.4} parent=61 // loop_header
            %s73 = sphi 0, %s77
            %p74 = scmp.ge.s32.totalorder %s73, 1
            %s78 = sphi %s64, %s64
            %s79 = sphi [#allocation5], [#allocation5]
          $region65: #{lstm_linear_forward.4} parent=61 // loop_header_branch
            %76 = sbr.rel (%p74) target = $region69
          $region66: #{lstm_linear_forward.4} parent=61 // loop_body
            %v80 = vld [vmem:[%s78] sm:$0xf]
            %81 = vst [vmem:[%s79] sm:$0xf] %v80
            %v82 = vld [vmem:[%s78 + $0x8] sm:$0xf]
            %83 = vst [vmem:[%s79 + $0x4] sm:$0xf] %v82
          $region67: #{lstm_linear_forward.4} parent=61 // loop_footer
            %s77 = sadd.s32 1, %s73
          $region68: #{lstm_linear_forward.4} parent=61 // loop_footer_branch
            %72 = sbr.rel target = $region64
          $region69: #{lstm_linear_forward.4} parent=61 // loop_exit
            _
        $region62: #{lstm_linear_forward.4} parent=53 // pred_fallthru
          _
      $region54: #{lstm_linear_forward.4} parent=49 // pred_fallthru
        _
      %107 = vnop
    $region50: #{lstm_linear_forward.4} parent=1 // pred_fallthru
      _
    // Predicated region
    $region88: #{lstm_linear_forward.4} parent=1 // pred_check
      _
    $region89: #{lstm_linear_forward.4} parent=1 // pred_check_branch
      %109 = sbr.rel (0) target = $region91
    $region90: #{lstm_linear_forward.4} parent=1 // pred_region
      _
    $region91: #{lstm_linear_forward.4} parent=1 // pred_fallthru
      _
    // Predicated region
    $region92: #{lstm_linear_forward.4} parent=1 // pred_check
      _
    $region93: #{lstm_linear_forward.4} parent=1 // pred_check_branch
      %111 = sbr.rel (0) target = $region95
    $region94: #{lstm_linear_forward.4} parent=1 // pred_region
      _
    $region95: #{lstm_linear_forward.4} parent=1 // pred_fallthru
      _
    // Predicated region
    $region96: #{lstm_linear_forward.4} parent=1 // pred_check
      _
    $region97: #{lstm_linear_forward.4} parent=1 // pred_check_branch
      %113 = sbr.rel (0) target = $region99
    $region98: #{lstm_linear_forward.4} parent=1 // pred_region
      _
    $region99: #{lstm_linear_forward.4} parent=1 // pred_fallthru
      _
    %s114 = ssub.s32 0, 0
    %p115 = scmp.lt.s32.totalorder %s114, 0
    %s116 = scalar_select %p115, %s114, 0
    %s117 = smul.addr %s116, 4
    %s118 = scalar_lea.vmem %s5, %s117
    %s119 = ssub.s32 0, 0
    %s120 = ssub.s32 0, 0
    %p121 = scmp.lt.s32.totalorder %s120, 0
    %s122 = scalar_select %p121, %s120, 0
    %s123 = smul.addr %s122, 4
    %s124 = scalar_lea.vmem %s5, %s123
    %s125 = ssub.s32 0, 0
    %p127 = scmp.eq.s32.totalorder 0, 0
    // Predicated region
    $region100: #{lstm_linear_forward.4} parent=1 // pred_check
      %p128 = pneg %p127
    $region101: #{lstm_linear_forward.4} parent=1 // pred_check_branch
      %130 = sbr.rel (%p128) target = $region103
    $region102: #{lstm_linear_forward.4} parent=1 // pred_region
      %vm131 = vcmask 254976
      %132 = vst.msk [vmem:[#allocation2] sm:$0x3] %vm131, 0.0
      %133 = vst.msk [vmem:[#allocation2 + $0x2] sm:$0x3] %vm131, 0.0
      %134 = vst.msk [vmem:[#allocation3] sm:$0x3] %vm131, 0.0
      %135 = vst.msk [vmem:[#allocation3 + $0x2] sm:$0x3] %vm131, 0.0
    $region103: #{lstm_linear_forward.4} parent=1 // pred_fallthru
      _
    %v136 = vld [vmem:[%s0] sm:$0x3]
    %s137 = smul.u32 0, 8
    %s138 = ssub.s32 0, 0
    %s139 = smul.u32 %s138, 8
    %v140 = vld [vmem:[%s3] sm:$0xf]
    %v141 = vld [vmem:[%s3 + $0x4] sm:$0xf]
    %v142 = vld [vmem:[%s3 + $0x8] sm:$0xf]
    %v143 = vld [vmem:[%s3 + $0xc] sm:$0xf]
    %s144 = scalar_lea.vmem %s3, 16
    %v145 = vld [vmem:[%s144] sm:$0xf]
    %v146 = vld [vmem:[%s144 + $0x4] sm:$0xf]
    %v147 = vld [vmem:[%s144 + $0x8] sm:$0xf]
    %v148 = vld [vmem:[%s144 + $0xc] sm:$0xf]
    %v149 = vld [vmem:[#allocation2] sm:$0x3]
    %v150 = vld [vmem:[#allocation3] sm:$0x3]
    %s151 = scalar_lea.vmem [#allocation2], 2
    %v152 = vld [vmem:[%s151] sm:$0x3]
    %s153 = scalar_lea.vmem [#allocation3], 2
    %v154 = vld [vmem:[%s153] sm:$0x3]
    %v155 = vld [vmem:[#allocation4] sm:$0x1]
    %v156 = vld [vmem:[#allocation4 + $0x4] sm:$0x1]
    %v157 = vunpack.c.l.bf16 %v155
    %v158 = vunpack.c.l.bf16 %v156
    %v159 = vpack.c.bf16 %v149, %v149
    %v164 = vunpack.c.l.b16 %v140
    %v165 = vunpack.c.l.b16 %v141
    %v166 = vunpack.c.l.b16 %v142
    %v167 = vunpack.c.l.b16 %v143
    %v168 = vpack.c.b16 %v165, %v164
    %v169 = vpack.c.b16 %v167, %v166
    %vm172 = vcmask 261120
    %v174 = vsel %vm172, %v159, 0
    %176 = vmatprep.subr.bf16.mxu0 0
    %177 = vmatpush1.bf16.msra.mxu0 %v168
    %178 = vmatprep.subr.bf16.mxu0 0
    %179 = vmatpush1.bf16.msra.mxu0 %v169
    %180 = vmatprep.subr.bf16.mxu0 0
    %181 = vmatpush1.bf16.msra.mxu0 0
    %182 = vmatprep.subr.bf16.mxu0 0
    %183 = vmatpush1.bf16.msra.mxu0 0
    %184 = vmatprep.subr.bf16.mxu0 0
    %185 = vmatpush1.bf16.msra.mxu0 0
    %186 = vmatprep.subr.bf16.mxu0 0
    %187 = vmatpush1.bf16.msra.mxu0 0
    %188 = vmatprep.subr.bf16.mxu0 0
    %189 = vmatpush1.bf16.msra.mxu0 0
    %190 = vmatprep.subr.bf16.mxu0 0
    %191 = vmatpush1.bf16.msra.mxu0 0
    %192 = vmatprep.subr.bf16.mxu0 0
    %193 = vmatpush1.bf16.msra.mxu0 0
    %194 = vmatprep.subr.bf16.mxu0 0
    %195 = vmatpush1.bf16.msra.mxu0 0
    %196 = vmatprep.subr.bf16.mxu0 0
    %197 = vmatpush1.bf16.msra.mxu0 0
    %198 = vmatprep.subr.bf16.mxu0 0
    %199 = vmatpush1.bf16.msra.mxu0 0
    %200 = vmatprep.subr.bf16.mxu0 0
    %201 = vmatpush1.bf16.msra.mxu0 0
    %202 = vmatprep.subr.bf16.mxu0 0
    %203 = vmatpush1.bf16.msra.mxu0 0
    %204 = vmatprep.subr.bf16.mxu0 0
    %205 = vmatpush1.bf16.msra.mxu0 0
    %206 = vmatprep.subr.bf16.mxu0 0
    %207 = vmatpush1.bf16.msra.mxu0 0
    %208 = vmatprep.mubr.bf16.mxu0 0
    %209 = vmatmul.mubr.bf16.gmra.mrb[0].mxu0 %v174
    %v210 = vpop.f32.mrb[0].mxu0
    %v211 = vadd.f32 0.0, %v210
    %v212 = vpop.f32.mrb[0].mxu0
    %v213 = vpop.f32.mrb[0].mxu0
    %v214 = vpop.f32.mrb[0].mxu0
    %215 = vdwg.mxu0
    %v217 = vrot.slane %v211, 1
    %v220 = vadd.f32 %v157, %v211
    %v221 = vadd.f32 %v158, %v217
    %v222 = vld [vmem:[#allocation5] sm:$0x8]
    %v223 = vld [vmem:[#allocation5 + $0x4] sm:$0x8]
    %v224 = vunpack.c.l.bf16 %v222
    %v225 = vunpack.c.l.bf16 %v223
    %v226 = vpack.c.bf16 %v152, %v152
    %v231 = vunpack.c.l.b16 %v145
    %v232 = vunpack.c.l.b16 %v146
    %v233 = vunpack.c.l.b16 %v147
    %v234 = vunpack.c.l.b16 %v148
    %v235 = vpack.c.b16 %v232, %v231
    %v236 = vpack.c.b16 %v234, %v233
    %v240 = vsel %vm172, %v226, 0
    %242 = vmatprep.subr.bf16.mxu0 0
    %243 = vmatpush1.bf16.msra.mxu0 %v235
    %244 = vmatprep.subr.bf16.mxu0 0
    %245 = vmatpush1.bf16.msra.mxu0 %v236
    %246 = vmatprep.subr.bf16.mxu0 0
    %247 = vmatpush1.bf16.msra.mxu0 0
    %248 = vmatprep.subr.bf16.mxu0 0
    %249 = vmatpush1.bf16.msra.mxu0 0
    %250 = vmatprep.subr.bf16.mxu0 0
    %251 = vmatpush1.bf16.msra.mxu0 0
    %252 = vmatprep.subr.bf16.mxu0 0
    %253 = vmatpush1.bf16.msra.mxu0 0
    %254 = vmatprep.subr.bf16.mxu0 0
    %255 = vmatpush1.bf16.msra.mxu0 0
    %256 = vmatprep.subr.bf16.mxu0 0
    %257 = vmatpush1.bf16.msra.mxu0 0
    %258 = vmatprep.subr.bf16.mxu0 0
    %259 = vmatpush1.bf16.msra.mxu0 0
    %260 = vmatprep.subr.bf16.mxu0 0
    %261 = vmatpush1.bf16.msra.mxu0 0
    %262 = vmatprep.subr.bf16.mxu0 0
    %263 = vmatpush1.bf16.msra.mxu0 0
    %264 = vmatprep.subr.bf16.mxu0 0
    %265 = vmatpush1.bf16.msra.mxu0 0
    %266 = vmatprep.subr.bf16.mxu0 0
    %267 = vmatpush1.bf16.msra.mxu0 0
    %268 = vmatprep.subr.bf16.mxu0 0
    %269 = vmatpush1.bf16.msra.mxu0 0
    %270 = vmatprep.subr.bf16.mxu0 0
    %271 = vmatpush1.bf16.msra.mxu0 0
    %272 = vmatprep.subr.bf16.mxu0 0
    %273 = vmatpush1.bf16.msra.mxu0 0
    %274 = vmatprep.mubr.bf16.mxu0 0
    %275 = vmatmul.mubr.bf16.gmra.mrb[0].mxu0 %v240
    %v276 = vpop.f32.mrb[0].mxu0
    %v277 = vadd.f32 0.0, %v276
    %v278 = vpop.f32.mrb[0].mxu0
    %v279 = vpop.f32.mrb[0].mxu0
    %v280 = vpop.f32.mrb[0].mxu0
    %281 = vdwg.mxu0
    %v283 = vrot.slane %v277, 1
    %v284 = vrot.slane %v277, 2
    %v287 = vadd.f32 %v224, %v283
    %v288 = vadd.f32 %v225, %v284
    %v289 = vxor.u32 %v220, 2147483648
    %v290 = vxor.u32 %v221, 2147483648
    %v291 = vmul.f32 %v289, 1.442695
    %v292 = vpow.pop %v291
    %v293 = vmul.f32 %v290, 1.442695
    %v294 = vpow.pop %v293
    %v295 = vadd.f32 %v292, 1.0
    %v296 = vadd.f32 %v294, 1.0
    %v297 = vrcp.pop %v295
    %v298 = vmul.f32 1.0, %v297
    %v299 = vrcp.pop %v296
    %v300 = vmul.f32 1.0, %v299
    %v301 = vtanh.pop %v220
    %v302 = vtanh.pop %v221
    %v304 = vrot.slane %v150, 1
    %305 = vrot.lane.b32.xlu0 %v150, 32
    %v306 = vpop.permute.xlu0 %305
    %307 = vrot.lane.b32.xlu0 %v304, 32
    %v308 = vpop.permute.xlu0 %307
    %v311 = vmul.f32 %v298, %v306
    %v312 = vmul.f32 %v300, %v308
    %315 = vrot.lane.b32.xlu0 %v301, 64
    %v316 = vpop.permute.xlu0 %315
    %317 = vrot.lane.b32.xlu0 %v302, 64
    %v318 = vpop.permute.xlu0 %317
    %v321 = vmul.f32 %v298, %v316
    %v322 = vmul.f32 %v300, %v318
    %325 = vrot.lane.b32.xlu0 %v321, 32
    %v326 = vpop.permute.xlu0 %325
    %327 = vrot.lane.b32.xlu0 %v322, 32
    %v328 = vpop.permute.xlu0 %327
    %v331 = vadd.f32 %v311, %v326
    %v332 = vadd.f32 %v312, %v328
    %v333 = vtanh.pop %v331
    %v334 = vtanh.pop %v332
    %337 = vrot.lane.b32.xlu0 %v333, 64
    %v338 = vpop.permute.xlu0 %337
    %339 = vrot.lane.b32.xlu0 %v334, 64
    %v340 = vpop.permute.xlu0 %339
    %v343 = vmul.f32 %v298, %v338
    %v344 = vmul.f32 %v300, %v340
    %v345 = vxor.u32 %v287, 2147483648
    %v346 = vxor.u32 %v288, 2147483648
    %v347 = vmul.f32 %v345, 1.442695
    %v348 = vpow.pop %v347
    %v349 = vmul.f32 %v346, 1.442695
    %v350 = vpow.pop %v349
    %v351 = vadd.f32 %v348, 1.0
    %v352 = vadd.f32 %v350, 1.0
    %v353 = vrcp.pop %v351
    %v354 = vmul.f32 1.0, %v353
    %v355 = vrcp.pop %v352
    %v356 = vmul.f32 1.0, %v355
    %v357 = vtanh.pop %v287
    %v358 = vtanh.pop %v288
    %v360 = vrot.slane %v154, 1
    %v361 = vrot.slane %v154, 2
    %362 = vrot.lane.b32.xlu0 %v360, 32
    %v363 = vpop.permute.xlu0 %362
    %364 = vrot.lane.b32.xlu0 %v361, 32
    %v365 = vpop.permute.xlu0 %364
    %v368 = vmul.f32 %v354, %v363
    %v369 = vmul.f32 %v356, %v365
    %372 = vrot.lane.b32.xlu0 %v357, 64
    %v373 = vpop.permute.xlu0 %372
    %374 = vrot.lane.b32.xlu0 %v358, 64
    %v375 = vpop.permute.xlu0 %374
    %v378 = vmul.f32 %v354, %v373
    %v379 = vmul.f32 %v356, %v375
    %382 = vrot.lane.b32.xlu0 %v378, 32
    %v383 = vpop.permute.xlu0 %382
    %384 = vrot.lane.b32.xlu0 %v379, 32
    %v385 = vpop.permute.xlu0 %384
    %v388 = vadd.f32 %v368, %v383
    %v389 = vadd.f32 %v369, %v385
    %v390 = vtanh.pop %v388
    %v391 = vtanh.pop %v389
    %394 = vrot.lane.b32.xlu0 %v390, 64
    %v395 = vpop.permute.xlu0 %394
    %396 = vrot.lane.b32.xlu0 %v391, 64
    %v397 = vpop.permute.xlu0 %396
    %v400 = vmul.f32 %v354, %v395
    %v401 = vmul.f32 %v356, %v397
    %v402 = vstv %s137
    %vm403 = vcmp.lt.s32.totalorder %v402, %v136
    %s404 = sadd.s32 %s139, 7
    %v405 = vstv %s404
    %vm406 = vcmp.lt.s32.totalorder %v405, %v136
    %v407 = vsel %vm403, 1, 0
    %408 = vset.pattern.permute.xlu0 0
    %409 = vperm.xlu0 %408, %v407
    %v410 = vpop.permute.xlu0 %409
    %vm411 = vcmp.eq.s32.totalorder %v410, 1
    %v414 = vrot.slane %v344, 7
    %vm415 = vcmask 1041409
    %v416 = vsel %vm415, %v414, %v343
    %417 = vrot.lane.b32.xlu0 %v416, 32
    %v418 = vpop.permute.xlu0 %417
    %v420 = vsel %vm411, %v418, %v149
    %v423 = vrot.slane %v332, 7
    %v424 = vsel %vm415, %v423, %v331
    %425 = vrot.lane.b32.xlu0 %v424, 96
    %v426 = vpop.permute.xlu0 %425
    %v428 = vsel %vm411, %v426, %v150
    %v429 = vsel %vm406, 1, 0
    %430 = vset.pattern.permute.xlu0 0
    %431 = vperm.xlu0 %430, %v429
    %v432 = vpop.permute.xlu0 %431
    %vm433 = vcmp.eq.s32.totalorder %v432, 1
    %v436 = vrot.slane %v400, 7
    %v437 = vrot.slane %v401, 6
    %v438 = vsel %vm415, %v437, %v436
    %439 = vrot.lane.b32.xlu0 %v438, 32
    %v440 = vpop.permute.xlu0 %439
    %v442 = vsel %vm433, %v440, %v152
    %v445 = vrot.slane %v388, 7
    %v446 = vrot.slane %v389, 6
    %v447 = vsel %vm415, %v446, %v445
    %448 = vrot.lane.b32.xlu0 %v447, 96
    %v449 = vpop.permute.xlu0 %448
    %v451 = vsel %vm433, %v449, %v154
    %v452 = vsel %vm411, %v418, 0.0
    %v453 = vpack.c.bf16 %v452, %v452
    %v456 = vunpack.c.l.s4 1966171168
    %v457 = vunpack.c.0.s8 %v456
    %v458 = vlaneseq
    %v459 = vshrl.u32 %v458, 7
    %v460 = vsub.s32 %v457, %v459
    %v461 = vrot.slane %v453, %v460
    %v463 = vunpack.c.l.s4 1966171168
    %v464 = vunpack.c.0.s8 %v463
    %v465 = vlaneseq
    %v466 = vshrl.u32 %v465, 7
    %v467 = vsub.s32 %v464, %v466
    %v468 = vrot.slane %v461, %v467
    %v469 = vunpack.i.l.s16 %v468
    %v470 = vunpack.i.h.s16 %v468
    %v471 = vpack.i.b16 %v469, %v469
    %v472 = vpack.i.b16 %v470, %v470
    %v474 = vunpack.c.l.s4 286326784
    %v475 = vunpack.c.0.s8 %v474
    %v476 = vlaneseq
    %v477 = vshrl.u32 %v476, 7
    %v478 = vsub.s32 %v475, %v477
    %v479 = vrot.slane %v471, %v478
    %v481 = vunpack.c.l.s4 286326784
    %v482 = vunpack.c.0.s8 %v481
    %v483 = vlaneseq
    %v484 = vshrl.u32 %v483, 7
    %v485 = vsub.s32 %v482, %v484
    %v486 = vrot.slane %v472, %v485
    %vm489 = vcmask 253952
    %vm490 = vsmask.f32 256
    %vm491 = vmand %vm489, %vm490
    %v492 = vld [vmem:[%s4] sm:$0x1]
    %v493 = vsel %vm491, %v479, %v492
    %494 = vst [vmem:[%s4] sm:$0x1] %v493
    %v495 = vld [vmem:[%s4 + $0x4] sm:$0x1]
    %v496 = vsel %vm491, %v486, %v495
    %497 = vst [vmem:[%s4 + $0x4] sm:$0x1] %v496
    %v498 = vsel %vm433, %v440, 0.0
    %v499 = vpack.c.bf16 %v498, %v498
    %v502 = vunpack.c.l.s4 1966171168
    %v503 = vunpack.c.0.s8 %v502
    %v504 = vlaneseq
    %v505 = vshrl.u32 %v504, 7
    %v506 = vsub.s32 %v503, %v505
    %v507 = vrot.slane %v499, %v506
    %v509 = vunpack.c.l.s4 1966171168
    %v510 = vunpack.c.0.s8 %v509
    %v511 = vlaneseq
    %v512 = vshrl.u32 %v511, 7
    %v513 = vsub.s32 %v510, %v512
    %v514 = vrot.slane %v507, %v513
    %v515 = vunpack.i.l.s16 %v514
    %v516 = vunpack.i.h.s16 %v514
    %v517 = vpack.i.b16 %v515, %v515
    %v518 = vpack.i.b16 %v516, %v516
    %v520 = vunpack.c.l.s4 286326784
    %v521 = vunpack.c.0.s8 %v520
    %v522 = vlaneseq
    %v523 = vshrl.u32 %v522, 7
    %v524 = vsub.s32 %v521, %v523
    %v525 = vrot.slane %v517, %v524
    %v527 = vunpack.c.l.s4 286326784
    %v528 = vunpack.c.0.s8 %v527
    %v529 = vlaneseq
    %v530 = vshrl.u32 %v529, 7
    %v531 = vsub.s32 %v528, %v530
    %v532 = vrot.slane %v518, %v531
    %vm535 = vcmask 257027
    %vm536 = vsmask.f32 7950
    %vm537 = vmand %vm535, %vm536
    %v538 = vld [vmem:[%s124] sm:$0x8]
    %v539 = vsel %vm537, %v525, %v538
    %540 = vst [vmem:[%s124] sm:$0x8] %v539
    %v541 = vld [vmem:[%s124 + $0x4] sm:$0x8]
    %v542 = vsel %vm537, %v532, %v541
    %543 = vst [vmem:[%s124 + $0x4] sm:$0x8] %v542
    %v544 = vld [vmem:[#allocation4] sm:$0x1]
    %v545 = vld [vmem:[#allocation4 + $0x4] sm:$0x1]
    %v546 = vunpack.c.l.bf16 %v544
    %v547 = vunpack.c.l.bf16 %v545
    %v548 = vpack.c.bf16 %v420, %v420
    %v550 = vsel %vm172, %v548, 0
    %552 = vmatprep.subr.bf16.mxu0 0
    %553 = vmatpush1.bf16.msra.mxu0 %v168
    %554 = vmatprep.subr.bf16.mxu0 0
    %555 = vmatpush1.bf16.msra.mxu0 %v169
    %556 = vmatprep.subr.bf16.mxu0 0
    %557 = vmatpush1.bf16.msra.mxu0 0
    %558 = vmatprep.subr.bf16.mxu0 0
    %559 = vmatpush1.bf16.msra.mxu0 0
    %560 = vmatprep.subr.bf16.mxu0 0
    %561 = vmatpush1.bf16.msra.mxu0 0
    %562 = vmatprep.subr.bf16.mxu0 0
    %563 = vmatpush1.bf16.msra.mxu0 0
    %564 = vmatprep.subr.bf16.mxu0 0
    %565 = vmatpush1.bf16.msra.mxu0 0
    %566 = vmatprep.subr.bf16.mxu0 0
    %567 = vmatpush1.bf16.msra.mxu0 0
    %568 = vmatprep.subr.bf16.mxu0 0
    %569 = vmatpush1.bf16.msra.mxu0 0
    %570 = vmatprep.subr.bf16.mxu0 0
    %571 = vmatpush1.bf16.msra.mxu0 0
    %572 = vmatprep.subr.bf16.mxu0 0
    %573 = vmatpush1.bf16.msra.mxu0 0
    %574 = vmatprep.subr.bf16.mxu0 0
    %575 = vmatpush1.bf16.msra.mxu0 0
    %576 = vmatprep.subr.bf16.mxu0 0
    %577 = vmatpush1.bf16.msra.mxu0 0
    %578 = vmatprep.subr.bf16.mxu0 0
    %579 = vmatpush1.bf16.msra.mxu0 0
    %580 = vmatprep.subr.bf16.mxu0 0
    %581 = vmatpush1.bf16.msra.mxu0 0
    %582 = vmatprep.subr.bf16.mxu0 0
    %583 = vmatpush1.bf16.msra.mxu0 0
    %584 = vmatprep.mubr.bf16.mxu0 0
    %585 = vmatmul.mubr.bf16.gmra.mrb[0].mxu0 %v550
    %v586 = vpop.f32.mrb[0].mxu0
    %v587 = vadd.f32 0.0, %v586
    %v588 = vpop.f32.mrb[0].mxu0
    %v589 = vpop.f32.mrb[0].mxu0
    %v590 = vpop.f32.mrb[0].mxu0
    %591 = vdwg.mxu0
    %v593 = vrot.slane %v587, 7
    %v596 = vadd.f32 %v546, %v593
    %v597 = vadd.f32 %v547, %v587
    %v598 = vld [vmem:[#allocation5] sm:$0x8]
    %v599 = vld [vmem:[#allocation5 + $0x4] sm:$0x8]
    %v600 = vunpack.c.l.bf16 %v598
    %v601 = vunpack.c.l.bf16 %v599
    %v602 = vpack.c.bf16 %v442, %v442
    %v604 = vsel %vm172, %v602, 0
    %606 = vmatprep.subr.bf16.mxu0 0
    %607 = vmatpush1.bf16.msra.mxu0 %v235
    %608 = vmatprep.subr.bf16.mxu0 0
    %609 = vmatpush1.bf16.msra.mxu0 %v236
    %610 = vmatprep.subr.bf16.mxu0 0
    %611 = vmatpush1.bf16.msra.mxu0 0
    %612 = vmatprep.subr.bf16.mxu0 0
    %613 = vmatpush1.bf16.msra.mxu0 0
    %614 = vmatprep.subr.bf16.mxu0 0
    %615 = vmatpush1.bf16.msra.mxu0 0
    %616 = vmatprep.subr.bf16.mxu0 0
    %617 = vmatpush1.bf16.msra.mxu0 0
    %618 = vmatprep.subr.bf16.mxu0 0
    %619 = vmatpush1.bf16.msra.mxu0 0
    %620 = vmatprep.subr.bf16.mxu0 0
    %621 = vmatpush1.bf16.msra.mxu0 0
    %622 = vmatprep.subr.bf16.mxu0 0
    %623 = vmatpush1.bf16.msra.mxu0 0
    %624 = vmatprep.subr.bf16.mxu0 0
    %625 = vmatpush1.bf16.msra.mxu0 0
    %626 = vmatprep.subr.bf16.mxu0 0
    %627 = vmatpush1.bf16.msra.mxu0 0
    %628 = vmatprep.subr.bf16.mxu0 0
    %629 = vmatpush1.bf16.msra.mxu0 0
    %630 = vmatprep.subr.bf16.mxu0 0
    %631 = vmatpush1.bf16.msra.mxu0 0
    %632 = vmatprep.subr.bf16.mxu0 0
    %633 = vmatpush1.bf16.msra.mxu0 0
    %634 = vmatprep.subr.bf16.mxu0 0
    %635 = vmatpush1.bf16.msra.mxu0 0
    %636 = vmatprep.subr.bf16.mxu0 0
    %637 = vmatpush1.bf16.msra.mxu0 0
    %638 = vmatprep.mubr.bf16.mxu0 0
    %639 = vmatmul.mubr.bf16.gmra.mrb[0].mxu0 %v604
    %v640 = vpop.f32.mrb[0].mxu0
    %v641 = vadd.f32 0.0, %v640
    %v642 = vpop.f32.mrb[0].mxu0
    %v643 = vpop.f32.mrb[0].mxu0
    %v644 = vpop.f32.mrb[0].mxu0
    %645 = vdwg.mxu0
    %v647 = vrot.slane %v641, 2
    %v648 = vrot.slane %v641, 3
    %v651 = vadd.f32 %v600, %v647
    %v652 = vadd.f32 %v601, %v648
    %v653 = vxor.u32 %v596, 2147483648
    %v654 = vxor.u32 %v597, 2147483648
    %v655 = vmul.f32 %v653, 1.442695
    %v656 = vpow.pop %v655
    %v657 = vmul.f32 %v654, 1.442695
    %v658 = vpow.pop %v657
    %v659 = vadd.f32 %v656, 1.0
    %v660 = vadd.f32 %v658, 1.0
    %v661 = vrcp.pop %v659
    %v662 = vmul.f32 1.0, %v661
    %v663 = vrcp.pop %v660
    %v664 = vmul.f32 1.0, %v663
    %v665 = vtanh.pop %v596
    %v666 = vtanh.pop %v597
    %v668 = vrot.slane %v428, 7
    %669 = vrot.lane.b32.xlu0 %v668, 32
    %v670 = vpop.permute.xlu0 %669
    %671 = vrot.lane.b32.xlu0 %v428, 32
    %v672 = vpop.permute.xlu0 %671
    %v675 = vmul.f32 %v662, %v670
    %v676 = vmul.f32 %v664, %v672
    %679 = vrot.lane.b32.xlu0 %v665, 64
    %v680 = vpop.permute.xlu0 %679
    %681 = vrot.lane.b32.xlu0 %v666, 64
    %v682 = vpop.permute.xlu0 %681
    %v685 = vmul.f32 %v662, %v680
    %v686 = vmul.f32 %v664, %v682
    %689 = vrot.lane.b32.xlu0 %v685, 32
    %v690 = vpop.permute.xlu0 %689
    %691 = vrot.lane.b32.xlu0 %v686, 32
    %v692 = vpop.permute.xlu0 %691
    %v695 = vadd.f32 %v675, %v690
    %v696 = vadd.f32 %v676, %v692
    %v697 = vtanh.pop %v695
    %v698 = vtanh.pop %v696
    %701 = vrot.lane.b32.xlu0 %v697, 64
    %v702 = vpop.permute.xlu0 %701
    %703 = vrot.lane.b32.xlu0 %v698, 64
    %v704 = vpop.permute.xlu0 %703
    %v707 = vmul.f32 %v662, %v702
    %v708 = vmul.f32 %v664, %v704
    %v709 = vxor.u32 %v651, 2147483648
    %v710 = vxor.u32 %v652, 2147483648
    %v711 = vmul.f32 %v709, 1.442695
    %v712 = vpow.pop %v711
    %v713 = vmul.f32 %v710, 1.442695
    %v714 = vpow.pop %v713
    %v715 = vadd.f32 %v712, 1.0
    %v716 = vadd.f32 %v714, 1.0
    %v717 = vrcp.pop %v715
    %v718 = vmul.f32 1.0, %v717
    %v719 = vrcp.pop %v716
    %v720 = vmul.f32 1.0, %v719
    %v721 = vtanh.pop %v651
    %v722 = vtanh.pop %v652
    %v724 = vrot.slane %v451, 2
    %v725 = vrot.slane %v451, 3
    %726 = vrot.lane.b32.xlu0 %v724, 32
    %v727 = vpop.permute.xlu0 %726
    %728 = vrot.lane.b32.xlu0 %v725, 32
    %v729 = vpop.permute.xlu0 %728
    %v732 = vmul.f32 %v718, %v727
    %v733 = vmul.f32 %v720, %v729
    %736 = vrot.lane.b32.xlu0 %v721, 64
    %v737 = vpop.permute.xlu0 %736
    %738 = vrot.lane.b32.xlu0 %v722, 64
    %v739 = vpop.permute.xlu0 %738
    %v742 = vmul.f32 %v718, %v737
    %v743 = vmul.f32 %v720, %v739
    %746 = vrot.lane.b32.xlu0 %v742, 32
    %v747 = vpop.permute.xlu0 %746
    %748 = vrot.lane.b32.xlu0 %v743, 32
    %v749 = vpop.permute.xlu0 %748
    %v752 = vadd.f32 %v732, %v747
    %v753 = vadd.f32 %v733, %v749
    %v754 = vtanh.pop %v752
    %v755 = vtanh.pop %v753
    %758 = vrot.lane.b32.xlu0 %v754, 64
    %v759 = vpop.permute.xlu0 %758
    %760 = vrot.lane.b32.xlu0 %v755, 64
    %v761 = vpop.permute.xlu0 %760
    %v764 = vmul.f32 %v718, %v759
    %v765 = vmul.f32 %v720, %v761
    %s766 = sadd.s32 %s137, 1
    %v767 = vstv %s766
    %vm768 = vcmp.lt.s32.totalorder %v767, %v136
    %s769 = sadd.s32 %s139, 6
    %v770 = vstv %s769
    %vm771 = vcmp.lt.s32.totalorder %v770, %v136
    %v772 = vsel %vm768, 1, 0
    %773 = vset.pattern.permute.xlu0 0
    %774 = vperm.xlu0 %773, %v772
    %v775 = vpop.permute.xlu0 %774
    %vm776 = vcmp.eq.s32.totalorder %v775, 1
    %v779 = vrot.slane %v707, 1
    %v780 = vsel %vm415, %v708, %v779
    %781 = vrot.lane.b32.xlu0 %v780, 32
    %v782 = vpop.permute.xlu0 %781
    %v784 = vsel %vm776, %v782, %v420
    %v787 = vrot.slane %v695, 1
    %v788 = vsel %vm415, %v696, %v787
    %789 = vrot.lane.b32.xlu0 %v788, 96
    %v790 = vpop.permute.xlu0 %789
    %v792 = vsel %vm776, %v790, %v428
    %v793 = vsel %vm771, 1, 0
    %794 = vset.pattern.permute.xlu0 0
    %795 = vperm.xlu0 %794, %v793
    %v796 = vpop.permute.xlu0 %795
    %vm797 = vcmp.eq.s32.totalorder %v796, 1
    %v800 = vrot.slane %v764, 6
    %v801 = vrot.slane %v765, 5
    %v802 = vsel %vm415, %v801, %v800
    %803 = vrot.lane.b32.xlu0 %v802, 32
    %v804 = vpop.permute.xlu0 %803
    %v806 = vsel %vm797, %v804, %v442
    %v809 = vrot.slane %v752, 6
    %v810 = vrot.slane %v753, 5
    %v811 = vsel %vm415, %v810, %v809
    %812 = vrot.lane.b32.xlu0 %v811, 96
    %v813 = vpop.permute.xlu0 %812
    %v815 = vsel %vm797, %v813, %v451
    %v816 = vsel %vm776, %v782, 0.0
    %v817 = vpack.c.bf16 %v816, %v816
    %v820 = vunpack.c.l.s4 1966171168
    %v821 = vunpack.c.0.s8 %v820
    %v822 = vlaneseq
    %v823 = vshrl.u32 %v822, 7
    %v824 = vsub.s32 %v821, %v823
    %v825 = vrot.slane %v817, %v824
    %v827 = vunpack.c.l.s4 1966171168
    %v828 = vunpack.c.0.s8 %v827
    %v829 = vlaneseq
    %v830 = vshrl.u32 %v829, 7
    %v831 = vsub.s32 %v828, %v830
    %v832 = vrot.slane %v825, %v831
    %v833 = vunpack.i.l.s16 %v832
    %v834 = vunpack.i.h.s16 %v832
    %v835 = vpack.i.b16 %v833, %v833
    %v836 = vpack.i.b16 %v834, %v834
    %v838 = vunpack.c.l.s4 286326784
    %v839 = vunpack.c.0.s8 %v838
    %v840 = vlaneseq
    %v841 = vshrl.u32 %v840, 7
    %v842 = vsub.s32 %v839, %v841
    %v843 = vrot.slane %v835, %v842
    %v845 = vunpack.c.l.s4 286326784
    %v846 = vunpack.c.0.s8 %v845
    %v847 = vlaneseq
    %v848 = vshrl.u32 %v847, 7
    %v849 = vsub.s32 %v846, %v848
    %v850 = vrot.slane %v836, %v849
    %vm853 = vsmask.f32 7938
    %vm854 = vmand %vm489, %vm853
    %v855 = vld [vmem:[%s4] sm:$0x1]
    %v856 = vsel %vm854, %v843, %v855
    %857 = vst [vmem:[%s4] sm:$0x1] %v856
    %v858 = vld [vmem:[%s4 + $0x4] sm:$0x1]
    %v859 = vsel %vm854, %v850, %v858
    %860 = vst [vmem:[%s4 + $0x4] sm:$0x1] %v859
    %v861 = vsel %vm797, %v804, 0.0
    %v862 = vpack.c.bf16 %v861, %v861
    %v865 = vunpack.c.l.s4 1966171168
    %v866 = vunpack.c.0.s8 %v865
    %v867 = vlaneseq
    %v868 = vshrl.u32 %v867, 7
    %v869 = vsub.s32 %v866, %v868
    %v870 = vrot.slane %v862, %v869
    %v872 = vunpack.c.l.s4 1966171168
    %v873 = vunpack.c.0.s8 %v872
    %v874 = vlaneseq
    %v875 = vshrl.u32 %v874, 7
    %v876 = vsub.s32 %v873, %v875
    %v877 = vrot.slane %v870, %v876
    %v878 = vunpack.i.l.s16 %v877
    %v879 = vunpack.i.h.s16 %v877
    %v880 = vpack.i.b16 %v878, %v878
    %v881 = vpack.i.b16 %v879, %v879
    %v883 = vunpack.c.l.s4 286326784
    %v884 = vunpack.c.0.s8 %v883
    %v885 = vlaneseq
    %v886 = vshrl.u32 %v885, 7
    %v887 = vsub.s32 %v884, %v886
    %v888 = vrot.slane %v880, %v887
    %v890 = vunpack.c.l.s4 286326784
    %v891 = vunpack.c.0.s8 %v890
    %v892 = vlaneseq
    %v893 = vshrl.u32 %v892, 7
    %v894 = vsub.s32 %v891, %v893
    %v895 = vrot.slane %v881, %v894
    %vm898 = vsmask.f32 3328
    %vm899 = vmand %vm535, %vm898
    %v900 = vld [vmem:[%s124] sm:$0x8]
    %v901 = vsel %vm899, %v888, %v900
    %902 = vst [vmem:[%s124] sm:$0x8] %v901
    %v903 = vld [vmem:[%s124 + $0x4] sm:$0x8]
    %v904 = vsel %vm899, %v895, %v903
    %905 = vst [vmem:[%s124 + $0x4] sm:$0x8] %v904
    %v906 = vld [vmem:[#allocation4] sm:$0x2]
    %v907 = vld [vmem:[#allocation4 + $0x4] sm:$0x2]
    %v908 = vunpack.c.l.bf16 %v906
    %v909 = vunpack.c.l.bf16 %v907
    %v910 = vpack.c.bf16 %v784, %v784
    %v912 = vsel %vm172, %v910, 0
    %914 = vmatprep.subr.bf16.mxu0 0
    %915 = vmatpush1.bf16.msra.mxu0 %v168
    %916 = vmatprep.subr.bf16.mxu0 0
    %917 = vmatpush1.bf16.msra.mxu0 %v169
    %918 = vmatprep.subr.bf16.mxu0 0
    %919 = vmatpush1.bf16.msra.mxu0 0
    %920 = vmatprep.subr.bf16.mxu0 0
    %921 = vmatpush1.bf16.msra.mxu0 0
    %922 = vmatprep.subr.bf16.mxu0 0
    %923 = vmatpush1.bf16.msra.mxu0 0
    %924 = vmatprep.subr.bf16.mxu0 0
    %925 = vmatpush1.bf16.msra.mxu0 0
    %926 = vmatprep.subr.bf16.mxu0 0
    %927 = vmatpush1.bf16.msra.mxu0 0
    %928 = vmatprep.subr.bf16.mxu0 0
    %929 = vmatpush1.bf16.msra.mxu0 0
    %930 = vmatprep.subr.bf16.mxu0 0
    %931 = vmatpush1.bf16.msra.mxu0 0
    %932 = vmatprep.subr.bf16.mxu0 0
    %933 = vmatpush1.bf16.msra.mxu0 0
    %934 = vmatprep.subr.bf16.mxu0 0
    %935 = vmatpush1.bf16.msra.mxu0 0
    %936 = vmatprep.subr.bf16.mxu0 0
    %937 = vmatpush1.bf16.msra.mxu0 0
    %938 = vmatprep.subr.bf16.mxu0 0
    %939 = vmatpush1.bf16.msra.mxu0 0
    %940 = vmatprep.subr.bf16.mxu0 0
    %941 = vmatpush1.bf16.msra.mxu0 0
    %942 = vmatprep.subr.bf16.mxu0 0
    %943 = vmatpush1.bf16.msra.mxu0 0
    %944 = vmatprep.subr.bf16.mxu0 0
    %945 = vmatpush1.bf16.msra.mxu0 0
    %946 = vmatprep.mubr.bf16.mxu0 0
    %947 = vmatmul.mubr.bf16.gmra.mrb[0].mxu0 %v912
    %v948 = vpop.f32.mrb[0].mxu0
    %v949 = vadd.f32 0.0, %v948
    %v950 = vpop.f32.mrb[0].mxu0
    %v951 = vpop.f32.mrb[0].mxu0
    %v952 = vpop.f32.mrb[0].mxu0
    %953 = vdwg.mxu0
    %v955 = vrot.slane %v949, 6
    %v956 = vrot.slane %v949, 7
    %v959 = vadd.f32 %v908, %v955
    %v960 = vadd.f32 %v909, %v956
    %v961 = vld [vmem:[#allocation5] sm:$0x4]
    %v962 = vld [vmem:[#allocation5 + $0x4] sm:$0x4]
    %v963 = vunpack.c.l.bf16 %v961
    %v964 = vunpack.c.l.bf16 %v962
    %v965 = vpack.c.bf16 %v806, %v806
    %v967 = vsel %vm172, %v965, 0
    %969 = vmatprep.subr.bf16.mxu0 0
    %970 = vmatpush1.bf16.msra.mxu0 %v235
    %971 = vmatprep.subr.bf16.mxu0 0
    %972 = vmatpush1.bf16.msra.mxu0 %v236
    %973 = vmatprep.subr.bf16.mxu0 0
    %974 = vmatpush1.bf16.msra.mxu0 0
    %975 = vmatprep.subr.bf16.mxu0 0
    %976 = vmatpush1.bf16.msra.mxu0 0
    %977 = vmatprep.subr.bf16.mxu0 0
    %978 = vmatpush1.bf16.msra.mxu0 0
    %979 = vmatprep.subr.bf16.mxu0 0
    %980 = vmatpush1.bf16.msra.mxu0 0
    %981 = vmatprep.subr.bf16.mxu0 0
    %982 = vmatpush1.bf16.msra.mxu0 0
    %983 = vmatprep.subr.bf16.mxu0 0
    %984 = vmatpush1.bf16.msra.mxu0 0
    %985 = vmatprep.subr.bf16.mxu0 0
    %986 = vmatpush1.bf16.msra.mxu0 0
    %987 = vmatprep.subr.bf16.mxu0 0
    %988 = vmatpush1.bf16.msra.mxu0 0
    %989 = vmatprep.subr.bf16.mxu0 0
    %990 = vmatpush1.bf16.msra.mxu0 0
    %991 = vmatprep.subr.bf16.mxu0 0
    %992 = vmatpush1.bf16.msra.mxu0 0
    %993 = vmatprep.subr.bf16.mxu0 0
    %994 = vmatpush1.bf16.msra.mxu0 0
    %995 = vmatprep.subr.bf16.mxu0 0
    %996 = vmatpush1.bf16.msra.mxu0 0
    %997 = vmatprep.subr.bf16.mxu0 0
    %998 = vmatpush1.bf16.msra.mxu0 0
    %999 = vmatprep.subr.bf16.mxu0 0
    %1000 = vmatpush1.bf16.msra.mxu0 0
    %1001 = vmatprep.mubr.bf16.mxu0 0
    %1002 = vmatmul.mubr.bf16.gmra.mrb[0].mxu0 %v967
    %v1003 = vpop.f32.mrb[0].mxu0
    %v1004 = vadd.f32 0.0, %v1003
    %v1005 = vpop.f32.mrb[0].mxu0
    %v1006 = vpop.f32.mrb[0].mxu0
    %v1007 = vpop.f32.mrb[0].mxu0
    %1008 = vdwg.mxu0
    %v1010 = vrot.slane %v1004, 3
    %v1011 = vrot.slane %v1004, 4
    %v1014 = vadd.f32 %v963, %v1010
    %v1015 = vadd.f32 %v964, %v1011
    %v1016 = vxor.u32 %v959, 2147483648
    %v1017 = vxor.u32 %v960, 2147483648
    %v1018 = vmul.f32 %v1016, 1.442695
    %v1019 = vpow.pop %v1018
    %v1020 = vmul.f32 %v1017, 1.442695
    %v1021 = vpow.pop %v1020
    %v1022 = vadd.f32 %v1019, 1.0
    %v1023 = vadd.f32 %v1021, 1.0
    %v1024 = vrcp.pop %v1022
    %v1025 = vmul.f32 1.0, %v1024
    %v1026 = vrcp.pop %v1023
    %v1027 = vmul.f32 1.0, %v1026
    %v1028 = vtanh.pop %v959
    %v1029 = vtanh.pop %v960
    %v1031 = vrot.slane %v792, 6
    %v1032 = vrot.slane %v792, 7
    %1033 = vrot.lane.b32.xlu0 %v1031, 32
    %v1034 = vpop.permute.xlu0 %1033
    %1035 = vrot.lane.b32.xlu0 %v1032, 32
    %v1036 = vpop.permute.xlu0 %1035
    %v1039 = vmul.f32 %v1025, %v1034
    %v1040 = vmul.f32 %v1027, %v1036
    %1043 = vrot.lane.b32.xlu0 %v1028, 64
    %v1044 = vpop.permute.xlu0 %1043
    %1045 = vrot.lane.b32.xlu0 %v1029, 64
    %v1046 = vpop.permute.xlu0 %1045
    %v1049 = vmul.f32 %v1025, %v1044
    %v1050 = vmul.f32 %v1027, %v1046
    %1053 = vrot.lane.b32.xlu0 %v1049, 32
    %v1054 = vpop.permute.xlu0 %1053
    %1055 = vrot.lane.b32.xlu0 %v1050, 32
    %v1056 = vpop.permute.xlu0 %1055
    %v1059 = vadd.f32 %v1039, %v1054
    %v1060 = vadd.f32 %v1040, %v1056
    %v1061 = vtanh.pop %v1059
    %v1062 = vtanh.pop %v1060
    %1065 = vrot.lane.b32.xlu0 %v1061, 64
    %v1066 = vpop.permute.xlu0 %1065
    %1067 = vrot.lane.b32.xlu0 %v1062, 64
    %v1068 = vpop.permute.xlu0 %1067
    %v1071 = vmul.f32 %v1025, %v1066
    %v1072 = vmul.f32 %v1027, %v1068
    %v1073 = vxor.u32 %v1014, 2147483648
    %v1074 = vxor.u32 %v1015, 2147483648
    %v1075 = vmul.f32 %v1073, 1.442695
    %v1076 = vpow.pop %v1075
    %v1077 = vmul.f32 %v1074, 1.442695
    %v1078 = vpow.pop %v1077
    %v1079 = vadd.f32 %v1076, 1.0
    %v1080 = vadd.f32 %v1078, 1.0
    %v1081 = vrcp.pop %v1079
    %v1082 = vmul.f32 1.0, %v1081
    %v1083 = vrcp.pop %v1080
    %v1084 = vmul.f32 1.0, %v1083
    %v1085 = vtanh.pop %v1014
    %v1086 = vtanh.pop %v1015
    %v1088 = vrot.slane %v815, 3
    %v1089 = vrot.slane %v815, 4
    %1090 = vrot.lane.b32.xlu0 %v1088, 32
    %v1091 = vpop.permute.xlu0 %1090
    %1092 = vrot.lane.b32.xlu0 %v1089, 32
    %v1093 = vpop.permute.xlu0 %1092
    %v1096 = vmul.f32 %v1082, %v1091
    %v1097 = vmul.f32 %v1084, %v1093
    %1100 = vrot.lane.b32.xlu0 %v1085, 64
    %v1101 = vpop.permute.xlu0 %1100
    %1102 = vrot.lane.b32.xlu0 %v1086, 64
    %v1103 = vpop.permute.xlu0 %1102
    %v1106 = vmul.f32 %v1082, %v1101
    %v1107 = vmul.f32 %v1084, %v1103
    %1110 = vrot.lane.b32.xlu0 %v1106, 32
    %v1111 = vpop.permute.xlu0 %1110
    %1112 = vrot.lane.b32.xlu0 %v1107, 32
    %v1113 = vpop.permute.xlu0 %1112
    %v1116 = vadd.f32 %v1096, %v1111
    %v1117 = vadd.f32 %v1097, %v1113
    %v1118 = vtanh.pop %v1116
    %v1119 = vtanh.pop %v1117
    %1122 = vrot.lane.b32.xlu0 %v1118, 64
    %v1123 = vpop.permute.xlu0 %1122
    %1124 = vrot.lane.b32.xlu0 %v1119, 64
    %v1125 = vpop.permute.xlu0 %1124
    %v1128 = vmul.f32 %v1082, %v1123
    %v1129 = vmul.f32 %v1084, %v1125
    %s1130 = sadd.s32 %s137, 2
    %v1131 = vstv %s1130
    %vm1132 = vcmp.lt.s32.totalorder %v1131, %v136
    %s1133 = sadd.s32 %s139, 5
    %v1134 = vstv %s1133
    %vm1135 = vcmp.lt.s32.totalorder %v1134, %v136
    %v1136 = vsel %vm1132, 1, 0
    %1137 = vset.pattern.permute.xlu0 0
    %1138 = vperm.xlu0 %1137, %v1136
    %v1139 = vpop.permute.xlu0 %1138
    %vm1140 = vcmp.eq.s32.totalorder %v1139, 1
    %v1143 = vrot.slane %v1071, 2
    %v1144 = vrot.slane %v1072, 1
    %v1145 = vsel %vm415, %v1144, %v1143
    %1146 = vrot.lane.b32.xlu0 %v1145, 32
    %v1147 = vpop.permute.xlu0 %1146
    %v1149 = vsel %vm1140, %v1147, %v784
    %v1152 = vrot.slane %v1059, 2
    %v1153 = vrot.slane %v1060, 1
    %v1154 = vsel %vm415, %v1153, %v1152
    %1155 = vrot.lane.b32.xlu0 %v1154, 96
    %v1156 = vpop.permute.xlu0 %1155
    %v1158 = vsel %vm1140, %v1156, %v792
    %v1159 = vsel %vm1135, 1, 0
    %1160 = vset.pattern.permute.xlu0 0
    %1161 = vperm.xlu0 %1160, %v1159
    %v1162 = vpop.permute.xlu0 %1161
    %vm1163 = vcmp.eq.s32.totalorder %v1162, 1
    %v1166 = vrot.slane %v1128, 5
    %v1167 = vrot.slane %v1129, 4
    %v1168 = vsel %vm415, %v1167, %v1166
    %1169 = vrot.lane.b32.xlu0 %v1168, 32
    %v1170 = vpop.permute.xlu0 %1169
    %v1172 = vsel %vm1163, %v1170, %v806
    %v1175 = vrot.slane %v1116, 5
    %v1176 = vrot.slane %v1117, 4
    %v1177 = vsel %vm415, %v1176, %v1175
    %1178 = vrot.lane.b32.xlu0 %v1177, 96
    %v1179 = vpop.permute.xlu0 %1178
    %v1181 = vsel %vm1163, %v1179, %v815
    %v1182 = vsel %vm1140, %v1147, 0.0
    %v1183 = vpack.c.bf16 %v1182, %v1182
    %v1186 = vunpack.c.l.s4 1966171168
    %v1187 = vunpack.c.0.s8 %v1186
    %v1188 = vlaneseq
    %v1189 = vshrl.u32 %v1188, 7
    %v1190 = vsub.s32 %v1187, %v1189
    %v1191 = vrot.slane %v1183, %v1190
    %v1193 = vunpack.c.l.s4 1966171168
    %v1194 = vunpack.c.0.s8 %v1193
    %v1195 = vlaneseq
    %v1196 = vshrl.u32 %v1195, 7
    %v1197 = vsub.s32 %v1194, %v1196
    %v1198 = vrot.slane %v1191, %v1197
    %v1199 = vunpack.i.l.s16 %v1198
    %v1200 = vunpack.i.h.s16 %v1198
    %v1201 = vpack.i.b16 %v1199, %v1199
    %v1202 = vpack.i.b16 %v1200, %v1200
    %v1204 = vunpack.c.l.s4 286326784
    %v1205 = vunpack.c.0.s8 %v1204
    %v1206 = vlaneseq
    %v1207 = vshrl.u32 %v1206, 7
    %v1208 = vsub.s32 %v1205, %v1207
    %v1209 = vrot.slane %v1201, %v1208
    %v1211 = vunpack.c.l.s4 286326784
    %v1212 = vunpack.c.0.s8 %v1211
    %v1213 = vlaneseq
    %v1214 = vshrl.u32 %v1213, 7
    %v1215 = vsub.s32 %v1212, %v1214
    %v1216 = vrot.slane %v1202, %v1215
    %vm1219 = vcmask 254977
    %vm1220 = vsmask.f32 1280
    %vm1221 = vmand %vm1219, %vm1220
    %v1222 = vld [vmem:[%s4] sm:$0x2]
    %v1223 = vsel %vm1221, %v1209, %v1222
    %1224 = vst [vmem:[%s4] sm:$0x2] %v1223
    %v1225 = vld [vmem:[%s4 + $0x4] sm:$0x2]
    %v1226 = vsel %vm1221, %v1216, %v1225
    %1227 = vst [vmem:[%s4 + $0x4] sm:$0x2] %v1226
    %v1228 = vsel %vm1163, %v1170, 0.0
    %v1229 = vpack.c.bf16 %v1228, %v1228
    %v1232 = vunpack.c.l.s4 1966171168
    %v1233 = vunpack.c.0.s8 %v1232
    %v1234 = vlaneseq
    %v1235 = vshrl.u32 %v1234, 7
    %v1236 = vsub.s32 %v1233, %v1235
    %v1237 = vrot.slane %v1229, %v1236
    %v1239 = vunpack.c.l.s4 1966171168
    %v1240 = vunpack.c.0.s8 %v1239
    %v1241 = vlaneseq
    %v1242 = vshrl.u32 %v1241, 7
    %v1243 = vsub.s32 %v1240, %v1242
    %v1244 = vrot.slane %v1237, %v1243
    %v1245 = vunpack.i.l.s16 %v1244
    %v1246 = vunpack.i.h.s16 %v1244
    %v1247 = vpack.i.b16 %v1245, %v1245
    %v1248 = vpack.i.b16 %v1246, %v1246
    %v1250 = vunpack.c.l.s4 286326784
    %v1251 = vunpack.c.0.s8 %v1250
    %v1252 = vlaneseq
    %v1253 = vshrl.u32 %v1252, 7
    %v1254 = vsub.s32 %v1251, %v1253
    %v1255 = vrot.slane %v1247, %v1254
    %v1257 = vunpack.c.l.s4 286326784
    %v1258 = vunpack.c.0.s8 %v1257
    %v1259 = vlaneseq
    %v1260 = vshrl.u32 %v1259, 7
    %v1261 = vsub.s32 %v1258, %v1260
    %v1262 = vrot.slane %v1248, %v1261
    %vm1265 = vcmask 256002
    %vm1266 = vsmask.f32 7946
    %vm1267 = vmand %vm1265, %vm1266
    %v1268 = vld [vmem:[%s124] sm:$0x4]
    %v1269 = vsel %vm1267, %v1255, %v1268
    %1270 = vst [vmem:[%s124] sm:$0x4] %v1269
    %v1271 = vld [vmem:[%s124 + $0x4] sm:$0x4]
    %v1272 = vsel %vm1267, %v1262, %v1271
    %1273 = vst [vmem:[%s124 + $0x4] sm:$0x4] %v1272
    %v1274 = vld [vmem:[#allocation4] sm:$0x2]
    %v1275 = vld [vmem:[#allocation4 + $0x4] sm:$0x2]
    %v1276 = vunpack.c.l.bf16 %v1274
    %v1277 = vunpack.c.l.bf16 %v1275
    %v1278 = vpack.c.bf16 %v1149, %v1149
    %v1280 = vsel %vm172, %v1278, 0
    %1282 = vmatprep.subr.bf16.mxu0 0
    %1283 = vmatpush1.bf16.msra.mxu0 %v168
    %1284 = vmatprep.subr.bf16.mxu0 0
    %1285 = vmatpush1.bf16.msra.mxu0 %v169
    %1286 = vmatprep.subr.bf16.mxu0 0
    %1287 = vmatpush1.bf16.msra.mxu0 0
    %1288 = vmatprep.subr.bf16.mxu0 0
    %1289 = vmatpush1.bf16.msra.mxu0 0
    %1290 = vmatprep.subr.bf16.mxu0 0
    %1291 = vmatpush1.bf16.msra.mxu0 0
    %1292 = vmatprep.subr.bf16.mxu0 0
    %1293 = vmatpush1.bf16.msra.mxu0 0
    %1294 = vmatprep.subr.bf16.mxu0 0
    %1295 = vmatpush1.bf16.msra.mxu0 0
    %1296 = vmatprep.subr.bf16.mxu0 0
    %1297 = vmatpush1.bf16.msra.mxu0 0
    %1298 = vmatprep.subr.bf16.mxu0 0
    %1299 = vmatpush1.bf16.msra.mxu0 0
    %1300 = vmatprep.subr.bf16.mxu0 0
    %1301 = vmatpush1.bf16.msra.mxu0 0
    %1302 = vmatprep.subr.bf16.mxu0 0
    %1303 = vmatpush1.bf16.msra.mxu0 0
    %1304 = vmatprep.subr.bf16.mxu0 0
    %1305 = vmatpush1.bf16.msra.mxu0 0
    %1306 = vmatprep.subr.bf16.mxu0 0
    %1307 = vmatpush1.bf16.msra.mxu0 0
    %1308 = vmatprep.subr.bf16.mxu0 0
    %1309 = vmatpush1.bf16.msra.mxu0 0
    %1310 = vmatprep.subr.bf16.mxu0 0
    %1311 = vmatpush1.bf16.msra.mxu0 0
    %1312 = vmatprep.subr.bf16.mxu0 0
    %1313 = vmatpush1.bf16.msra.mxu0 0
    %1314 = vmatprep.mubr.bf16.mxu0 0
    %1315 = vmatmul.mubr.bf16.gmra.mrb[0].mxu0 %v1280
    %v1316 = vpop.f32.mrb[0].mxu0
    %v1317 = vadd.f32 0.0, %v1316
    %v1318 = vpop.f32.mrb[0].mxu0
    %v1319 = vpop.f32.mrb[0].mxu0
    %v1320 = vpop.f32.mrb[0].mxu0
    %1321 = vdwg.mxu0
    %v1323 = vrot.slane %v1317, 5
    %v1324 = vrot.slane %v1317, 6
    %v1327 = vadd.f32 %v1276, %v1323
    %v1328 = vadd.f32 %v1277, %v1324
    %v1329 = vld [vmem:[#allocation5] sm:$0x4]
    %v1330 = vld [vmem:[#allocation5 + $0x4] sm:$0x4]
    %v1331 = vunpack.c.l.bf16 %v1329
    %v1332 = vunpack.c.l.bf16 %v1330
    %v1333 = vpack.c.bf16 %v1172, %v1172
    %v1335 = vsel %vm172, %v1333, 0
    %1337 = vmatprep.subr.bf16.mxu0 0
    %1338 = vmatpush1.bf16.msra.mxu0 %v235
    %1339 = vmatprep.subr.bf16.mxu0 0
    %1340 = vmatpush1.bf16.msra.mxu0 %v236
    %1341 = vmatprep.subr.bf16.mxu0 0
    %1342 = vmatpush1.bf16.msra.mxu0 0
    %1343 = vmatprep.subr.bf16.mxu0 0
    %1344 = vmatpush1.bf16.msra.mxu0 0
    %1345 = vmatprep.subr.bf16.mxu0 0
    %1346 = vmatpush1.bf16.msra.mxu0 0
    %1347 = vmatprep.subr.bf16.mxu0 0
    %1348 = vmatpush1.bf16.msra.mxu0 0
    %1349 = vmatprep.subr.bf16.mxu0 0
    %1350 = vmatpush1.bf16.msra.mxu0 0
    %1351 = vmatprep.subr.bf16.mxu0 0
    %1352 = vmatpush1.bf16.msra.mxu0 0
    %1353 = vmatprep.subr.bf16.mxu0 0
    %1354 = vmatpush1.bf16.msra.mxu0 0
    %1355 = vmatprep.subr.bf16.mxu0 0
    %1356 = vmatpush1.bf16.msra.mxu0 0
    %1357 = vmatprep.subr.bf16.mxu0 0
    %1358 = vmatpush1.bf16.msra.mxu0 0
    %1359 = vmatprep.subr.bf16.mxu0 0
    %1360 = vmatpush1.bf16.msra.mxu0 0
    %1361 = vmatprep.subr.bf16.mxu0 0
    %1362 = vmatpush1.bf16.msra.mxu0 0
    %1363 = vmatprep.subr.bf16.mxu0 0
    %1364 = vmatpush1.bf16.msra.mxu0 0
    %1365 = vmatprep.subr.bf16.mxu0 0
    %1366 = vmatpush1.bf16.msra.mxu0 0
    %1367 = vmatprep.subr.bf16.mxu0 0
    %1368 = vmatpush1.bf16.msra.mxu0 0
    %1369 = vmatprep.mubr.bf16.mxu0 0
    %1370 = vmatmul.mubr.bf16.gmra.mrb[0].mxu0 %v1335
    %v1371 = vpop.f32.mrb[0].mxu0
    %v1372 = vadd.f32 0.0, %v1371
    %v1373 = vpop.f32.mrb[0].mxu0
    %v1374 = vpop.f32.mrb[0].mxu0
    %v1375 = vpop.f32.mrb[0].mxu0
    %1376 = vdwg.mxu0
    %v1378 = vrot.slane %v1372, 4
    %v1379 = vrot.slane %v1372, 5
    %v1382 = vadd.f32 %v1331, %v1378
    %v1383 = vadd.f32 %v1332, %v1379
    %v1384 = vxor.u32 %v1327, 2147483648
    %v1385 = vxor.u32 %v1328, 2147483648
    %v1386 = vmul.f32 %v1384, 1.442695
    %v1387 = vpow.pop %v1386
    %v1388 = vmul.f32 %v1385, 1.442695
    %v1389 = vpow.pop %v1388
    %v1390 = vadd.f32 %v1387, 1.0
    %v1391 = vadd.f32 %v1389, 1.0
    %v1392 = vrcp.pop %v1390
    %v1393 = vmul.f32 1.0, %v1392
    %v1394 = vrcp.pop %v1391
    %v1395 = vmul.f32 1.0, %v1394
    %v1396 = vtanh.pop %v1327
    %v1397 = vtanh.pop %v1328
    %v1399 = vrot.slane %v1158, 5
    %v1400 = vrot.slane %v1158, 6
    %1401 = vrot.lane.b32.xlu0 %v1399, 32
    %v1402 = vpop.permute.xlu0 %1401
    %1403 = vrot.lane.b32.xlu0 %v1400, 32
    %v1404 = vpop.permute.xlu0 %1403
    %v1407 = vmul.f32 %v1393, %v1402
    %v1408 = vmul.f32 %v1395, %v1404
    %1411 = vrot.lane.b32.xlu0 %v1396, 64
    %v1412 = vpop.permute.xlu0 %1411
    %1413 = vrot.lane.b32.xlu0 %v1397, 64
    %v1414 = vpop.permute.xlu0 %1413
    %v1417 = vmul.f32 %v1393, %v1412
    %v1418 = vmul.f32 %v1395, %v1414
    %1421 = vrot.lane.b32.xlu0 %v1417, 32
    %v1422 = vpop.permute.xlu0 %1421
    %1423 = vrot.lane.b32.xlu0 %v1418, 32
    %v1424 = vpop.permute.xlu0 %1423
    %v1427 = vadd.f32 %v1407, %v1422
    %v1428 = vadd.f32 %v1408, %v1424
    %v1429 = vtanh.pop %v1427
    %v1430 = vtanh.pop %v1428
    %1433 = vrot.lane.b32.xlu0 %v1429, 64
    %v1434 = vpop.permute.xlu0 %1433
    %1435 = vrot.lane.b32.xlu0 %v1430, 64
    %v1436 = vpop.permute.xlu0 %1435
    %v1439 = vmul.f32 %v1393, %v1434
    %v1440 = vmul.f32 %v1395, %v1436
    %v1441 = vxor.u32 %v1382, 2147483648
    %v1442 = vxor.u32 %v1383, 2147483648
    %v1443 = vmul.f32 %v1441, 1.442695
    %v1444 = vpow.pop %v1443
    %v1445 = vmul.f32 %v1442, 1.442695
    %v1446 = vpow.pop %v1445
    %v1447 = vadd.f32 %v1444, 1.0
    %v1448 = vadd.f32 %v1446, 1.0
    %v1449 = vrcp.pop %v1447
    %v1450 = vmul.f32 1.0, %v1449
    %v1451 = vrcp.pop %v1448
    %v1452 = vmul.f32 1.0, %v1451
    %v1453 = vtanh.pop %v1382
    %v1454 = vtanh.pop %v1383
    %v1456 = vrot.slane %v1181, 4
    %v1457 = vrot.slane %v1181, 5
    %1458 = vrot.lane.b32.xlu0 %v1456, 32
    %v1459 = vpop.permute.xlu0 %1458
    %1460 = vrot.lane.b32.xlu0 %v1457, 32
    %v1461 = vpop.permute.xlu0 %1460
    %v1464 = vmul.f32 %v1450, %v1459
    %v1465 = vmul.f32 %v1452, %v1461
    %1468 = vrot.lane.b32.xlu0 %v1453, 64
    %v1469 = vpop.permute.xlu0 %1468
    %1470 = vrot.lane.b32.xlu0 %v1454, 64
    %v1471 = vpop.permute.xlu0 %1470
    %v1474 = vmul.f32 %v1450, %v1469
    %v1475 = vmul.f32 %v1452, %v1471
    %1478 = vrot.lane.b32.xlu0 %v1474, 32
    %v1479 = vpop.permute.xlu0 %1478
    %1480 = vrot.lane.b32.xlu0 %v1475, 32
    %v1481 = vpop.permute.xlu0 %1480
    %v1484 = vadd.f32 %v1464, %v1479
    %v1485 = vadd.f32 %v1465, %v1481
    %v1486 = vtanh.pop %v1484
    %v1487 = vtanh.pop %v1485
    %1490 = vrot.lane.b32.xlu0 %v1486, 64
    %v1491 = vpop.permute.xlu0 %1490
    %1492 = vrot.lane.b32.xlu0 %v1487, 64
    %v1493 = vpop.permute.xlu0 %1492
    %v1496 = vmul.f32 %v1450, %v1491
    %v1497 = vmul.f32 %v1452, %v1493
    %s1498 = sadd.s32 %s137, 3
    %v1499 = vstv %s1498
    %vm1500 = vcmp.lt.s32.totalorder %v1499, %v136
    %s1501 = sadd.s32 %s139, 4
    %v1502 = vstv %s1501
    %vm1503 = vcmp.lt.s32.totalorder %v1502, %v136
    %v1504 = vsel %vm1500, 1, 0
    %1505 = vset.pattern.permute.xlu0 0
    %1506 = vperm.xlu0 %1505, %v1504
    %v1507 = vpop.permute.xlu0 %1506
    %vm1508 = vcmp.eq.s32.totalorder %v1507, 1
    %v1511 = vrot.slane %v1439, 3
    %v1512 = vrot.slane %v1440, 2
    %v1513 = vsel %vm415, %v1512, %v1511
    %1514 = vrot.lane.b32.xlu0 %v1513, 32
    %v1515 = vpop.permute.xlu0 %1514
    %v1517 = vsel %vm1508, %v1515, %v1149
    %v1520 = vrot.slane %v1427, 3
    %v1521 = vrot.slane %v1428, 2
    %v1522 = vsel %vm415, %v1521, %v1520
    %1523 = vrot.lane.b32.xlu0 %v1522, 96
    %v1524 = vpop.permute.xlu0 %1523
    %v1526 = vsel %vm1508, %v1524, %v1158
    %v1527 = vsel %vm1503, 1, 0
    %1528 = vset.pattern.permute.xlu0 0
    %1529 = vperm.xlu0 %1528, %v1527
    %v1530 = vpop.permute.xlu0 %1529
    %vm1531 = vcmp.eq.s32.totalorder %v1530, 1
    %v1534 = vrot.slane %v1496, 4
    %v1535 = vrot.slane %v1497, 3
    %v1536 = vsel %vm415, %v1535, %v1534
    %1537 = vrot.lane.b32.xlu0 %v1536, 32
    %v1538 = vpop.permute.xlu0 %1537
    %v1540 = vsel %vm1531, %v1538, %v1172
    %v1543 = vrot.slane %v1484, 4
    %v1544 = vrot.slane %v1485, 3
    %v1545 = vsel %vm415, %v1544, %v1543
    %1546 = vrot.lane.b32.xlu0 %v1545, 96
    %v1547 = vpop.permute.xlu0 %1546
    %v1549 = vsel %vm1531, %v1547, %v1181
    %v1550 = vsel %vm1508, %v1515, 0.0
    %v1551 = vpack.c.bf16 %v1550, %v1550
    %v1554 = vunpack.c.l.s4 1966171168
    %v1555 = vunpack.c.0.s8 %v1554
    %v1556 = vlaneseq
    %v1557 = vshrl.u32 %v1556, 7
    %v1558 = vsub.s32 %v1555, %v1557
    %v1559 = vrot.slane %v1551, %v1558
    %v1561 = vunpack.c.l.s4 1966171168
    %v1562 = vunpack.c.0.s8 %v1561
    %v1563 = vlaneseq
    %v1564 = vshrl.u32 %v1563, 7
    %v1565 = vsub.s32 %v1562, %v1564
    %v1566 = vrot.slane %v1559, %v1565
    %v1567 = vunpack.i.l.s16 %v1566
    %v1568 = vunpack.i.h.s16 %v1566
    %v1569 = vpack.i.b16 %v1567, %v1567
    %v1570 = vpack.i.b16 %v1568, %v1568
    %v1572 = vunpack.c.l.s4 286326784
    %v1573 = vunpack.c.0.s8 %v1572
    %v1574 = vlaneseq
    %v1575 = vshrl.u32 %v1574, 7
    %v1576 = vsub.s32 %v1573, %v1575
    %v1577 = vrot.slane %v1569, %v1576
    %v1579 = vunpack.c.l.s4 286326784
    %v1580 = vunpack.c.0.s8 %v1579
    %v1581 = vlaneseq
    %v1582 = vshrl.u32 %v1581, 7
    %v1583 = vsub.s32 %v1580, %v1582
    %v1584 = vrot.slane %v1570, %v1583
    %vm1587 = vsmask.f32 7942
    %vm1588 = vmand %vm1219, %vm1587
    %v1589 = vld [vmem:[%s4] sm:$0x2]
    %v1590 = vsel %vm1588, %v1577, %v1589
    %1591 = vst [vmem:[%s4] sm:$0x2] %v1590
    %v1592 = vld [vmem:[%s4 + $0x4] sm:$0x2]
    %v1593 = vsel %vm1588, %v1584, %v1592
    %1594 = vst [vmem:[%s4 + $0x4] sm:$0x2] %v1593
    %v1595 = vsel %vm1531, %v1538, 0.0
    %v1596 = vpack.c.bf16 %v1595, %v1595
    %v1599 = vunpack.c.l.s4 1966171168
    %v1600 = vunpack.c.0.s8 %v1599
    %v1601 = vlaneseq
    %v1602 = vshrl.u32 %v1601, 7
    %v1603 = vsub.s32 %v1600, %v1602
    %v1604 = vrot.slane %v1596, %v1603
    %v1606 = vunpack.c.l.s4 1966171168
    %v1607 = vunpack.c.0.s8 %v1606
    %v1608 = vlaneseq
    %v1609 = vshrl.u32 %v1608, 7
    %v1610 = vsub.s32 %v1607, %v1609
    %v1611 = vrot.slane %v1604, %v1610
    %v1612 = vunpack.i.l.s16 %v1611
    %v1613 = vunpack.i.h.s16 %v1611
    %v1614 = vpack.i.b16 %v1612, %v1612
    %v1615 = vpack.i.b16 %v1613, %v1613
    %v1617 = vunpack.c.l.s4 286326784
    %v1618 = vunpack.c.0.s8 %v1617
    %v1619 = vlaneseq
    %v1620 = vshrl.u32 %v1619, 7
    %v1621 = vsub.s32 %v1618, %v1620
    %v1622 = vrot.slane %v1614, %v1621
    %v1624 = vunpack.c.l.s4 286326784
    %v1625 = vunpack.c.0.s8 %v1624
    %v1626 = vlaneseq
    %v1627 = vshrl.u32 %v1626, 7
    %v1628 = vsub.s32 %v1625, %v1627
    %v1629 = vrot.slane %v1615, %v1628
    %vm1632 = vsmask.f32 2304
    %vm1633 = vmand %vm1265, %vm1632
    %v1634 = vld [vmem:[%s124] sm:$0x4]
    %v1635 = vsel %vm1633, %v1622, %v1634
    %1636 = vst [vmem:[%s124] sm:$0x4] %v1635
    %v1637 = vld [vmem:[%s124 + $0x4] sm:$0x4]
    %v1638 = vsel %vm1633, %v1629, %v1637
    %1639 = vst [vmem:[%s124 + $0x4] sm:$0x4] %v1638
    %v1640 = vld [vmem:[#allocation4] sm:$0x4]
    %v1641 = vld [vmem:[#allocation4 + $0x4] sm:$0x4]
    %v1642 = vunpack.c.l.bf16 %v1640
    %v1643 = vunpack.c.l.bf16 %v1641
    %v1644 = vpack.c.bf16 %v1517, %v1517
    %v1646 = vsel %vm172, %v1644, 0
    %1648 = vmatprep.subr.bf16.mxu0 0
    %1649 = vmatpush1.bf16.msra.mxu0 %v168
    %1650 = vmatprep.subr.bf16.mxu0 0
    %1651 = vmatpush1.bf16.msra.mxu0 %v169
    %1652 = vmatprep.subr.bf16.mxu0 0
    %1653 = vmatpush1.bf16.msra.mxu0 0
    %1654 = vmatprep.subr.bf16.mxu0 0
    %1655 = vmatpush1.bf16.msra.mxu0 0
    %1656 = vmatprep.subr.bf16.mxu0 0
    %1657 = vmatpush1.bf16.msra.mxu0 0
    %1658 = vmatprep.subr.bf16.mxu0 0
    %1659 = vmatpush1.bf16.msra.mxu0 0
    %1660 = vmatprep.subr.bf16.mxu0 0
    %1661 = vmatpush1.bf16.msra.mxu0 0
    %1662 = vmatprep.subr.bf16.mxu0 0
    %1663 = vmatpush1.bf16.msra.mxu0 0
    %1664 = vmatprep.subr.bf16.mxu0 0
    %1665 = vmatpush1.bf16.msra.mxu0 0
    %1666 = vmatprep.subr.bf16.mxu0 0
    %1667 = vmatpush1.bf16.msra.mxu0 0
    %1668 = vmatprep.subr.bf16.mxu0 0
    %1669 = vmatpush1.bf16.msra.mxu0 0
    %1670 = vmatprep.subr.bf16.mxu0 0
    %1671 = vmatpush1.bf16.msra.mxu0 0
    %1672 = vmatprep.subr.bf16.mxu0 0
    %1673 = vmatpush1.bf16.msra.mxu0 0
    %1674 = vmatprep.subr.bf16.mxu0 0
    %1675 = vmatpush1.bf16.msra.mxu0 0
    %1676 = vmatprep.subr.bf16.mxu0 0
    %1677 = vmatpush1.bf16.msra.mxu0 0
    %1678 = vmatprep.subr.bf16.mxu0 0
    %1679 = vmatpush1.bf16.msra.mxu0 0
    %1680 = vmatprep.mubr.bf16.mxu0 0
    %1681 = vmatmul.mubr.bf16.gmra.mrb[0].mxu0 %v1646
    %v1682 = vpop.f32.mrb[0].mxu0
    %v1683 = vadd.f32 0.0, %v1682
    %v1684 = vpop.f32.mrb[0].mxu0
    %v1685 = vpop.f32.mrb[0].mxu0
    %v1686 = vpop.f32.mrb[0].mxu0
    %1687 = vdwg.mxu0
    %v1689 = vrot.slane %v1683, 4
    %v1690 = vrot.slane %v1683, 5
    %v1693 = vadd.f32 %v1642, %v1689
    %v1694 = vadd.f32 %v1643, %v1690
    %v1695 = vld [vmem:[#allocation5] sm:$0x2]
    %v1696 = vld [vmem:[#allocation5 + $0x4] sm:$0x2]
    %v1697 = vunpack.c.l.bf16 %v1695
    %v1698 = vunpack.c.l.bf16 %v1696
    %v1699 = vpack.c.bf16 %v1540, %v1540
    %v1701 = vsel %vm172, %v1699, 0
    %1703 = vmatprep.subr.bf16.mxu0 0
    %1704 = vmatpush1.bf16.msra.mxu0 %v235
    %1705 = vmatprep.subr.bf16.mxu0 0
    %1706 = vmatpush1.bf16.msra.mxu0 %v236
    %1707 = vmatprep.subr.bf16.mxu0 0
    %1708 = vmatpush1.bf16.msra.mxu0 0
    %1709 = vmatprep.subr.bf16.mxu0 0
    %1710 = vmatpush1.bf16.msra.mxu0 0
    %1711 = vmatprep.subr.bf16.mxu0 0
    %1712 = vmatpush1.bf16.msra.mxu0 0
    %1713 = vmatprep.subr.bf16.mxu0 0
    %1714 = vmatpush1.bf16.msra.mxu0 0
    %1715 = vmatprep.subr.bf16.mxu0 0
    %1716 = vmatpush1.bf16.msra.mxu0 0
    %1717 = vmatprep.subr.bf16.mxu0 0
    %1718 = vmatpush1.bf16.msra.mxu0 0
    %1719 = vmatprep.subr.bf16.mxu0 0
    %1720 = vmatpush1.bf16.msra.mxu0 0
    %1721 = vmatprep.subr.bf16.mxu0 0
    %1722 = vmatpush1.bf16.msra.mxu0 0
    %1723 = vmatprep.subr.bf16.mxu0 0
    %1724 = vmatpush1.bf16.msra.mxu0 0
    %1725 = vmatprep.subr.bf16.mxu0 0
    %1726 = vmatpush1.bf16.msra.mxu0 0
    %1727 = vmatprep.subr.bf16.mxu0 0
    %1728 = vmatpush1.bf16.msra.mxu0 0
    %1729 = vmatprep.subr.bf16.mxu0 0
    %1730 = vmatpush1.bf16.msra.mxu0 0
    %1731 = vmatprep.subr.bf16.mxu0 0
    %1732 = vmatpush1.bf16.msra.mxu0 0
    %1733 = vmatprep.subr.bf16.mxu0 0
    %1734 = vmatpush1.bf16.msra.mxu0 0
    %1735 = vmatprep.mubr.bf16.mxu0 0
    %1736 = vmatmul.mubr.bf16.gmra.mrb[0].mxu0 %v1701
    %v1737 = vpop.f32.mrb[0].mxu0
    %v1738 = vadd.f32 0.0, %v1737
    %v1739 = vpop.f32.mrb[0].mxu0
    %v1740 = vpop.f32.mrb[0].mxu0
    %v1741 = vpop.f32.mrb[0].mxu0
    %1742 = vdwg.mxu0
    %v1744 = vrot.slane %v1738, 5
    %v1745 = vrot.slane %v1738, 6
    %v1748 = vadd.f32 %v1697, %v1744
    %v1749 = vadd.f32 %v1698, %v1745
    %v1750 = vxor.u32 %v1693, 2147483648
    %v1751 = vxor.u32 %v1694, 2147483648
    %v1752 = vmul.f32 %v1750, 1.442695
    %v1753 = vpow.pop %v1752
    %v1754 = vmul.f32 %v1751, 1.442695
    %v1755 = vpow.pop %v1754
    %v1756 = vadd.f32 %v1753, 1.0
    %v1757 = vadd.f32 %v1755, 1.0
    %v1758 = vrcp.pop %v1756
    %v1759 = vmul.f32 1.0, %v1758
    %v1760 = vrcp.pop %v1757
    %v1761 = vmul.f32 1.0, %v1760
    %v1762 = vtanh.pop %v1693
    %v1763 = vtanh.pop %v1694
    %v1765 = vrot.slane %v1526, 4
    %v1766 = vrot.slane %v1526, 5
    %1767 = vrot.lane.b32.xlu0 %v1765, 32
    %v1768 = vpop.permute.xlu0 %1767
    %1769 = vrot.lane.b32.xlu0 %v1766, 32
    %v1770 = vpop.permute.xlu0 %1769
    %v1773 = vmul.f32 %v1759, %v1768
    %v1774 = vmul.f32 %v1761, %v1770
    %1777 = vrot.lane.b32.xlu0 %v1762, 64
    %v1778 = vpop.permute.xlu0 %1777
    %1779 = vrot.lane.b32.xlu0 %v1763, 64
    %v1780 = vpop.permute.xlu0 %1779
    %v1783 = vmul.f32 %v1759, %v1778
    %v1784 = vmul.f32 %v1761, %v1780
    %1787 = vrot.lane.b32.xlu0 %v1783, 32
    %v1788 = vpop.permute.xlu0 %1787
    %1789 = vrot.lane.b32.xlu0 %v1784, 32
    %v1790 = vpop.permute.xlu0 %1789
    %v1793 = vadd.f32 %v1773, %v1788
    %v1794 = vadd.f32 %v1774, %v1790
    %v1795 = vtanh.pop %v1793
    %v1796 = vtanh.pop %v1794
    %1799 = vrot.lane.b32.xlu0 %v1795, 64
    %v1800 = vpop.permute.xlu0 %1799
    %1801 = vrot.lane.b32.xlu0 %v1796, 64
    %v1802 = vpop.permute.xlu0 %1801
    %v1805 = vmul.f32 %v1759, %v1800
    %v1806 = vmul.f32 %v1761, %v1802
    %v1807 = vxor.u32 %v1748, 2147483648
    %v1808 = vxor.u32 %v1749, 2147483648
    %v1809 = vmul.f32 %v1807, 1.442695
    %v1810 = vpow.pop %v1809
    %v1811 = vmul.f32 %v1808, 1.442695
    %v1812 = vpow.pop %v1811
    %v1813 = vadd.f32 %v1810, 1.0
    %v1814 = vadd.f32 %v1812, 1.0
    %v1815 = vrcp.pop %v1813
    %v1816 = vmul.f32 1.0, %v1815
    %v1817 = vrcp.pop %v1814
    %v1818 = vmul.f32 1.0, %v1817
    %v1819 = vtanh.pop %v1748
    %v1820 = vtanh.pop %v1749
    %v1822 = vrot.slane %v1549, 5
    %v1823 = vrot.slane %v1549, 6
    %1824 = vrot.lane.b32.xlu0 %v1822, 32
    %v1825 = vpop.permute.xlu0 %1824
    %1826 = vrot.lane.b32.xlu0 %v1823, 32
    %v1827 = vpop.permute.xlu0 %1826
    %v1830 = vmul.f32 %v1816, %v1825
    %v1831 = vmul.f32 %v1818, %v1827
    %1834 = vrot.lane.b32.xlu0 %v1819, 64
    %v1835 = vpop.permute.xlu0 %1834
    %1836 = vrot.lane.b32.xlu0 %v1820, 64
    %v1837 = vpop.permute.xlu0 %1836
    %v1840 = vmul.f32 %v1816, %v1835
    %v1841 = vmul.f32 %v1818, %v1837
    %1844 = vrot.lane.b32.xlu0 %v1840, 32
    %v1845 = vpop.permute.xlu0 %1844
    %1846 = vrot.lane.b32.xlu0 %v1841, 32
    %v1847 = vpop.permute.xlu0 %1846
    %v1850 = vadd.f32 %v1830, %v1845
    %v1851 = vadd.f32 %v1831, %v1847
    %v1852 = vtanh.pop %v1850
    %v1853 = vtanh.pop %v1851
    %1856 = vrot.lane.b32.xlu0 %v1852, 64
    %v1857 = vpop.permute.xlu0 %1856
    %1858 = vrot.lane.b32.xlu0 %v1853, 64
    %v1859 = vpop.permute.xlu0 %1858
    %v1862 = vmul.f32 %v1816, %v1857
    %v1863 = vmul.f32 %v1818, %v1859
    %s1864 = sadd.s32 %s137, 4
    %v1865 = vstv %s1864
    %vm1866 = vcmp.lt.s32.totalorder %v1865, %v136
    %s1867 = sadd.s32 %s139, 3
    %v1868 = vstv %s1867
    %vm1869 = vcmp.lt.s32.totalorder %v1868, %v136
    %v1870 = vsel %vm1866, 1, 0
    %1871 = vset.pattern.permute.xlu0 0
    %1872 = vperm.xlu0 %1871, %v1870
    %v1873 = vpop.permute.xlu0 %1872
    %vm1874 = vcmp.eq.s32.totalorder %v1873, 1
    %v1877 = vrot.slane %v1805, 4
    %v1878 = vrot.slane %v1806, 3
    %v1879 = vsel %vm415, %v1878, %v1877
    %1880 = vrot.lane.b32.xlu0 %v1879, 32
    %v1881 = vpop.permute.xlu0 %1880
    %v1883 = vsel %vm1874, %v1881, %v1517
    %v1886 = vrot.slane %v1793, 4
    %v1887 = vrot.slane %v1794, 3
    %v1888 = vsel %vm415, %v1887, %v1886
    %1889 = vrot.lane.b32.xlu0 %v1888, 96
    %v1890 = vpop.permute.xlu0 %1889
    %v1892 = vsel %vm1874, %v1890, %v1526
    %v1893 = vsel %vm1869, 1, 0
    %1894 = vset.pattern.permute.xlu0 0
    %1895 = vperm.xlu0 %1894, %v1893
    %v1896 = vpop.permute.xlu0 %1895
    %vm1897 = vcmp.eq.s32.totalorder %v1896, 1
    %v1900 = vrot.slane %v1862, 3
    %v1901 = vrot.slane %v1863, 2
    %v1902 = vsel %vm415, %v1901, %v1900
    %1903 = vrot.lane.b32.xlu0 %v1902, 32
    %v1904 = vpop.permute.xlu0 %1903
    %v1906 = vsel %vm1897, %v1904, %v1540
    %v1909 = vrot.slane %v1850, 3
    %v1910 = vrot.slane %v1851, 2
    %v1911 = vsel %vm415, %v1910, %v1909
    %1912 = vrot.lane.b32.xlu0 %v1911, 96
    %v1913 = vpop.permute.xlu0 %1912
    %v1915 = vsel %vm1897, %v1913, %v1549
    %v1916 = vsel %vm1874, %v1881, 0.0
    %v1917 = vpack.c.bf16 %v1916, %v1916
    %v1920 = vunpack.c.l.s4 1966171168
    %v1921 = vunpack.c.0.s8 %v1920
    %v1922 = vlaneseq
    %v1923 = vshrl.u32 %v1922, 7
    %v1924 = vsub.s32 %v1921, %v1923
    %v1925 = vrot.slane %v1917, %v1924
    %v1927 = vunpack.c.l.s4 1966171168
    %v1928 = vunpack.c.0.s8 %v1927
    %v1929 = vlaneseq
    %v1930 = vshrl.u32 %v1929, 7
    %v1931 = vsub.s32 %v1928, %v1930
    %v1932 = vrot.slane %v1925, %v1931
    %v1933 = vunpack.i.l.s16 %v1932
    %v1934 = vunpack.i.h.s16 %v1932
    %v1935 = vpack.i.b16 %v1933, %v1933
    %v1936 = vpack.i.b16 %v1934, %v1934
    %v1938 = vunpack.c.l.s4 286326784
    %v1939 = vunpack.c.0.s8 %v1938
    %v1940 = vlaneseq
    %v1941 = vshrl.u32 %v1940, 7
    %v1942 = vsub.s32 %v1939, %v1941
    %v1943 = vrot.slane %v1935, %v1942
    %v1945 = vunpack.c.l.s4 286326784
    %v1946 = vunpack.c.0.s8 %v1945
    %v1947 = vlaneseq
    %v1948 = vshrl.u32 %v1947, 7
    %v1949 = vsub.s32 %v1946, %v1948
    %v1950 = vrot.slane %v1936, %v1949
    %v1953 = vld [vmem:[%s4] sm:$0x4]
    %v1954 = vsel %vm1633, %v1943, %v1953
    %1955 = vst [vmem:[%s4] sm:$0x4] %v1954
    %v1956 = vld [vmem:[%s4 + $0x4] sm:$0x4]
    %v1957 = vsel %vm1633, %v1950, %v1956
    %1958 = vst [vmem:[%s4 + $0x4] sm:$0x4] %v1957
    %v1959 = vsel %vm1897, %v1904, 0.0
    %v1960 = vpack.c.bf16 %v1959, %v1959
    %v1963 = vunpack.c.l.s4 1966171168
    %v1964 = vunpack.c.0.s8 %v1963
    %v1965 = vlaneseq
    %v1966 = vshrl.u32 %v1965, 7
    %v1967 = vsub.s32 %v1964, %v1966
    %v1968 = vrot.slane %v1960, %v1967
    %v1970 = vunpack.c.l.s4 1966171168
    %v1971 = vunpack.c.0.s8 %v1970
    %v1972 = vlaneseq
    %v1973 = vshrl.u32 %v1972, 7
    %v1974 = vsub.s32 %v1971, %v1973
    %v1975 = vrot.slane %v1968, %v1974
    %v1976 = vunpack.i.l.s16 %v1975
    %v1977 = vunpack.i.h.s16 %v1975
    %v1978 = vpack.i.b16 %v1976, %v1976
    %v1979 = vpack.i.b16 %v1977, %v1977
    %v1981 = vunpack.c.l.s4 286326784
    %v1982 = vunpack.c.0.s8 %v1981
    %v1983 = vlaneseq
    %v1984 = vshrl.u32 %v1983, 7
    %v1985 = vsub.s32 %v1982, %v1984
    %v1986 = vrot.slane %v1978, %v1985
    %v1988 = vunpack.c.l.s4 286326784
    %v1989 = vunpack.c.0.s8 %v1988
    %v1990 = vlaneseq
    %v1991 = vshrl.u32 %v1990, 7
    %v1992 = vsub.s32 %v1989, %v1991
    %v1993 = vrot.slane %v1979, %v1992
    %v1996 = vld [vmem:[%s124] sm:$0x2]
    %v1997 = vsel %vm1588, %v1986, %v1996
    %1998 = vst [vmem:[%s124] sm:$0x2] %v1997
    %v1999 = vld [vmem:[%s124 + $0x4] sm:$0x2]
    %v2000 = vsel %vm1588, %v1993, %v1999
    %2001 = vst [vmem:[%s124 + $0x4] sm:$0x2] %v2000
    %v2002 = vld [vmem:[#allocation4] sm:$0x4]
    %v2003 = vld [vmem:[#allocation4 + $0x4] sm:$0x4]
    %v2004 = vunpack.c.l.bf16 %v2002
    %v2005 = vunpack.c.l.bf16 %v2003
    %v2006 = vpack.c.bf16 %v1883, %v1883
    %v2008 = vsel %vm172, %v2006, 0
    %2010 = vmatprep.subr.bf16.mxu0 0
    %2011 = vmatpush1.bf16.msra.mxu0 %v168
    %2012 = vmatprep.subr.bf16.mxu0 0
    %2013 = vmatpush1.bf16.msra.mxu0 %v169
    %2014 = vmatprep.subr.bf16.mxu0 0
    %2015 = vmatpush1.bf16.msra.mxu0 0
    %2016 = vmatprep.subr.bf16.mxu0 0
    %2017 = vmatpush1.bf16.msra.mxu0 0
    %2018 = vmatprep.subr.bf16.mxu0 0
    %2019 = vmatpush1.bf16.msra.mxu0 0
    %2020 = vmatprep.subr.bf16.mxu0 0
    %2021 = vmatpush1.bf16.msra.mxu0 0
    %2022 = vmatprep.subr.bf16.mxu0 0
    %2023 = vmatpush1.bf16.msra.mxu0 0
    %2024 = vmatprep.subr.bf16.mxu0 0
    %2025 = vmatpush1.bf16.msra.mxu0 0
    %2026 = vmatprep.subr.bf16.mxu0 0
    %2027 = vmatpush1.bf16.msra.mxu0 0
    %2028 = vmatprep.subr.bf16.mxu0 0
    %2029 = vmatpush1.bf16.msra.mxu0 0
    %2030 = vmatprep.subr.bf16.mxu0 0
    %2031 = vmatpush1.bf16.msra.mxu0 0
    %2032 = vmatprep.subr.bf16.mxu0 0
    %2033 = vmatpush1.bf16.msra.mxu0 0
    %2034 = vmatprep.subr.bf16.mxu0 0
    %2035 = vmatpush1.bf16.msra.mxu0 0
    %2036 = vmatprep.subr.bf16.mxu0 0
    %2037 = vmatpush1.bf16.msra.mxu0 0
    %2038 = vmatprep.subr.bf16.mxu0 0
    %2039 = vmatpush1.bf16.msra.mxu0 0
    %2040 = vmatprep.subr.bf16.mxu0 0
    %2041 = vmatpush1.bf16.msra.mxu0 0
    %2042 = vmatprep.mubr.bf16.mxu0 0
    %2043 = vmatmul.mubr.bf16.gmra.mrb[0].mxu0 %v2008
    %v2044 = vpop.f32.mrb[0].mxu0
    %v2045 = vadd.f32 0.0, %v2044
    %v2046 = vpop.f32.mrb[0].mxu0
    %v2047 = vpop.f32.mrb[0].mxu0
    %v2048 = vpop.f32.mrb[0].mxu0
    %2049 = vdwg.mxu0
    %v2051 = vrot.slane %v2045, 3
    %v2052 = vrot.slane %v2045, 4
    %v2055 = vadd.f32 %v2004, %v2051
    %v2056 = vadd.f32 %v2005, %v2052
    %v2057 = vld [vmem:[#allocation5] sm:$0x2]
    %v2058 = vld [vmem:[#allocation5 + $0x4] sm:$0x2]
    %v2059 = vunpack.c.l.bf16 %v2057
    %v2060 = vunpack.c.l.bf16 %v2058
    %v2061 = vpack.c.bf16 %v1906, %v1906
    %v2063 = vsel %vm172, %v2061, 0
    %2065 = vmatprep.subr.bf16.mxu0 0
    %2066 = vmatpush1.bf16.msra.mxu0 %v235
    %2067 = vmatprep.subr.bf16.mxu0 0
    %2068 = vmatpush1.bf16.msra.mxu0 %v236
    %2069 = vmatprep.subr.bf16.mxu0 0
    %2070 = vmatpush1.bf16.msra.mxu0 0
    %2071 = vmatprep.subr.bf16.mxu0 0
    %2072 = vmatpush1.bf16.msra.mxu0 0
    %2073 = vmatprep.subr.bf16.mxu0 0
    %2074 = vmatpush1.bf16.msra.mxu0 0
    %2075 = vmatprep.subr.bf16.mxu0 0
    %2076 = vmatpush1.bf16.msra.mxu0 0
    %2077 = vmatprep.subr.bf16.mxu0 0
    %2078 = vmatpush1.bf16.msra.mxu0 0
    %2079 = vmatprep.subr.bf16.mxu0 0
    %2080 = vmatpush1.bf16.msra.mxu0 0
    %2081 = vmatprep.subr.bf16.mxu0 0
    %2082 = vmatpush1.bf16.msra.mxu0 0
    %2083 = vmatprep.subr.bf16.mxu0 0
    %2084 = vmatpush1.bf16.msra.mxu0 0
    %2085 = vmatprep.subr.bf16.mxu0 0
    %2086 = vmatpush1.bf16.msra.mxu0 0
    %2087 = vmatprep.subr.bf16.mxu0 0
    %2088 = vmatpush1.bf16.msra.mxu0 0
    %2089 = vmatprep.subr.bf16.mxu0 0
    %2090 = vmatpush1.bf16.msra.mxu0 0
    %2091 = vmatprep.subr.bf16.mxu0 0
    %2092 = vmatpush1.bf16.msra.mxu0 0
    %2093 = vmatprep.subr.bf16.mxu0 0
    %2094 = vmatpush1.bf16.msra.mxu0 0
    %2095 = vmatprep.subr.bf16.mxu0 0
    %2096 = vmatpush1.bf16.msra.mxu0 0
    %2097 = vmatprep.mubr.bf16.mxu0 0
    %2098 = vmatmul.mubr.bf16.gmra.mrb[0].mxu0 %v2063
    %v2099 = vpop.f32.mrb[0].mxu0
    %v2100 = vadd.f32 0.0, %v2099
    %v2101 = vpop.f32.mrb[0].mxu0
    %v2102 = vpop.f32.mrb[0].mxu0
    %v2103 = vpop.f32.mrb[0].mxu0
    %2104 = vdwg.mxu0
    %v2106 = vrot.slane %v2100, 6
    %v2107 = vrot.slane %v2100, 7
    %v2110 = vadd.f32 %v2059, %v2106
    %v2111 = vadd.f32 %v2060, %v2107
    %v2112 = vxor.u32 %v2055, 2147483648
    %v2113 = vxor.u32 %v2056, 2147483648
    %v2114 = vmul.f32 %v2112, 1.442695
    %v2115 = vpow.pop %v2114
    %v2116 = vmul.f32 %v2113, 1.442695
    %v2117 = vpow.pop %v2116
    %v2118 = vadd.f32 %v2115, 1.0
    %v2119 = vadd.f32 %v2117, 1.0
    %v2120 = vrcp.pop %v2118
    %v2121 = vmul.f32 1.0, %v2120
    %v2122 = vrcp.pop %v2119
    %v2123 = vmul.f32 1.0, %v2122
    %v2124 = vtanh.pop %v2055
    %v2125 = vtanh.pop %v2056
    %v2127 = vrot.slane %v1892, 3
    %v2128 = vrot.slane %v1892, 4
    %2129 = vrot.lane.b32.xlu0 %v2127, 32
    %v2130 = vpop.permute.xlu0 %2129
    %2131 = vrot.lane.b32.xlu0 %v2128, 32
    %v2132 = vpop.permute.xlu0 %2131
    %v2135 = vmul.f32 %v2121, %v2130
    %v2136 = vmul.f32 %v2123, %v2132
    %2139 = vrot.lane.b32.xlu0 %v2124, 64
    %v2140 = vpop.permute.xlu0 %2139
    %2141 = vrot.lane.b32.xlu0 %v2125, 64
    %v2142 = vpop.permute.xlu0 %2141
    %v2145 = vmul.f32 %v2121, %v2140
    %v2146 = vmul.f32 %v2123, %v2142
    %2149 = vrot.lane.b32.xlu0 %v2145, 32
    %v2150 = vpop.permute.xlu0 %2149
    %2151 = vrot.lane.b32.xlu0 %v2146, 32
    %v2152 = vpop.permute.xlu0 %2151
    %v2155 = vadd.f32 %v2135, %v2150
    %v2156 = vadd.f32 %v2136, %v2152
    %v2157 = vtanh.pop %v2155
    %v2158 = vtanh.pop %v2156
    %2161 = vrot.lane.b32.xlu0 %v2157, 64
    %v2162 = vpop.permute.xlu0 %2161
    %2163 = vrot.lane.b32.xlu0 %v2158, 64
    %v2164 = vpop.permute.xlu0 %2163
    %v2167 = vmul.f32 %v2121, %v2162
    %v2168 = vmul.f32 %v2123, %v2164
    %v2169 = vxor.u32 %v2110, 2147483648
    %v2170 = vxor.u32 %v2111, 2147483648
    %v2171 = vmul.f32 %v2169, 1.442695
    %v2172 = vpow.pop %v2171
    %v2173 = vmul.f32 %v2170, 1.442695
    %v2174 = vpow.pop %v2173
    %v2175 = vadd.f32 %v2172, 1.0
    %v2176 = vadd.f32 %v2174, 1.0
    %v2177 = vrcp.pop %v2175
    %v2178 = vmul.f32 1.0, %v2177
    %v2179 = vrcp.pop %v2176
    %v2180 = vmul.f32 1.0, %v2179
    %v2181 = vtanh.pop %v2110
    %v2182 = vtanh.pop %v2111
    %v2184 = vrot.slane %v1915, 6
    %v2185 = vrot.slane %v1915, 7
    %2186 = vrot.lane.b32.xlu0 %v2184, 32
    %v2187 = vpop.permute.xlu0 %2186
    %2188 = vrot.lane.b32.xlu0 %v2185, 32
    %v2189 = vpop.permute.xlu0 %2188
    %v2192 = vmul.f32 %v2178, %v2187
    %v2193 = vmul.f32 %v2180, %v2189
    %2196 = vrot.lane.b32.xlu0 %v2181, 64
    %v2197 = vpop.permute.xlu0 %2196
    %2198 = vrot.lane.b32.xlu0 %v2182, 64
    %v2199 = vpop.permute.xlu0 %2198
    %v2202 = vmul.f32 %v2178, %v2197
    %v2203 = vmul.f32 %v2180, %v2199
    %2206 = vrot.lane.b32.xlu0 %v2202, 32
    %v2207 = vpop.permute.xlu0 %2206
    %2208 = vrot.lane.b32.xlu0 %v2203, 32
    %v2209 = vpop.permute.xlu0 %2208
    %v2212 = vadd.f32 %v2192, %v2207
    %v2213 = vadd.f32 %v2193, %v2209
    %v2214 = vtanh.pop %v2212
    %v2215 = vtanh.pop %v2213
    %2218 = vrot.lane.b32.xlu0 %v2214, 64
    %v2219 = vpop.permute.xlu0 %2218
    %2220 = vrot.lane.b32.xlu0 %v2215, 64
    %v2221 = vpop.permute.xlu0 %2220
    %v2224 = vmul.f32 %v2178, %v2219
    %v2225 = vmul.f32 %v2180, %v2221
    %s2226 = sadd.s32 %s137, 5
    %v2227 = vstv %s2226
    %vm2228 = vcmp.lt.s32.totalorder %v2227, %v136
    %s2229 = sadd.s32 %s139, 2
    %v2230 = vstv %s2229
    %vm2231 = vcmp.lt.s32.totalorder %v2230, %v136
    %v2232 = vsel %vm2228, 1, 0
    %2233 = vset.pattern.permute.xlu0 0
    %2234 = vperm.xlu0 %2233, %v2232
    %v2235 = vpop.permute.xlu0 %2234
    %vm2236 = vcmp.eq.s32.totalorder %v2235, 1
    %v2239 = vrot.slane %v2167, 5
    %v2240 = vrot.slane %v2168, 4
    %v2241 = vsel %vm415, %v2240, %v2239
    %2242 = vrot.lane.b32.xlu0 %v2241, 32
    %v2243 = vpop.permute.xlu0 %2242
    %v2245 = vsel %vm2236, %v2243, %v1883
    %v2248 = vrot.slane %v2155, 5
    %v2249 = vrot.slane %v2156, 4
    %v2250 = vsel %vm415, %v2249, %v2248
    %2251 = vrot.lane.b32.xlu0 %v2250, 96
    %v2252 = vpop.permute.xlu0 %2251
    %v2254 = vsel %vm2236, %v2252, %v1892
    %v2255 = vsel %vm2231, 1, 0
    %2256 = vset.pattern.permute.xlu0 0
    %2257 = vperm.xlu0 %2256, %v2255
    %v2258 = vpop.permute.xlu0 %2257
    %vm2259 = vcmp.eq.s32.totalorder %v2258, 1
    %v2262 = vrot.slane %v2224, 2
    %v2263 = vrot.slane %v2225, 1
    %v2264 = vsel %vm415, %v2263, %v2262
    %2265 = vrot.lane.b32.xlu0 %v2264, 32
    %v2266 = vpop.permute.xlu0 %2265
    %v2268 = vsel %vm2259, %v2266, %v1906
    %v2271 = vrot.slane %v2212, 2
    %v2272 = vrot.slane %v2213, 1
    %v2273 = vsel %vm415, %v2272, %v2271
    %2274 = vrot.lane.b32.xlu0 %v2273, 96
    %v2275 = vpop.permute.xlu0 %2274
    %v2277 = vsel %vm2259, %v2275, %v1915
    %v2278 = vsel %vm2236, %v2243, 0.0
    %v2279 = vpack.c.bf16 %v2278, %v2278
    %v2282 = vunpack.c.l.s4 1966171168
    %v2283 = vunpack.c.0.s8 %v2282
    %v2284 = vlaneseq
    %v2285 = vshrl.u32 %v2284, 7
    %v2286 = vsub.s32 %v2283, %v2285
    %v2287 = vrot.slane %v2279, %v2286
    %v2289 = vunpack.c.l.s4 1966171168
    %v2290 = vunpack.c.0.s8 %v2289
    %v2291 = vlaneseq
    %v2292 = vshrl.u32 %v2291, 7
    %v2293 = vsub.s32 %v2290, %v2292
    %v2294 = vrot.slane %v2287, %v2293
    %v2295 = vunpack.i.l.s16 %v2294
    %v2296 = vunpack.i.h.s16 %v2294
    %v2297 = vpack.i.b16 %v2295, %v2295
    %v2298 = vpack.i.b16 %v2296, %v2296
    %v2300 = vunpack.c.l.s4 286326784
    %v2301 = vunpack.c.0.s8 %v2300
    %v2302 = vlaneseq
    %v2303 = vshrl.u32 %v2302, 7
    %v2304 = vsub.s32 %v2301, %v2303
    %v2305 = vrot.slane %v2297, %v2304
    %v2307 = vunpack.c.l.s4 286326784
    %v2308 = vunpack.c.0.s8 %v2307
    %v2309 = vlaneseq
    %v2310 = vshrl.u32 %v2309, 7
    %v2311 = vsub.s32 %v2308, %v2310
    %v2312 = vrot.slane %v2298, %v2311
    %v2315 = vld [vmem:[%s4] sm:$0x4]
    %v2316 = vsel %vm1267, %v2305, %v2315
    %2317 = vst [vmem:[%s4] sm:$0x4] %v2316
    %v2318 = vld [vmem:[%s4 + $0x4] sm:$0x4]
    %v2319 = vsel %vm1267, %v2312, %v2318
    %2320 = vst [vmem:[%s4 + $0x4] sm:$0x4] %v2319
    %v2321 = vsel %vm2259, %v2266, 0.0
    %v2322 = vpack.c.bf16 %v2321, %v2321
    %v2325 = vunpack.c.l.s4 1966171168
    %v2326 = vunpack.c.0.s8 %v2325
    %v2327 = vlaneseq
    %v2328 = vshrl.u32 %v2327, 7
    %v2329 = vsub.s32 %v2326, %v2328
    %v2330 = vrot.slane %v2322, %v2329
    %v2332 = vunpack.c.l.s4 1966171168
    %v2333 = vunpack.c.0.s8 %v2332
    %v2334 = vlaneseq
    %v2335 = vshrl.u32 %v2334, 7
    %v2336 = vsub.s32 %v2333, %v2335
    %v2337 = vrot.slane %v2330, %v2336
    %v2338 = vunpack.i.l.s16 %v2337
    %v2339 = vunpack.i.h.s16 %v2337
    %v2340 = vpack.i.b16 %v2338, %v2338
    %v2341 = vpack.i.b16 %v2339, %v2339
    %v2343 = vunpack.c.l.s4 286326784
    %v2344 = vunpack.c.0.s8 %v2343
    %v2345 = vlaneseq
    %v2346 = vshrl.u32 %v2345, 7
    %v2347 = vsub.s32 %v2344, %v2346
    %v2348 = vrot.slane %v2340, %v2347
    %v2350 = vunpack.c.l.s4 286326784
    %v2351 = vunpack.c.0.s8 %v2350
    %v2352 = vlaneseq
    %v2353 = vshrl.u32 %v2352, 7
    %v2354 = vsub.s32 %v2351, %v2353
    %v2355 = vrot.slane %v2341, %v2354
    %v2358 = vld [vmem:[%s124] sm:$0x2]
    %v2359 = vsel %vm1221, %v2348, %v2358
    %2360 = vst [vmem:[%s124] sm:$0x2] %v2359
    %v2361 = vld [vmem:[%s124 + $0x4] sm:$0x2]
    %v2362 = vsel %vm1221, %v2355, %v2361
    %2363 = vst [vmem:[%s124 + $0x4] sm:$0x2] %v2362
    %v2364 = vld [vmem:[#allocation4] sm:$0x8]
    %v2365 = vld [vmem:[#allocation4 + $0x4] sm:$0x8]
    %v2366 = vunpack.c.l.bf16 %v2364
    %v2367 = vunpack.c.l.bf16 %v2365
    %v2368 = vpack.c.bf16 %v2245, %v2245
    %v2370 = vsel %vm172, %v2368, 0
    %2372 = vmatprep.subr.bf16.mxu0 0
    %2373 = vmatpush1.bf16.msra.mxu0 %v168
    %2374 = vmatprep.subr.bf16.mxu0 0
    %2375 = vmatpush1.bf16.msra.mxu0 %v169
    %2376 = vmatprep.subr.bf16.mxu0 0
    %2377 = vmatpush1.bf16.msra.mxu0 0
    %2378 = vmatprep.subr.bf16.mxu0 0
    %2379 = vmatpush1.bf16.msra.mxu0 0
    %2380 = vmatprep.subr.bf16.mxu0 0
    %2381 = vmatpush1.bf16.msra.mxu0 0
    %2382 = vmatprep.subr.bf16.mxu0 0
    %2383 = vmatpush1.bf16.msra.mxu0 0
    %2384 = vmatprep.subr.bf16.mxu0 0
    %2385 = vmatpush1.bf16.msra.mxu0 0
    %2386 = vmatprep.subr.bf16.mxu0 0
    %2387 = vmatpush1.bf16.msra.mxu0 0
    %2388 = vmatprep.subr.bf16.mxu0 0
    %2389 = vmatpush1.bf16.msra.mxu0 0
    %2390 = vmatprep.subr.bf16.mxu0 0
    %2391 = vmatpush1.bf16.msra.mxu0 0
    %2392 = vmatprep.subr.bf16.mxu0 0
    %2393 = vmatpush1.bf16.msra.mxu0 0
    %2394 = vmatprep.subr.bf16.mxu0 0
    %2395 = vmatpush1.bf16.msra.mxu0 0
    %2396 = vmatprep.subr.bf16.mxu0 0
    %2397 = vmatpush1.bf16.msra.mxu0 0
    %2398 = vmatprep.subr.bf16.mxu0 0
    %2399 = vmatpush1.bf16.msra.mxu0 0
    %2400 = vmatprep.subr.bf16.mxu0 0
    %2401 = vmatpush1.bf16.msra.mxu0 0
    %2402 = vmatprep.subr.bf16.mxu0 0
    %2403 = vmatpush1.bf16.msra.mxu0 0
    %2404 = vmatprep.mubr.bf16.mxu0 0
    %2405 = vmatmul.mubr.bf16.gmra.mrb[0].mxu0 %v2370
    %v2406 = vpop.f32.mrb[0].mxu0
    %v2407 = vadd.f32 0.0, %v2406
    %v2408 = vpop.f32.mrb[0].mxu0
    %v2409 = vpop.f32.mrb[0].mxu0
    %v2410 = vpop.f32.mrb[0].mxu0
    %2411 = vdwg.mxu0
    %v2413 = vrot.slane %v2407, 2
    %v2414 = vrot.slane %v2407, 3
    %v2417 = vadd.f32 %v2366, %v2413
    %v2418 = vadd.f32 %v2367, %v2414
    %v2419 = vld [vmem:[#allocation5] sm:$0x1]
    %v2420 = vld [vmem:[#allocation5 + $0x4] sm:$0x1]
    %v2421 = vunpack.c.l.bf16 %v2419
    %v2422 = vunpack.c.l.bf16 %v2420
    %v2423 = vpack.c.bf16 %v2268, %v2268
    %v2425 = vsel %vm172, %v2423, 0
    %2427 = vmatprep.subr.bf16.mxu0 0
    %2428 = vmatpush1.bf16.msra.mxu0 %v235
    %2429 = vmatprep.subr.bf16.mxu0 0
    %2430 = vmatpush1.bf16.msra.mxu0 %v236
    %2431 = vmatprep.subr.bf16.mxu0 0
    %2432 = vmatpush1.bf16.msra.mxu0 0
    %2433 = vmatprep.subr.bf16.mxu0 0
    %2434 = vmatpush1.bf16.msra.mxu0 0
    %2435 = vmatprep.subr.bf16.mxu0 0
    %2436 = vmatpush1.bf16.msra.mxu0 0
    %2437 = vmatprep.subr.bf16.mxu0 0
    %2438 = vmatpush1.bf16.msra.mxu0 0
    %2439 = vmatprep.subr.bf16.mxu0 0
    %2440 = vmatpush1.bf16.msra.mxu0 0
    %2441 = vmatprep.subr.bf16.mxu0 0
    %2442 = vmatpush1.bf16.msra.mxu0 0
    %2443 = vmatprep.subr.bf16.mxu0 0
    %2444 = vmatpush1.bf16.msra.mxu0 0
    %2445 = vmatprep.subr.bf16.mxu0 0
    %2446 = vmatpush1.bf16.msra.mxu0 0
    %2447 = vmatprep.subr.bf16.mxu0 0
    %2448 = vmatpush1.bf16.msra.mxu0 0
    %2449 = vmatprep.subr.bf16.mxu0 0
    %2450 = vmatpush1.bf16.msra.mxu0 0
    %2451 = vmatprep.subr.bf16.mxu0 0
    %2452 = vmatpush1.bf16.msra.mxu0 0
    %2453 = vmatprep.subr.bf16.mxu0 0
    %2454 = vmatpush1.bf16.msra.mxu0 0
    %2455 = vmatprep.subr.bf16.mxu0 0
    %2456 = vmatpush1.bf16.msra.mxu0 0
    %2457 = vmatprep.subr.bf16.mxu0 0
    %2458 = vmatpush1.bf16.msra.mxu0 0
    %2459 = vmatprep.mubr.bf16.mxu0 0
    %2460 = vmatmul.mubr.bf16.gmra.mrb[0].mxu0 %v2425
    %v2461 = vpop.f32.mrb[0].mxu0
    %v2462 = vadd.f32 0.0, %v2461
    %v2463 = vpop.f32.mrb[0].mxu0
    %v2464 = vpop.f32.mrb[0].mxu0
    %v2465 = vpop.f32.mrb[0].mxu0
    %2466 = vdwg.mxu0
    %v2468 = vrot.slane %v2462, 7
    %v2471 = vadd.f32 %v2421, %v2468
    %v2472 = vadd.f32 %v2422, %v2462
    %v2473 = vxor.u32 %v2417, 2147483648
    %v2474 = vxor.u32 %v2418, 2147483648
    %v2475 = vmul.f32 %v2473, 1.442695
    %v2476 = vpow.pop %v2475
    %v2477 = vmul.f32 %v2474, 1.442695
    %v2478 = vpow.pop %v2477
    %v2479 = vadd.f32 %v2476, 1.0
    %v2480 = vadd.f32 %v2478, 1.0
    %v2481 = vrcp.pop %v2479
    %v2482 = vmul.f32 1.0, %v2481
    %v2483 = vrcp.pop %v2480
    %v2484 = vmul.f32 1.0, %v2483
    %v2485 = vtanh.pop %v2417
    %v2486 = vtanh.pop %v2418
    %v2488 = vrot.slane %v2254, 2
    %v2489 = vrot.slane %v2254, 3
    %2490 = vrot.lane.b32.xlu0 %v2488, 32
    %v2491 = vpop.permute.xlu0 %2490
    %2492 = vrot.lane.b32.xlu0 %v2489, 32
    %v2493 = vpop.permute.xlu0 %2492
    %v2496 = vmul.f32 %v2482, %v2491
    %v2497 = vmul.f32 %v2484, %v2493
    %2500 = vrot.lane.b32.xlu0 %v2485, 64
    %v2501 = vpop.permute.xlu0 %2500
    %2502 = vrot.lane.b32.xlu0 %v2486, 64
    %v2503 = vpop.permute.xlu0 %2502
    %v2506 = vmul.f32 %v2482, %v2501
    %v2507 = vmul.f32 %v2484, %v2503
    %2510 = vrot.lane.b32.xlu0 %v2506, 32
    %v2511 = vpop.permute.xlu0 %2510
    %2512 = vrot.lane.b32.xlu0 %v2507, 32
    %v2513 = vpop.permute.xlu0 %2512
    %v2516 = vadd.f32 %v2496, %v2511
    %v2517 = vadd.f32 %v2497, %v2513
    %v2518 = vtanh.pop %v2516
    %v2519 = vtanh.pop %v2517
    %2522 = vrot.lane.b32.xlu0 %v2518, 64
    %v2523 = vpop.permute.xlu0 %2522
    %2524 = vrot.lane.b32.xlu0 %v2519, 64
    %v2525 = vpop.permute.xlu0 %2524
    %v2528 = vmul.f32 %v2482, %v2523
    %v2529 = vmul.f32 %v2484, %v2525
    %v2530 = vxor.u32 %v2471, 2147483648
    %v2531 = vxor.u32 %v2472, 2147483648
    %v2532 = vmul.f32 %v2530, 1.442695
    %v2533 = vpow.pop %v2532
    %v2534 = vmul.f32 %v2531, 1.442695
    %v2535 = vpow.pop %v2534
    %v2536 = vadd.f32 %v2533, 1.0
    %v2537 = vadd.f32 %v2535, 1.0
    %v2538 = vrcp.pop %v2536
    %v2539 = vmul.f32 1.0, %v2538
    %v2540 = vrcp.pop %v2537
    %v2541 = vmul.f32 1.0, %v2540
    %v2542 = vtanh.pop %v2471
    %v2543 = vtanh.pop %v2472
    %v2545 = vrot.slane %v2277, 7
    %2546 = vrot.lane.b32.xlu0 %v2545, 32
    %v2547 = vpop.permute.xlu0 %2546
    %2548 = vrot.lane.b32.xlu0 %v2277, 32
    %v2549 = vpop.permute.xlu0 %2548
    %v2552 = vmul.f32 %v2539, %v2547
    %v2553 = vmul.f32 %v2541, %v2549
    %2556 = vrot.lane.b32.xlu0 %v2542, 64
    %v2557 = vpop.permute.xlu0 %2556
    %2558 = vrot.lane.b32.xlu0 %v2543, 64
    %v2559 = vpop.permute.xlu0 %2558
    %v2562 = vmul.f32 %v2539, %v2557
    %v2563 = vmul.f32 %v2541, %v2559
    %2566 = vrot.lane.b32.xlu0 %v2562, 32
    %v2567 = vpop.permute.xlu0 %2566
    %2568 = vrot.lane.b32.xlu0 %v2563, 32
    %v2569 = vpop.permute.xlu0 %2568
    %v2572 = vadd.f32 %v2552, %v2567
    %v2573 = vadd.f32 %v2553, %v2569
    %v2574 = vtanh.pop %v2572
    %v2575 = vtanh.pop %v2573
    %2578 = vrot.lane.b32.xlu0 %v2574, 64
    %v2579 = vpop.permute.xlu0 %2578
    %2580 = vrot.lane.b32.xlu0 %v2575, 64
    %v2581 = vpop.permute.xlu0 %2580
    %v2584 = vmul.f32 %v2539, %v2579
    %v2585 = vmul.f32 %v2541, %v2581
    %s2586 = sadd.s32 %s137, 6
    %v2587 = vstv %s2586
    %vm2588 = vcmp.lt.s32.totalorder %v2587, %v136
    %s2589 = sadd.s32 %s139, 1
    %v2590 = vstv %s2589
    %vm2591 = vcmp.lt.s32.totalorder %v2590, %v136
    %v2592 = vsel %vm2588, 1, 0
    %2593 = vset.pattern.permute.xlu0 0
    %2594 = vperm.xlu0 %2593, %v2592
    %v2595 = vpop.permute.xlu0 %2594
    %vm2596 = vcmp.eq.s32.totalorder %v2595, 1
    %v2599 = vrot.slane %v2528, 6
    %v2600 = vrot.slane %v2529, 5
    %v2601 = vsel %vm415, %v2600, %v2599
    %2602 = vrot.lane.b32.xlu0 %v2601, 32
    %v2603 = vpop.permute.xlu0 %2602
    %v2605 = vsel %vm2596, %v2603, %v2245
    %v2608 = vrot.slane %v2516, 6
    %v2609 = vrot.slane %v2517, 5
    %v2610 = vsel %vm415, %v2609, %v2608
    %2611 = vrot.lane.b32.xlu0 %v2610, 96
    %v2612 = vpop.permute.xlu0 %2611
    %v2614 = vsel %vm2596, %v2612, %v2254
    %v2615 = vsel %vm2591, 1, 0
    %2616 = vset.pattern.permute.xlu0 0
    %2617 = vperm.xlu0 %2616, %v2615
    %v2618 = vpop.permute.xlu0 %2617
    %vm2619 = vcmp.eq.s32.totalorder %v2618, 1
    %v2622 = vrot.slane %v2584, 1
    %v2623 = vsel %vm415, %v2585, %v2622
    %2624 = vrot.lane.b32.xlu0 %v2623, 32
    %v2625 = vpop.permute.xlu0 %2624
    %v2627 = vsel %vm2619, %v2625, %v2268
    %v2630 = vrot.slane %v2572, 1
    %v2631 = vsel %vm415, %v2573, %v2630
    %2632 = vrot.lane.b32.xlu0 %v2631, 96
    %v2633 = vpop.permute.xlu0 %2632
    %v2635 = vsel %vm2619, %v2633, %v2277
    %v2636 = vsel %vm2596, %v2603, 0.0
    %v2637 = vpack.c.bf16 %v2636, %v2636
    %v2640 = vunpack.c.l.s4 1966171168
    %v2641 = vunpack.c.0.s8 %v2640
    %v2642 = vlaneseq
    %v2643 = vshrl.u32 %v2642, 7
    %v2644 = vsub.s32 %v2641, %v2643
    %v2645 = vrot.slane %v2637, %v2644
    %v2647 = vunpack.c.l.s4 1966171168
    %v2648 = vunpack.c.0.s8 %v2647
    %v2649 = vlaneseq
    %v2650 = vshrl.u32 %v2649, 7
    %v2651 = vsub.s32 %v2648, %v2650
    %v2652 = vrot.slane %v2645, %v2651
    %v2653 = vunpack.i.l.s16 %v2652
    %v2654 = vunpack.i.h.s16 %v2652
    %v2655 = vpack.i.b16 %v2653, %v2653
    %v2656 = vpack.i.b16 %v2654, %v2654
    %v2658 = vunpack.c.l.s4 286326784
    %v2659 = vunpack.c.0.s8 %v2658
    %v2660 = vlaneseq
    %v2661 = vshrl.u32 %v2660, 7
    %v2662 = vsub.s32 %v2659, %v2661
    %v2663 = vrot.slane %v2655, %v2662
    %v2665 = vunpack.c.l.s4 286326784
    %v2666 = vunpack.c.0.s8 %v2665
    %v2667 = vlaneseq
    %v2668 = vshrl.u32 %v2667, 7
    %v2669 = vsub.s32 %v2666, %v2668
    %v2670 = vrot.slane %v2656, %v2669
    %v2673 = vld [vmem:[%s4] sm:$0x8]
    %v2674 = vsel %vm899, %v2663, %v2673
    %2675 = vst [vmem:[%s4] sm:$0x8] %v2674
    %v2676 = vld [vmem:[%s4 + $0x4] sm:$0x8]
    %v2677 = vsel %vm899, %v2670, %v2676
    %2678 = vst [vmem:[%s4 + $0x4] sm:$0x8] %v2677
    %v2679 = vsel %vm2619, %v2625, 0.0
    %v2680 = vpack.c.bf16 %v2679, %v2679
    %v2683 = vunpack.c.l.s4 1966171168
    %v2684 = vunpack.c.0.s8 %v2683
    %v2685 = vlaneseq
    %v2686 = vshrl.u32 %v2685, 7
    %v2687 = vsub.s32 %v2684, %v2686
    %v2688 = vrot.slane %v2680, %v2687
    %v2690 = vunpack.c.l.s4 1966171168
    %v2691 = vunpack.c.0.s8 %v2690
    %v2692 = vlaneseq
    %v2693 = vshrl.u32 %v2692, 7
    %v2694 = vsub.s32 %v2691, %v2693
    %v2695 = vrot.slane %v2688, %v2694
    %v2696 = vunpack.i.l.s16 %v2695
    %v2697 = vunpack.i.h.s16 %v2695
    %v2698 = vpack.i.b16 %v2696, %v2696
    %v2699 = vpack.i.b16 %v2697, %v2697
    %v2701 = vunpack.c.l.s4 286326784
    %v2702 = vunpack.c.0.s8 %v2701
    %v2703 = vlaneseq
    %v2704 = vshrl.u32 %v2703, 7
    %v2705 = vsub.s32 %v2702, %v2704
    %v2706 = vrot.slane %v2698, %v2705
    %v2708 = vunpack.c.l.s4 286326784
    %v2709 = vunpack.c.0.s8 %v2708
    %v2710 = vlaneseq
    %v2711 = vshrl.u32 %v2710, 7
    %v2712 = vsub.s32 %v2709, %v2711
    %v2713 = vrot.slane %v2699, %v2712
    %v2716 = vld [vmem:[%s124] sm:$0x1]
    %v2717 = vsel %vm854, %v2706, %v2716
    %2718 = vst [vmem:[%s124] sm:$0x1] %v2717
    %v2719 = vld [vmem:[%s124 + $0x4] sm:$0x1]
    %v2720 = vsel %vm854, %v2713, %v2719
    %2721 = vst [vmem:[%s124 + $0x4] sm:$0x1] %v2720
    %v2722 = vld [vmem:[#allocation4] sm:$0x8]
    %v2723 = vld [vmem:[#allocation4 + $0x4] sm:$0x8]
    %v2724 = vunpack.c.l.bf16 %v2722
    %v2725 = vunpack.c.l.bf16 %v2723
    %v2726 = vpack.c.bf16 %v2605, %v2605
    %v2728 = vsel %vm172, %v2726, 0
    %2730 = vmatprep.subr.bf16.mxu0 0
    %2731 = vmatpush1.bf16.msra.mxu0 %v168
    %2732 = vmatprep.subr.bf16.mxu0 0
    %2733 = vmatpush1.bf16.msra.mxu0 %v169
    %2734 = vmatprep.subr.bf16.mxu0 0
    %2735 = vmatpush1.bf16.msra.mxu0 0
    %2736 = vmatprep.subr.bf16.mxu0 0
    %2737 = vmatpush1.bf16.msra.mxu0 0
    %2738 = vmatprep.subr.bf16.mxu0 0
    %2739 = vmatpush1.bf16.msra.mxu0 0
    %2740 = vmatprep.subr.bf16.mxu0 0
    %2741 = vmatpush1.bf16.msra.mxu0 0
    %2742 = vmatprep.subr.bf16.mxu0 0
    %2743 = vmatpush1.bf16.msra.mxu0 0
    %2744 = vmatprep.subr.bf16.mxu0 0
    %2745 = vmatpush1.bf16.msra.mxu0 0
    %2746 = vmatprep.subr.bf16.mxu0 0
    %2747 = vmatpush1.bf16.msra.mxu0 0
    %2748 = vmatprep.subr.bf16.mxu0 0
    %2749 = vmatpush1.bf16.msra.mxu0 0
    %2750 = vmatprep.subr.bf16.mxu0 0
    %2751 = vmatpush1.bf16.msra.mxu0 0
    %2752 = vmatprep.subr.bf16.mxu0 0
    %2753 = vmatpush1.bf16.msra.mxu0 0
    %2754 = vmatprep.subr.bf16.mxu0 0
    %2755 = vmatpush1.bf16.msra.mxu0 0
    %2756 = vmatprep.subr.bf16.mxu0 0
    %2757 = vmatpush1.bf16.msra.mxu0 0
    %2758 = vmatprep.subr.bf16.mxu0 0
    %2759 = vmatpush1.bf16.msra.mxu0 0
    %2760 = vmatprep.subr.bf16.mxu0 0
    %2761 = vmatpush1.bf16.msra.mxu0 0
    %2762 = vmatprep.mubr.bf16.mxu0 0
    %2763 = vmatmul.mubr.bf16.gmra.mrb[0].mxu0 %v2728
    %v2764 = vpop.f32.mrb[0].mxu0
    %v2765 = vadd.f32 0.0, %v2764
    %v2766 = vpop.f32.mrb[0].mxu0
    %v2767 = vpop.f32.mrb[0].mxu0
    %v2768 = vpop.f32.mrb[0].mxu0
    %2769 = vdwg.mxu0
    %v2771 = vrot.slane %v2765, 1
    %v2772 = vrot.slane %v2765, 2
    %v2775 = vadd.f32 %v2724, %v2771
    %v2776 = vadd.f32 %v2725, %v2772
    %v2777 = vld [vmem:[#allocation5] sm:$0x1]
    %v2778 = vld [vmem:[#allocation5 + $0x4] sm:$0x1]
    %v2779 = vunpack.c.l.bf16 %v2777
    %v2780 = vunpack.c.l.bf16 %v2778
    %v2781 = vpack.c.bf16 %v2627, %v2627
    %v2783 = vsel %vm172, %v2781, 0
    %2785 = vmatprep.subr.bf16.mxu0 0
    %2786 = vmatpush1.bf16.msra.mxu0 %v235
    %2787 = vmatprep.subr.bf16.mxu0 0
    %2788 = vmatpush1.bf16.msra.mxu0 %v236
    %2789 = vmatprep.subr.bf16.mxu0 0
    %2790 = vmatpush1.bf16.msra.mxu0 0
    %2791 = vmatprep.subr.bf16.mxu0 0
    %2792 = vmatpush1.bf16.msra.mxu0 0
    %2793 = vmatprep.subr.bf16.mxu0 0
    %2794 = vmatpush1.bf16.msra.mxu0 0
    %2795 = vmatprep.subr.bf16.mxu0 0
    %2796 = vmatpush1.bf16.msra.mxu0 0
    %2797 = vmatprep.subr.bf16.mxu0 0
    %2798 = vmatpush1.bf16.msra.mxu0 0
    %2799 = vmatprep.subr.bf16.mxu0 0
    %2800 = vmatpush1.bf16.msra.mxu0 0
    %2801 = vmatprep.subr.bf16.mxu0 0
    %2802 = vmatpush1.bf16.msra.mxu0 0
    %2803 = vmatprep.subr.bf16.mxu0 0
    %2804 = vmatpush1.bf16.msra.mxu0 0
    %2805 = vmatprep.subr.bf16.mxu0 0
    %2806 = vmatpush1.bf16.msra.mxu0 0
    %2807 = vmatprep.subr.bf16.mxu0 0
    %2808 = vmatpush1.bf16.msra.mxu0 0
    %2809 = vmatprep.subr.bf16.mxu0 0
    %2810 = vmatpush1.bf16.msra.mxu0 0
    %2811 = vmatprep.subr.bf16.mxu0 0
    %2812 = vmatpush1.bf16.msra.mxu0 0
    %2813 = vmatprep.subr.bf16.mxu0 0
    %2814 = vmatpush1.bf16.msra.mxu0 0
    %2815 = vmatprep.subr.bf16.mxu0 0
    %2816 = vmatpush1.bf16.msra.mxu0 0
    %2817 = vmatprep.mubr.bf16.mxu0 0
    %2818 = vmatmul.mubr.bf16.gmra.mrb[0].mxu0 %v2783
    %v2819 = vpop.f32.mrb[0].mxu0
    %v2820 = vadd.f32 0.0, %v2819
    %v2821 = vpop.f32.mrb[0].mxu0
    %v2822 = vpop.f32.mrb[0].mxu0
    %v2823 = vpop.f32.mrb[0].mxu0
    %2824 = vdwg.mxu0
    %v2826 = vrot.slane %v2820, 1
    %v2829 = vadd.f32 %v2779, %v2820
    %v2830 = vadd.f32 %v2780, %v2826
    %v2831 = vxor.u32 %v2775, 2147483648
    %v2832 = vxor.u32 %v2776, 2147483648
    %v2833 = vmul.f32 %v2831, 1.442695
    %v2834 = vpow.pop %v2833
    %v2835 = vmul.f32 %v2832, 1.442695
    %v2836 = vpow.pop %v2835
    %v2837 = vadd.f32 %v2834, 1.0
    %v2838 = vadd.f32 %v2836, 1.0
    %v2839 = vrcp.pop %v2837
    %v2840 = vmul.f32 1.0, %v2839
    %v2841 = vrcp.pop %v2838
    %v2842 = vmul.f32 1.0, %v2841
    %v2843 = vtanh.pop %v2775
    %v2844 = vtanh.pop %v2776
    %v2846 = vrot.slane %v2614, 1
    %v2847 = vrot.slane %v2614, 2
    %2848 = vrot.lane.b32.xlu0 %v2846, 32
    %v2849 = vpop.permute.xlu0 %2848
    %2850 = vrot.lane.b32.xlu0 %v2847, 32
    %v2851 = vpop.permute.xlu0 %2850
    %v2854 = vmul.f32 %v2840, %v2849
    %v2855 = vmul.f32 %v2842, %v2851
    %2858 = vrot.lane.b32.xlu0 %v2843, 64
    %v2859 = vpop.permute.xlu0 %2858
    %2860 = vrot.lane.b32.xlu0 %v2844, 64
    %v2861 = vpop.permute.xlu0 %2860
    %v2864 = vmul.f32 %v2840, %v2859
    %v2865 = vmul.f32 %v2842, %v2861
    %2868 = vrot.lane.b32.xlu0 %v2864, 32
    %v2869 = vpop.permute.xlu0 %2868
    %2870 = vrot.lane.b32.xlu0 %v2865, 32
    %v2871 = vpop.permute.xlu0 %2870
    %v2874 = vadd.f32 %v2854, %v2869
    %v2875 = vadd.f32 %v2855, %v2871
    %v2876 = vtanh.pop %v2874
    %v2877 = vtanh.pop %v2875
    %2880 = vrot.lane.b32.xlu0 %v2876, 64
    %v2881 = vpop.permute.xlu0 %2880
    %2882 = vrot.lane.b32.xlu0 %v2877, 64
    %v2883 = vpop.permute.xlu0 %2882
    %v2886 = vmul.f32 %v2840, %v2881
    %v2887 = vmul.f32 %v2842, %v2883
    %v2888 = vxor.u32 %v2829, 2147483648
    %v2889 = vxor.u32 %v2830, 2147483648
    %v2890 = vmul.f32 %v2888, 1.442695
    %v2891 = vpow.pop %v2890
    %v2892 = vmul.f32 %v2889, 1.442695
    %v2893 = vpow.pop %v2892
    %v2894 = vadd.f32 %v2891, 1.0
    %v2895 = vadd.f32 %v2893, 1.0
    %v2896 = vrcp.pop %v2894
    %v2897 = vmul.f32 1.0, %v2896
    %v2898 = vrcp.pop %v2895
    %v2899 = vmul.f32 1.0, %v2898
    %v2900 = vtanh.pop %v2829
    %v2901 = vtanh.pop %v2830
    %v2903 = vrot.slane %v2635, 1
    %2904 = vrot.lane.b32.xlu0 %v2635, 32
    %v2905 = vpop.permute.xlu0 %2904
    %2906 = vrot.lane.b32.xlu0 %v2903, 32
    %v2907 = vpop.permute.xlu0 %2906
    %v2910 = vmul.f32 %v2897, %v2905
    %v2911 = vmul.f32 %v2899, %v2907
    %2914 = vrot.lane.b32.xlu0 %v2900, 64
    %v2915 = vpop.permute.xlu0 %2914
    %2916 = vrot.lane.b32.xlu0 %v2901, 64
    %v2917 = vpop.permute.xlu0 %2916
    %v2920 = vmul.f32 %v2897, %v2915
    %v2921 = vmul.f32 %v2899, %v2917
    %2924 = vrot.lane.b32.xlu0 %v2920, 32
    %v2925 = vpop.permute.xlu0 %2924
    %2926 = vrot.lane.b32.xlu0 %v2921, 32
    %v2927 = vpop.permute.xlu0 %2926
    %v2930 = vadd.f32 %v2910, %v2925
    %v2931 = vadd.f32 %v2911, %v2927
    %v2932 = vtanh.pop %v2930
    %v2933 = vtanh.pop %v2931
    %2936 = vrot.lane.b32.xlu0 %v2932, 64
    %v2937 = vpop.permute.xlu0 %2936
    %2938 = vrot.lane.b32.xlu0 %v2933, 64
    %v2939 = vpop.permute.xlu0 %2938
    %v2942 = vmul.f32 %v2897, %v2937
    %v2943 = vmul.f32 %v2899, %v2939
    %s2944 = sadd.s32 %s137, 7
    %v2945 = vstv %s2944
    %vm2946 = vcmp.lt.s32.totalorder %v2945, %v136
    %v2947 = vstv %s139
    %vm2948 = vcmp.lt.s32.totalorder %v2947, %v136
    %v2949 = vsel %vm2946, 1, 0
    %2950 = vset.pattern.permute.xlu0 0
    %2951 = vperm.xlu0 %2950, %v2949
    %v2952 = vpop.permute.xlu0 %2951
    %vm2953 = vcmp.eq.s32.totalorder %v2952, 1
    %v2956 = vrot.slane %v2886, 7
    %v2957 = vrot.slane %v2887, 6
    %v2958 = vsel %vm415, %v2957, %v2956
    %2959 = vrot.lane.b32.xlu0 %v2958, 32
    %v2960 = vpop.permute.xlu0 %2959
    %v2962 = vsel %vm2953, %v2960, %v2605
    %v2965 = vrot.slane %v2874, 7
    %v2966 = vrot.slane %v2875, 6
    %v2967 = vsel %vm415, %v2966, %v2965
    %2968 = vrot.lane.b32.xlu0 %v2967, 96
    %v2969 = vpop.permute.xlu0 %2968
    %v2971 = vsel %vm2953, %v2969, %v2614
    %v2972 = vsel %vm2948, 1, 0
    %2973 = vset.pattern.permute.xlu0 0
    %2974 = vperm.xlu0 %2973, %v2972
    %v2975 = vpop.permute.xlu0 %2974
    %vm2976 = vcmp.eq.s32.totalorder %v2975, 1
    %v2979 = vrot.slane %v2943, 7
    %v2980 = vsel %vm415, %v2979, %v2942
    %2981 = vrot.lane.b32.xlu0 %v2980, 32
    %v2982 = vpop.permute.xlu0 %2981
    %v2984 = vsel %vm2976, %v2982, %v2627
    %v2987 = vrot.slane %v2931, 7
    %v2988 = vsel %vm415, %v2987, %v2930
    %2989 = vrot.lane.b32.xlu0 %v2988, 96
    %v2990 = vpop.permute.xlu0 %2989
    %v2992 = vsel %vm2976, %v2990, %v2635
    %v2993 = vsel %vm2953, %v2960, 0.0
    %v2994 = vpack.c.bf16 %v2993, %v2993
    %v2997 = vunpack.c.l.s4 1966171168
    %v2998 = vunpack.c.0.s8 %v2997
    %v2999 = vlaneseq
    %v3000 = vshrl.u32 %v2999, 7
    %v3001 = vsub.s32 %v2998, %v3000
    %v3002 = vrot.slane %v2994, %v3001
    %v3004 = vunpack.c.l.s4 1966171168
    %v3005 = vunpack.c.0.s8 %v3004
    %v3006 = vlaneseq
    %v3007 = vshrl.u32 %v3006, 7
    %v3008 = vsub.s32 %v3005, %v3007
    %v3009 = vrot.slane %v3002, %v3008
    %v3010 = vunpack.i.l.s16 %v3009
    %v3011 = vunpack.i.h.s16 %v3009
    %v3012 = vpack.i.b16 %v3010, %v3010
    %v3013 = vpack.i.b16 %v3011, %v3011
    %v3015 = vunpack.c.l.s4 286326784
    %v3016 = vunpack.c.0.s8 %v3015
    %v3017 = vlaneseq
    %v3018 = vshrl.u32 %v3017, 7
    %v3019 = vsub.s32 %v3016, %v3018
    %v3020 = vrot.slane %v3012, %v3019
    %v3022 = vunpack.c.l.s4 286326784
    %v3023 = vunpack.c.0.s8 %v3022
    %v3024 = vlaneseq
    %v3025 = vshrl.u32 %v3024, 7
    %v3026 = vsub.s32 %v3023, %v3025
    %v3027 = vrot.slane %v3013, %v3026
    %v3030 = vld [vmem:[%s4] sm:$0x8]
    %v3031 = vsel %vm537, %v3020, %v3030
    %3032 = vst [vmem:[%s4] sm:$0x8] %v3031
    %v3033 = vld [vmem:[%s4 + $0x4] sm:$0x8]
    %v3034 = vsel %vm537, %v3027, %v3033
    %3035 = vst [vmem:[%s4 + $0x4] sm:$0x8] %v3034
    %v3036 = vsel %vm2976, %v2982, 0.0
    %v3037 = vpack.c.bf16 %v3036, %v3036
    %v3040 = vunpack.c.l.s4 1966171168
    %v3041 = vunpack.c.0.s8 %v3040
    %v3042 = vlaneseq
    %v3043 = vshrl.u32 %v3042, 7
    %v3044 = vsub.s32 %v3041, %v3043
    %v3045 = vrot.slane %v3037, %v3044
    %v3047 = vunpack.c.l.s4 1966171168
    %v3048 = vunpack.c.0.s8 %v3047
    %v3049 = vlaneseq
    %v3050 = vshrl.u32 %v3049, 7
    %v3051 = vsub.s32 %v3048, %v3050
    %v3052 = vrot.slane %v3045, %v3051
    %v3053 = vunpack.i.l.s16 %v3052
    %v3054 = vunpack.i.h.s16 %v3052
    %v3055 = vpack.i.b16 %v3053, %v3053
    %v3056 = vpack.i.b16 %v3054, %v3054
    %v3058 = vunpack.c.l.s4 286326784
    %v3059 = vunpack.c.0.s8 %v3058
    %v3060 = vlaneseq
    %v3061 = vshrl.u32 %v3060, 7
    %v3062 = vsub.s32 %v3059, %v3061
    %v3063 = vrot.slane %v3055, %v3062
    %v3065 = vunpack.c.l.s4 286326784
    %v3066 = vunpack.c.0.s8 %v3065
    %v3067 = vlaneseq
    %v3068 = vshrl.u32 %v3067, 7
    %v3069 = vsub.s32 %v3066, %v3068
    %v3070 = vrot.slane %v3056, %v3069
    %v3073 = vld [vmem:[%s124] sm:$0x1]
    %v3074 = vsel %vm491, %v3063, %v3073
    %3075 = vst [vmem:[%s124] sm:$0x1] %v3074
    %v3076 = vld [vmem:[%s124 + $0x4] sm:$0x1]
    %v3077 = vsel %vm491, %v3070, %v3076
    %3078 = vst [vmem:[%s124 + $0x4] sm:$0x1] %v3077
    %vm3079 = vcmask 254976
    %3080 = vst.msk [vmem:[#allocation2] sm:$0x3] %vm3079, %v2962
    %3081 = vst.msk [vmem:[#allocation3] sm:$0x3] %vm3079, %v2971
    %3082 = vst.msk [vmem:[%s151] sm:$0x3] %vm3079, %v2984
    %3083 = vst.msk [vmem:[%s153] sm:$0x3] %vm3079, %v2992
    %s3084 = ssub.s32 0, 0
    %p3085 = scmp.lt.s32.totalorder %s3084, 0
    %s3086 = scalar_select %p3085, %s3084, 0
    %s3087 = smul.addr %s3086, 4
    %s3088 = scalar_lea.vmem %s5, %s3087
    // Predicated region
    $region104: #{lstm_linear_forward.4} parent=1 // pred_check
      _
    $region105: #{lstm_linear_forward.4} parent=1 // pred_check_branch
      %3090 = sbr.rel (0) target = $region107
    $region106: #{lstm_linear_forward.4} parent=1 // pred_region
      _
    $region107: #{lstm_linear_forward.4} parent=1 // pred_fallthru
      _
    // Predicated region
    $region108: #{lstm_linear_forward.4} parent=1 // pred_check
      _
    $region109: #{lstm_linear_forward.4} parent=1 // pred_check_branch
      %3092 = sbr.rel (0) target = $region111
    $region110: #{lstm_linear_forward.4} parent=1 // pred_region
      %s3093 = ssub.s32 0, 0
    $region111: #{lstm_linear_forward.4} parent=1 // pred_fallthru
      _
    // Predicated region
    $region112: #{lstm_linear_forward.4} parent=1 // pred_check
      _
    $region113: #{lstm_linear_forward.4} parent=1 // pred_check_branch
      %3095 = sbr.rel (0) target = $region115
    $region114: #{lstm_linear_forward.4} parent=1 // pred_region
      _
    $region115: #{lstm_linear_forward.4} parent=1 // pred_fallthru
      _
    // Predicated region
    $region116: #{lstm_linear_forward.4} parent=1 // pred_check
      _
    $region117: #{lstm_linear_forward.4} parent=1 // pred_check_branch
      %3097 = sbr.rel (0) target = $region119
    $region118: #{lstm_linear_forward.4} parent=1 // pred_region
      %s3098 = ssub.s32 0, 0
      %p3099 = scmp.lt.s32.totalorder %s3098, 0
      %s3100 = scalar_select %p3099, %s3098, 0
      %s3101 = smul.addr %s3100, 4
      %s3102 = scalar_lea.vmem %s5, %s3101
    $region119: #{lstm_linear_forward.4} parent=1 // pred_fallthru
      _

</llo_original>
